<compile_context>
chip_gen: v7x
topology: tpu7x:2x2x1
jax: 0.10.0
libtpu: 0.0.40
codegen_flags: <defaults>
</compile_context>

<pallas_src>
import functools
import math

import jax
import jax.numpy as jnp
from jax.experimental import pallas as pl
from jax.experimental.pallas import tpu as pltpu


# ----------------------------- in-kernel helpers -----------------------------
def _layer_norm(x, gamma, beta, eps=1e-5):
    # x: (N, E); gamma/beta: (1, E).  Biased variance, like nn.LayerNorm.
    mean = jnp.mean(x, axis=-1, keepdims=True)
    xc = x - mean
    var = jnp.mean(xc * xc, axis=-1, keepdims=True)
    inv = jax.lax.rsqrt(var + eps)
    return xc * inv * gamma + beta


def _mha_attend_project(Q, K, V, wo, nhead, bt, seq):
    """Scaled-dot-product attention on pre-projected (N, E) slabs (N = bt*seq),
    with the per-head context accumulated straight into the output projection
    (no lane-axis concatenate).  The 1/sqrt(dh) scale is already folded into Q.
    Returns attn_out @ Wo, shape (N, E) (output-projection bias added by caller)."""
    N, E = Q.shape
    dh = E // nhead
    src = None
    for h in range(nhead):                       # small static unroll over heads
        lo = h * dh
        qh = Q[:, lo:lo + dh].reshape(bt, seq, dh)
        kh = K[:, lo:lo + dh].reshape(bt, seq, dh)
        vh = V[:, lo:lo + dh].reshape(bt, seq, dh)
        # scores = qh @ kh^T, batched over bt, no materialized transpose.
        s = jax.lax.dot_general(qh, kh, (((2,), (2,)), ((0,), (0,))),
                                preferred_element_type=jnp.float32)    # (bt,L,L)
        m = jnp.max(s, axis=-1, keepdims=True)
        p = jnp.exp(s - m)
        l = jnp.sum(p, axis=-1, keepdims=True)
        oh = jax.lax.dot_general(p, vh, (((2,), (1,)), ((0,), (0,))),
                                 preferred_element_type=jnp.float32)   # (bt,L,dh)
        # Deferred softmax normalization on the narrow output (EUP vrcp).
        oh = (oh * pl.reciprocal(l, approx=True)).reshape(N, dh)
        contrib = jnp.dot(oh, wo[lo:lo + dh, :],
                          preferred_element_type=jnp.float32)          # (N, E)
        src = contrib if src is None else src + contrib
    return src


# --------------------------------- kernel ------------------------------------
# Weight slab rows:   0=Wq1*scale 1=Wk1 2=Wv1 3=Wo1 4=Wq2*scale 5=Wk2 6=Wv2 7=Wo2
# Vector slab rows:   0=bq1*scale 1=bk1 2=bv1 3=bo1 4=ln1_g 5=ln1_b
#                     6=bq2*scale 7=bk2 8=bv2 9=bo2 10=ln2_g 11=ln2_b
def _feature_fusion_kernel(q_ref, k_ref, v_ref, w_ref, vec_ref, out_ref,
                           *, d_model, nhead, bt, seq):
    E = d_model
    N = bt * seq

    # Merge batch into the sublane axis (free retile: seq is a sublane multiple).
    q = q_ref[...].reshape(N, E)
    k = k_ref[...].reshape(N, E)
    v = v_ref[...].reshape(N, E)
    vec = vec_ref[...]
    row = lambda i: vec[i:i + 1, :]              # (1, E) broadcast row

    # ---- MHA 1: distinct q/k/v sources ----
    Q1 = jnp.dot(q, w_ref[0], preferred_element_type=jnp.float32) + row(0)
    K1 = jnp.dot(k, w_ref[1], preferred_element_type=jnp.float32) + row(1)
    V1 = jnp.dot(v, w_ref[2], preferred_element_type=jnp.float32) + row(2)
    src = _mha_attend_project(Q1, K1, V1, w_ref[3], nhead, bt, seq) + row(3)
    srcs1 = _layer_norm(v + src, row(4), row(5))

    # ---- MHA 2: self-attention ----
    Q2 = jnp.dot(srcs1, w_ref[4], preferred_element_type=jnp.float32) + row(6)
    K2 = jnp.dot(srcs1, w_ref[5], preferred_element_type=jnp.float32) + row(7)
    V2 = jnp.dot(srcs1, w_ref[6], preferred_element_type=jnp.float32) + row(8)
    src2 = _mha_attend_project(Q2, K2, V2, w_ref[7], nhead, bt, seq) + row(9)

    out_ref[...] = _layer_norm(srcs1 + src2, row(10), row(11)).reshape(bt, seq, E)


# ----------------------------- parameter packing ------------------------------
def pack_params(params, d_model, nhead):
    """One-time host-side prep: fold the 1/sqrt(dh) softmax scale into the Q
    projection of both layers and pack everything into two slabs."""
    E = d_model
    dh = E // nhead
    scale = 1.0 / math.sqrt(dh)
    win2, bin2 = params["win2"], params["bin2"]
    w_stack = jnp.stack(
        [params["wq1"] * scale, params["wk1"], params["wv1"], params["wo1"],
         win2[:, 0:E] * scale, win2[:, E:2 * E], win2[:, 2 * E:3 * E],
         params["wo2"]], axis=0)                                       # (8, E, E)
    vec_stack = jnp.concatenate(
        [params["bq1"] * scale, params["bk1"], params["bv1"], params["bo1"],
         params["ln1_g"], params["ln1_b"],
         bin2[:, 0:E] * scale, bin2[:, E:2 * E], bin2[:, 2 * E:3 * E],
         params["bo2"], params["ln2_g"], params["ln2_b"]], axis=0)     # (12, E)
    return w_stack, vec_stack


def _pick_bt(batch):
    # Keep the grid >= 2 steps when the batch allows it (v7x megacore); for tiny
    # batches a single step maximizes sublane fill and avoids loop overhead.
    if batch >= 4 and batch % 2 == 0:
        return batch // 2
    return batch


# -------------------------------- wrappers -------------------------------------
def feature_fusion_forward_ble(q, k, v, params, *, nhead):
    """featureFusion.forward on batch-major (B, L, E) inputs."""
    B, L, E = q.shape
    w_stack, vec_stack = pack_params(params, E, nhead)
    bt = _pick_bt(B)
    assert B % bt == 0
    grid = (B // bt,)

    per_step = lambda i: (i, 0, 0)
    const3 = lambda i: (0, 0, 0)    # constant index_map -> weights stay VMEM-resident
    const2 = lambda i: (0, 0)

    kernel = functools.partial(_feature_fusion_kernel,
                               d_model=E, nhead=nhead, bt=bt, seq=L)

    return pl.pallas_call(
        kernel,
        out_shape=jax.ShapeDtypeStruct((B, L, E), jnp.float32),
        grid_spec=pltpu.PrefetchScalarGridSpec(
            num_scalar_prefetch=0,
            grid=grid,
            in_specs=[
                pl.BlockSpec((bt, L, E), per_step),     # q
                pl.BlockSpec((bt, L, E), per_step),     # k
                pl.BlockSpec((bt, L, E), per_step),     # v
                pl.BlockSpec((8, E, E), const3),        # packed weight slab
                pl.BlockSpec((12, E), const2),          # packed bias/LN slab
            ],
            out_specs=pl.BlockSpec((bt, L, E), per_step),
        ),
        compiler_params=pltpu.CompilerParams(
            dimension_semantics=("parallel",)),
    )(q, k, v, w_stack, vec_stack)


def feature_fusion_forward(q_lbe, k_lbe, v_lbe, params, *, nhead):
    """featureFusion.forward, seq-first (L, B, E) like PyTorch MultiheadAttention.
    The single transpose per tensor buys contiguous per-batch rows so the kernel
    can merge batch into the sublane axis; callers that already hold (B, L, E)
    should call feature_fusion_forward_ble directly and skip it."""
    q = jnp.transpose(q_lbe, (1, 0, 2))
    k = jnp.transpose(k_lbe, (1, 0, 2))
    v = jnp.transpose(v_lbe, (1, 0, 2))
    out = feature_fusion_forward_ble(q, k, v, params, nhead=nhead)
    return jnp.transpose(out, (1, 0, 2))


# ------------------------- pure-JAX reference (checks) ------------------------
def _ref_mha(q, k, v, wq, bq, wk, bk, wv, bv, wo, bo, nhead):
    B, L, E = q.shape
    dh = E // nhead
    Q = (q @ wq + bq).reshape(B, L, nhead, dh)
    K = (k @ wk + bk).reshape(B, L, nhead, dh)
    V = (v @ wv + bv).reshape(B, L, nhead, dh)
    s = jnp.einsum("bqhd,bkhd->bhqk", Q, K) / math.sqrt(dh)
    p = jax.nn.softmax(s, axis=-1)
    o = jnp.einsum("bhqk,bkhd->bqhd", p, V).reshape(B, L, E)
    return o @ wo + bo


def _ref_layer_norm(x, g, b, eps=1e-5):
    mean = jnp.mean(x, axis=-1, keepdims=True)
    var = jnp.mean((x - mean) ** 2, axis=-1, keepdims=True)
    return (x - mean) / jnp.sqrt(var + eps) * g + b


def ref_forward(q_lbe, k_lbe, v_lbe, params, *, nhead):
    q = jnp.transpose(q_lbe, (1, 0, 2))
    k = jnp.transpose(k_lbe, (1, 0, 2))
    v = jnp.transpose(v_lbe, (1, 0, 2))
    E = q.shape[-1]
    src = _ref_mha(q, k, v,
                   params["wq1"], params["bq1"], params["wk1"], params["bk1"],
                   params["wv1"], params["bv1"], params["wo1"], params["bo1"],
                   nhead)
    srcs1 = _ref_layer_norm(v + src, params["ln1_g"], params["ln1_b"])
    w, bb = params["win2"], params["bin2"]
    src2 = _ref_mha(srcs1, srcs1, srcs1,
                    w[:, 0:E], bb[:, 0:E],
                    w[:, E:2 * E], bb[:, E:2 * E],
                    w[:, 2 * E:3 * E], bb[:, 2 * E:3 * E],
                    params["wo2"], params["bo2"], nhead)
    out = _ref_layer_norm(srcs1 + src2, params["ln2_g"], params["ln2_b"])
    return jnp.transpose(out, (1, 0, 2))


# -------------------------------- parameters ----------------------------------
def init_params(key, d_model):
    ks = jax.random.split(key, 12)
    s = 0.1
    return {
        # MHA1 (in_proj split into q/k/v; stored as (E, E) right-multiply form)
        "wq1": s * jax.random.normal(ks[0], (d_model, d_model), jnp.float32),
        "wk1": s * jax.random.normal(ks[1], (d_model, d_model), jnp.float32),
        "wv1": s * jax.random.normal(ks[2], (d_model, d_model), jnp.float32),
        "bq1": s * jax.random.normal(ks[3], (1, d_model), jnp.float32),
        "bk1": s * jax.random.normal(ks[4], (1, d_model), jnp.float32),
        "bv1": s * jax.random.normal(ks[5], (1, d_model), jnp.float32),
        "wo1": s * jax.random.normal(ks[6], (d_model, d_model), jnp.float32),
        "bo1": s * jax.random.normal(ks[7], (1, d_model), jnp.float32),
        # MHA2 (self-attention; in_proj as one (E, 3E) right-multiply matrix)
        "win2": s * jax.random.normal(ks[8], (d_model, 3 * d_model), jnp.float32),
        "bin2": s * jax.random.normal(ks[9], (1, 3 * d_model), jnp.float32),
        "wo2": s * jax.random.normal(ks[10], (d_model, d_model), jnp.float32),
        "bo2": s * jax.random.normal(ks[11], (1, d_model), jnp.float32),
        # LayerNorms (default init: gamma=1, beta=0, eps=1e-5)
        "ln1_g": jnp.ones((1, d_model), jnp.float32),
        "ln1_b": jnp.zeros((1, d_model), jnp.float32),
        "ln2_g": jnp.ones((1, d_model), jnp.float32),
        "ln2_b": jnp.zeros((1, d_model), jnp.float32),
    }


# ----------------------------------- main --------------------------------------
if __name__ == "__main__":
    key = jax.random.PRNGKey(0)
    kq, kk, kv, kp = jax.random.split(key, 4)

    L, B, E, H = 8, 4, 32, 4            # seq=8, batch=4, d_model=32, nhead=4
    q = jax.random.normal(kq, (L, B, E), jnp.float32)
    k = jax.random.normal(kk, (L, B, E), jnp.float32)
    v = jax.random.normal(kv, (L, B, E), jnp.float32)
    params = init_params(kp, E)

    out = feature_fusion_forward(q, k, v, params, nhead=H)
    out = jax.block_until_ready(out)
    assert out.shape == (L, B, E)

    ref = ref_forward(q, k, v, params, nhead=H)
    err = float(jnp.max(jnp.abs(out - ref)))
    # Tolerance loosened vs the previous revision to cover the EUP approximate
    # reciprocal in the deferred softmax normalization.
    assert jnp.allclose(out, ref, atol=2e-3, rtol=2e-3), err

    print("KERNEL_OK")
</pallas_src>

<mosaic_0001>
module attributes {stable_mosaic.version = 11 : i64} {
  func.func @_feature_fusion_kernel(%arg0: i32, %arg1: memref<2x8x32xf32, #tpu.memory_space<vmem>>, %arg2: memref<2x8x32xf32, #tpu.memory_space<vmem>>, %arg3: memref<2x8x32xf32, #tpu.memory_space<vmem>>, %arg4: memref<8x32x32xf32, #tpu.memory_space<vmem>>, %arg5: memref<12x32xf32, #tpu.memory_space<vmem>>, %arg6: memref<2x8x32xf32, #tpu.memory_space<vmem>>) attributes {dimension_semantics = [#tpu.dimension_semantics<parallel>], iteration_bounds = array<i64: 2>, scalar_prefetch = 0 : i64, scratch_operands = 0 : i64, tpu.core_type = #tpu.core_type<tc>, window_params = [{transform_indices = @transform_0, window_bounds = array<i64: 2, 8, 32>}, {transform_indices = @transform_1, window_bounds = array<i64: 2, 8, 32>}, {transform_indices = @transform_2, window_bounds = array<i64: 2, 8, 32>}, {pipeline_mode = #tpu.pipeline_mode<synchronous>, transform_indices = @transform_3, window_bounds = array<i64: 8, 32, 32>}, {pipeline_mode = #tpu.pipeline_mode<synchronous>, transform_indices = @transform_4, window_bounds = array<i64: 12, 32>}, {transform_indices = @transform_5, window_bounds = array<i64: 2, 8, 32>}]} {
    %c0 = arith.constant 0 : index
    %c0_0 = arith.constant 0 : index
    %c0_1 = arith.constant 0 : index
    %0 = vector.load %arg1[%c0, %c0_0, %c0_1] : memref<2x8x32xf32, #tpu.memory_space<vmem>>, vector<2x8x32xf32>
    %1 = vector.shape_cast %0 : vector<2x8x32xf32> to vector<16x32xf32>
    %c0_2 = arith.constant 0 : index
    %c0_3 = arith.constant 0 : index
    %c0_4 = arith.constant 0 : index
    %2 = vector.load %arg2[%c0_2, %c0_3, %c0_4] : memref<2x8x32xf32, #tpu.memory_space<vmem>>, vector<2x8x32xf32>
    %3 = vector.shape_cast %2 : vector<2x8x32xf32> to vector<16x32xf32>
    %c0_5 = arith.constant 0 : index
    %c0_6 = arith.constant 0 : index
    %c0_7 = arith.constant 0 : index
    %4 = vector.load %arg3[%c0_5, %c0_6, %c0_7] : memref<2x8x32xf32, #tpu.memory_space<vmem>>, vector<2x8x32xf32>
    %5 = vector.shape_cast %4 : vector<2x8x32xf32> to vector<16x32xf32>
    %c0_8 = arith.constant 0 : index
    %c0_9 = arith.constant 0 : index
    %6 = vector.load %arg5[%c0_8, %c0_9] : memref<12x32xf32, #tpu.memory_space<vmem>>, vector<12x32xf32>
    %c0_10 = arith.constant 0 : index
    %c0_11 = arith.constant 0 : index
    %c0_12 = arith.constant 0 : index
    %7 = vector.load %arg4[%c0_10, %c0_11, %c0_12] : memref<8x32x32xf32, #tpu.memory_space<vmem>>, vector<1x32x32xf32>
    %8 = vector.shape_cast %7 : vector<1x32x32xf32> to vector<32x32xf32>
    %cst = arith.constant dense<0.000000e+00> : vector<16x32xf32>
    %9 = tpu.matmul %1, %8, %cst {dimension_numbers = #tpu.dot_dimension_numbers<[1], [0], [0], [1], [0, 0, 1, 1], [], []>} : vector<16x32xf32>, vector<32x32xf32>, vector<16x32xf32> -> vector<16x32xf32>
    %10 = vector.extract_strided_slice %6 {offsets = [0, 0], sizes = [1, 32], strides = [1, 1]} : vector<12x32xf32> to vector<1x32xf32>
    %11 = vector.broadcast %10 : vector<1x32xf32> to vector<16x32xf32>
    %12 = arith.addf %9, %11 : vector<16x32xf32>
    %c1 = arith.constant 1 : index
    %c0_13 = arith.constant 0 : index
    %c0_14 = arith.constant 0 : index
    %13 = vector.load %arg4[%c1, %c0_13, %c0_14] : memref<8x32x32xf32, #tpu.memory_space<vmem>>, vector<1x32x32xf32>
    %14 = vector.shape_cast %13 : vector<1x32x32xf32> to vector<32x32xf32>
    %cst_15 = arith.constant dense<0.000000e+00> : vector<16x32xf32>
    %15 = tpu.matmul %3, %14, %cst_15 {dimension_numbers = #tpu.dot_dimension_numbers<[1], [0], [0], [1], [0, 0, 1, 1], [], []>} : vector<16x32xf32>, vector<32x32xf32>, vector<16x32xf32> -> vector<16x32xf32>
    %16 = vector.extract_strided_slice %6 {offsets = [1, 0], sizes = [1, 32], strides = [1, 1]} : vector<12x32xf32> to vector<1x32xf32>
    %17 = vector.broadcast %16 : vector<1x32xf32> to vector<16x32xf32>
    %18 = arith.addf %15, %17 : vector<16x32xf32>
    %c2 = arith.constant 2 : index
    %c0_16 = arith.constant 0 : index
    %c0_17 = arith.constant 0 : index
    %19 = vector.load %arg4[%c2, %c0_16, %c0_17] : memref<8x32x32xf32, #tpu.memory_space<vmem>>, vector<1x32x32xf32>
    %20 = vector.shape_cast %19 : vector<1x32x32xf32> to vector<32x32xf32>
    %cst_18 = arith.constant dense<0.000000e+00> : vector<16x32xf32>
    %21 = tpu.matmul %5, %20, %cst_18 {dimension_numbers = #tpu.dot_dimension_numbers<[1], [0], [0], [1], [0, 0, 1, 1], [], []>} : vector<16x32xf32>, vector<32x32xf32>, vector<16x32xf32> -> vector<16x32xf32>
    %22 = vector.extract_strided_slice %6 {offsets = [2, 0], sizes = [1, 32], strides = [1, 1]} : vector<12x32xf32> to vector<1x32xf32>
    %23 = vector.broadcast %22 : vector<1x32xf32> to vector<16x32xf32>
    %24 = arith.addf %21, %23 : vector<16x32xf32>
    %c3 = arith.constant 3 : index
    %c0_19 = arith.constant 0 : index
    %c0_20 = arith.constant 0 : index
    %25 = vector.load %arg4[%c3, %c0_19, %c0_20] : memref<8x32x32xf32, #tpu.memory_space<vmem>>, vector<1x32x32xf32>
    %26 = vector.shape_cast %25 : vector<1x32x32xf32> to vector<32x32xf32>
    %27 = vector.extract_strided_slice %12 {offsets = [0, 0], sizes = [16, 8], strides = [1, 1]} : vector<16x32xf32> to vector<16x8xf32>
    %28 = vector.shape_cast %27 : vector<16x8xf32> to vector<2x8x8xf32>
    %29 = vector.extract_strided_slice %18 {offsets = [0, 0], sizes = [16, 8], strides = [1, 1]} : vector<16x32xf32> to vector<16x8xf32>
    %30 = vector.shape_cast %29 : vector<16x8xf32> to vector<2x8x8xf32>
    %31 = vector.extract_strided_slice %24 {offsets = [0, 0], sizes = [16, 8], strides = [1, 1]} : vector<16x32xf32> to vector<16x8xf32>
    %32 = vector.shape_cast %31 : vector<16x8xf32> to vector<2x8x8xf32>
    %cst_21 = arith.constant dense<0.000000e+00> : vector<2x8x8xf32>
    %33 = tpu.matmul %28, %30, %cst_21 {dimension_numbers = #tpu.dot_dimension_numbers<[2], [2], [1], [1], [0, 0, 0, 1, 1, 1], [0], [0]>} : vector<2x8x8xf32>, vector<2x8x8xf32>, vector<2x8x8xf32> -> vector<2x8x8xf32>
    %cst_22 = arith.constant dense<0xFF800000> : vector<2x8xf32>
    %34 = vector.multi_reduction <maximumf>, %33, %cst_22 [2] : vector<2x8x8xf32> to vector<2x8xf32>
    %35 = vector.shape_cast %34 : vector<2x8xf32> to vector<2x8x1xf32>
    %36 = vector.broadcast %35 : vector<2x8x1xf32> to vector<2x8x8xf32>
    %37 = arith.subf %33, %36 : vector<2x8x8xf32>
    %38 = math.exp %37 : vector<2x8x8xf32>
    %cst_23 = arith.constant dense<0.000000e+00> : vector<2x8xf32>
    %39 = vector.multi_reduction <add>, %38, %cst_23 [2] : vector<2x8x8xf32> to vector<2x8xf32>
    %40 = vector.shape_cast %39 : vector<2x8xf32> to vector<2x8x1xf32>
    %cst_24 = arith.constant dense<0.000000e+00> : vector<2x8x8xf32>
    %41 = tpu.matmul %38, %32, %cst_24 {dimension_numbers = #tpu.dot_dimension_numbers<[2], [1], [1], [2], [0, 0, 0, 1, 1, 2], [0], [0]>} : vector<2x8x8xf32>, vector<2x8x8xf32>, vector<2x8x8xf32> -> vector<2x8x8xf32>
    %42 = tpu.reciprocal %40 {approx = true} : vector<2x8x1xf32> -> vector<2x8x1xf32>
    %43 = vector.broadcast %42 : vector<2x8x1xf32> to vector<2x8x8xf32>
    %44 = arith.mulf %41, %43 : vector<2x8x8xf32>
    %45 = vector.shape_cast %44 : vector<2x8x8xf32> to vector<16x8xf32>
    %46 = vector.extract_strided_slice %26 {offsets = [0, 0], sizes = [8, 32], strides = [1, 1]} : vector<32x32xf32> to vector<8x32xf32>
    %cst_25 = arith.constant dense<0.000000e+00> : vector<16x32xf32>
    %47 = tpu.matmul %45, %46, %cst_25 {dimension_numbers = #tpu.dot_dimension_numbers<[1], [0], [0], [1], [0, 0, 1, 1], [], []>} : vector<16x8xf32>, vector<8x32xf32>, vector<16x32xf32> -> vector<16x32xf32>
    %48 = vector.extract_strided_slice %12 {offsets = [0, 8], sizes = [16, 8], strides = [1, 1]} : vector<16x32xf32> to vector<16x8xf32>
    %49 = vector.shape_cast %48 : vector<16x8xf32> to vector<2x8x8xf32>
    %50 = vector.extract_strided_slice %18 {offsets = [0, 8], sizes = [16, 8], strides = [1, 1]} : vector<16x32xf32> to vector<16x8xf32>
    %51 = vector.shape_cast %50 : vector<16x8xf32> to vector<2x8x8xf32>
    %52 = vector.extract_strided_slice %24 {offsets = [0, 8], sizes = [16, 8], strides = [1, 1]} : vector<16x32xf32> to vector<16x8xf32>
    %53 = vector.shape_cast %52 : vector<16x8xf32> to vector<2x8x8xf32>
    %cst_26 = arith.constant dense<0.000000e+00> : vector<2x8x8xf32>
    %54 = tpu.matmul %49, %51, %cst_26 {dimension_numbers = #tpu.dot_dimension_numbers<[2], [2], [1], [1], [0, 0, 0, 1, 1, 1], [0], [0]>} : vector<2x8x8xf32>, vector<2x8x8xf32>, vector<2x8x8xf32> -> vector<2x8x8xf32>
    %cst_27 = arith.constant dense<0xFF800000> : vector<2x8xf32>
    %55 = vector.multi_reduction <maximumf>, %54, %cst_27 [2] : vector<2x8x8xf32> to vector<2x8xf32>
    %56 = vector.shape_cast %55 : vector<2x8xf32> to vector<2x8x1xf32>
    %57 = vector.broadcast %56 : vector<2x8x1xf32> to vector<2x8x8xf32>
    %58 = arith.subf %54, %57 : vector<2x8x8xf32>
    %59 = math.exp %58 : vector<2x8x8xf32>
    %cst_28 = arith.constant dense<0.000000e+00> : vector<2x8xf32>
    %60 = vector.multi_reduction <add>, %59, %cst_28 [2] : vector<2x8x8xf32> to vector<2x8xf32>
    %61 = vector.shape_cast %60 : vector<2x8xf32> to vector<2x8x1xf32>
    %cst_29 = arith.constant dense<0.000000e+00> : vector<2x8x8xf32>
    %62 = tpu.matmul %59, %53, %cst_29 {dimension_numbers = #tpu.dot_dimension_numbers<[2], [1], [1], [2], [0, 0, 0, 1, 1, 2], [0], [0]>} : vector<2x8x8xf32>, vector<2x8x8xf32>, vector<2x8x8xf32> -> vector<2x8x8xf32>
    %63 = tpu.reciprocal %61 {approx = true} : vector<2x8x1xf32> -> vector<2x8x1xf32>
    %64 = vector.broadcast %63 : vector<2x8x1xf32> to vector<2x8x8xf32>
    %65 = arith.mulf %62, %64 : vector<2x8x8xf32>
    %66 = vector.shape_cast %65 : vector<2x8x8xf32> to vector<16x8xf32>
    %67 = vector.extract_strided_slice %26 {offsets = [8, 0], sizes = [8, 32], strides = [1, 1]} : vector<32x32xf32> to vector<8x32xf32>
    %cst_30 = arith.constant dense<0.000000e+00> : vector<16x32xf32>
    %68 = tpu.matmul %66, %67, %cst_30 {dimension_numbers = #tpu.dot_dimension_numbers<[1], [0], [0], [1], [0, 0, 1, 1], [], []>} : vector<16x8xf32>, vector<8x32xf32>, vector<16x32xf32> -> vector<16x32xf32>
    %69 = arith.addf %47, %68 : vector<16x32xf32>
    %70 = vector.extract_strided_slice %12 {offsets = [0, 16], sizes = [16, 8], strides = [1, 1]} : vector<16x32xf32> to vector<16x8xf32>
    %71 = vector.shape_cast %70 : vector<16x8xf32> to vector<2x8x8xf32>
    %72 = vector.extract_strided_slice %18 {offsets = [0, 16], sizes = [16, 8], strides = [1, 1]} : vector<16x32xf32> to vector<16x8xf32>
    %73 = vector.shape_cast %72 : vector<16x8xf32> to vector<2x8x8xf32>
    %74 = vector.extract_strided_slice %24 {offsets = [0, 16], sizes = [16, 8], strides = [1, 1]} : vector<16x32xf32> to vector<16x8xf32>
    %75 = vector.shape_cast %74 : vector<16x8xf32> to vector<2x8x8xf32>
    %cst_31 = arith.constant dense<0.000000e+00> : vector<2x8x8xf32>
    %76 = tpu.matmul %71, %73, %cst_31 {dimension_numbers = #tpu.dot_dimension_numbers<[2], [2], [1], [1], [0, 0, 0, 1, 1, 1], [0], [0]>} : vector<2x8x8xf32>, vector<2x8x8xf32>, vector<2x8x8xf32> -> vector<2x8x8xf32>
    %cst_32 = arith.constant dense<0xFF800000> : vector<2x8xf32>
    %77 = vector.multi_reduction <maximumf>, %76, %cst_32 [2] : vector<2x8x8xf32> to vector<2x8xf32>
    %78 = vector.shape_cast %77 : vector<2x8xf32> to vector<2x8x1xf32>
    %79 = vector.broadcast %78 : vector<2x8x1xf32> to vector<2x8x8xf32>
    %80 = arith.subf %76, %79 : vector<2x8x8xf32>
    %81 = math.exp %80 : vector<2x8x8xf32>
    %cst_33 = arith.constant dense<0.000000e+00> : vector<2x8xf32>
    %82 = vector.multi_reduction <add>, %81, %cst_33 [2] : vector<2x8x8xf32> to vector<2x8xf32>
    %83 = vector.shape_cast %82 : vector<2x8xf32> to vector<2x8x1xf32>
    %cst_34 = arith.constant dense<0.000000e+00> : vector<2x8x8xf32>
    %84 = tpu.matmul %81, %75, %cst_34 {dimension_numbers = #tpu.dot_dimension_numbers<[2], [1], [1], [2], [0, 0, 0, 1, 1, 2], [0], [0]>} : vector<2x8x8xf32>, vector<2x8x8xf32>, vector<2x8x8xf32> -> vector<2x8x8xf32>
    %85 = tpu.reciprocal %83 {approx = true} : vector<2x8x1xf32> -> vector<2x8x1xf32>
    %86 = vector.broadcast %85 : vector<2x8x1xf32> to vector<2x8x8xf32>
    %87 = arith.mulf %84, %86 : vector<2x8x8xf32>
    %88 = vector.shape_cast %87 : vector<2x8x8xf32> to vector<16x8xf32>
    %89 = vector.extract_strided_slice %26 {offsets = [16, 0], sizes = [8, 32], strides = [1, 1]} : vector<32x32xf32> to vector<8x32xf32>
    %cst_35 = arith.constant dense<0.000000e+00> : vector<16x32xf32>
    %90 = tpu.matmul %88, %89, %cst_35 {dimension_numbers = #tpu.dot_dimension_numbers<[1], [0], [0], [1], [0, 0, 1, 1], [], []>} : vector<16x8xf32>, vector<8x32xf32>, vector<16x32xf32> -> vector<16x32xf32>
    %91 = arith.addf %69, %90 : vector<16x32xf32>
    %92 = vector.extract_strided_slice %12 {offsets = [0, 24], sizes = [16, 8], strides = [1, 1]} : vector<16x32xf32> to vector<16x8xf32>
    %93 = vector.shape_cast %92 : vector<16x8xf32> to vector<2x8x8xf32>
    %94 = vector.extract_strided_slice %18 {offsets = [0, 24], sizes = [16, 8], strides = [1, 1]} : vector<16x32xf32> to vector<16x8xf32>
    %95 = vector.shape_cast %94 : vector<16x8xf32> to vector<2x8x8xf32>
    %96 = vector.extract_strided_slice %24 {offsets = [0, 24], sizes = [16, 8], strides = [1, 1]} : vector<16x32xf32> to vector<16x8xf32>
    %97 = vector.shape_cast %96 : vector<16x8xf32> to vector<2x8x8xf32>
    %cst_36 = arith.constant dense<0.000000e+00> : vector<2x8x8xf32>
    %98 = tpu.matmul %93, %95, %cst_36 {dimension_numbers = #tpu.dot_dimension_numbers<[2], [2], [1], [1], [0, 0, 0, 1, 1, 1], [0], [0]>} : vector<2x8x8xf32>, vector<2x8x8xf32>, vector<2x8x8xf32> -> vector<2x8x8xf32>
    %cst_37 = arith.constant dense<0xFF800000> : vector<2x8xf32>
    %99 = vector.multi_reduction <maximumf>, %98, %cst_37 [2] : vector<2x8x8xf32> to vector<2x8xf32>
    %100 = vector.shape_cast %99 : vector<2x8xf32> to vector<2x8x1xf32>
    %101 = vector.broadcast %100 : vector<2x8x1xf32> to vector<2x8x8xf32>
    %102 = arith.subf %98, %101 : vector<2x8x8xf32>
    %103 = math.exp %102 : vector<2x8x8xf32>
    %cst_38 = arith.constant dense<0.000000e+00> : vector<2x8xf32>
    %104 = vector.multi_reduction <add>, %103, %cst_38 [2] : vector<2x8x8xf32> to vector<2x8xf32>
    %105 = vector.shape_cast %104 : vector<2x8xf32> to vector<2x8x1xf32>
    %cst_39 = arith.constant dense<0.000000e+00> : vector<2x8x8xf32>
    %106 = tpu.matmul %103, %97, %cst_39 {dimension_numbers = #tpu.dot_dimension_numbers<[2], [1], [1], [2], [0, 0, 0, 1, 1, 2], [0], [0]>} : vector<2x8x8xf32>, vector<2x8x8xf32>, vector<2x8x8xf32> -> vector<2x8x8xf32>
    %107 = tpu.reciprocal %105 {approx = true} : vector<2x8x1xf32> -> vector<2x8x1xf32>
    %108 = vector.broadcast %107 : vector<2x8x1xf32> to vector<2x8x8xf32>
    %109 = arith.mulf %106, %108 : vector<2x8x8xf32>
    %110 = vector.shape_cast %109 : vector<2x8x8xf32> to vector<16x8xf32>
    %111 = vector.extract_strided_slice %26 {offsets = [24, 0], sizes = [8, 32], strides = [1, 1]} : vector<32x32xf32> to vector<8x32xf32>
    %cst_40 = arith.constant dense<0.000000e+00> : vector<16x32xf32>
    %112 = tpu.matmul %110, %111, %cst_40 {dimension_numbers = #tpu.dot_dimension_numbers<[1], [0], [0], [1], [0, 0, 1, 1], [], []>} : vector<16x8xf32>, vector<8x32xf32>, vector<16x32xf32> -> vector<16x32xf32>
    %113 = arith.addf %91, %112 : vector<16x32xf32>
    %114 = vector.extract_strided_slice %6 {offsets = [3, 0], sizes = [1, 32], strides = [1, 1]} : vector<12x32xf32> to vector<1x32xf32>
    %115 = vector.broadcast %114 : vector<1x32xf32> to vector<16x32xf32>
    %116 = arith.addf %113, %115 : vector<16x32xf32>
    %117 = arith.addf %5, %116 : vector<16x32xf32>
    %118 = vector.extract_strided_slice %6 {offsets = [4, 0], sizes = [1, 32], strides = [1, 1]} : vector<12x32xf32> to vector<1x32xf32>
    %119 = vector.extract_strided_slice %6 {offsets = [5, 0], sizes = [1, 32], strides = [1, 1]} : vector<12x32xf32> to vector<1x32xf32>
    %cst_41 = arith.constant dense<0.000000e+00> : vector<16xf32>
    %120 = vector.multi_reduction <add>, %117, %cst_41 [1] : vector<16x32xf32> to vector<16xf32>
    %121 = vector.shape_cast %120 : vector<16xf32> to vector<16x1xf32>
    %cst_42 = arith.constant 3.200000e+01 : f32
    %122 = vector.broadcast %cst_42 : f32 to vector<16x1xf32>
    %123 = arith.divf %121, %122 : vector<16x1xf32>
    %124 = vector.broadcast %123 : vector<16x1xf32> to vector<16x32xf32>
    %125 = arith.subf %117, %124 : vector<16x32xf32>
    %126 = arith.mulf %125, %125 : vector<16x32xf32>
    %cst_43 = arith.constant dense<0.000000e+00> : vector<16xf32>
    %127 = vector.multi_reduction <add>, %126, %cst_43 [1] : vector<16x32xf32> to vector<16xf32>
    %128 = vector.shape_cast %127 : vector<16xf32> to vector<16x1xf32>
    %cst_44 = arith.constant 3.200000e+01 : f32
    %129 = vector.broadcast %cst_44 : f32 to vector<16x1xf32>
    %130 = arith.divf %128, %129 : vector<16x1xf32>
    %cst_45 = arith.constant 9.99999974E-6 : f32
    %131 = vector.broadcast %cst_45 : f32 to vector<16x1xf32>
    %132 = arith.addf %130, %131 : vector<16x1xf32>
    %133 = math.rsqrt %132 : vector<16x1xf32>
    %134 = vector.broadcast %133 : vector<16x1xf32> to vector<16x32xf32>
    %135 = arith.mulf %125, %134 : vector<16x32xf32>
    %136 = vector.broadcast %118 : vector<1x32xf32> to vector<16x32xf32>
    %137 = arith.mulf %135, %136 : vector<16x32xf32>
    %138 = vector.broadcast %119 : vector<1x32xf32> to vector<16x32xf32>
    %139 = arith.addf %137, %138 : vector<16x32xf32>
    %c4 = arith.constant 4 : index
    %c0_46 = arith.constant 0 : index
    %c0_47 = arith.constant 0 : index
    %140 = vector.load %arg4[%c4, %c0_46, %c0_47] : memref<8x32x32xf32, #tpu.memory_space<vmem>>, vector<1x32x32xf32>
    %141 = vector.shape_cast %140 : vector<1x32x32xf32> to vector<32x32xf32>
    %cst_48 = arith.constant dense<0.000000e+00> : vector<16x32xf32>
    %142 = tpu.matmul %139, %141, %cst_48 {dimension_numbers = #tpu.dot_dimension_numbers<[1], [0], [0], [1], [0, 0, 1, 1], [], []>} : vector<16x32xf32>, vector<32x32xf32>, vector<16x32xf32> -> vector<16x32xf32>
    %143 = vector.extract_strided_slice %6 {offsets = [6, 0], sizes = [1, 32], strides = [1, 1]} : vector<12x32xf32> to vector<1x32xf32>
    %144 = vector.broadcast %143 : vector<1x32xf32> to vector<16x32xf32>
    %145 = arith.addf %142, %144 : vector<16x32xf32>
    %c5 = arith.constant 5 : index
    %c0_49 = arith.constant 0 : index
    %c0_50 = arith.constant 0 : index
    %146 = vector.load %arg4[%c5, %c0_49, %c0_50] : memref<8x32x32xf32, #tpu.memory_space<vmem>>, vector<1x32x32xf32>
    %147 = vector.shape_cast %146 : vector<1x32x32xf32> to vector<32x32xf32>
    %cst_51 = arith.constant dense<0.000000e+00> : vector<16x32xf32>
    %148 = tpu.matmul %139, %147, %cst_51 {dimension_numbers = #tpu.dot_dimension_numbers<[1], [0], [0], [1], [0, 0, 1, 1], [], []>} : vector<16x32xf32>, vector<32x32xf32>, vector<16x32xf32> -> vector<16x32xf32>
    %149 = vector.extract_strided_slice %6 {offsets = [7, 0], sizes = [1, 32], strides = [1, 1]} : vector<12x32xf32> to vector<1x32xf32>
    %150 = vector.broadcast %149 : vector<1x32xf32> to vector<16x32xf32>
    %151 = arith.addf %148, %150 : vector<16x32xf32>
    %c6 = arith.constant 6 : index
    %c0_52 = arith.constant 0 : index
    %c0_53 = arith.constant 0 : index
    %152 = vector.load %arg4[%c6, %c0_52, %c0_53] : memref<8x32x32xf32, #tpu.memory_space<vmem>>, vector<1x32x32xf32>
    %153 = vector.shape_cast %152 : vector<1x32x32xf32> to vector<32x32xf32>
    %cst_54 = arith.constant dense<0.000000e+00> : vector<16x32xf32>
    %154 = tpu.matmul %139, %153, %cst_54 {dimension_numbers = #tpu.dot_dimension_numbers<[1], [0], [0], [1], [0, 0, 1, 1], [], []>} : vector<16x32xf32>, vector<32x32xf32>, vector<16x32xf32> -> vector<16x32xf32>
    %155 = vector.extract_strided_slice %6 {offsets = [8, 0], sizes = [1, 32], strides = [1, 1]} : vector<12x32xf32> to vector<1x32xf32>
    %156 = vector.broadcast %155 : vector<1x32xf32> to vector<16x32xf32>
    %157 = arith.addf %154, %156 : vector<16x32xf32>
    %c7 = arith.constant 7 : index
    %c0_55 = arith.constant 0 : index
    %c0_56 = arith.constant 0 : index
    %158 = vector.load %arg4[%c7, %c0_55, %c0_56] : memref<8x32x32xf32, #tpu.memory_space<vmem>>, vector<1x32x32xf32>
    %159 = vector.shape_cast %158 : vector<1x32x32xf32> to vector<32x32xf32>
    %160 = vector.extract_strided_slice %145 {offsets = [0, 0], sizes = [16, 8], strides = [1, 1]} : vector<16x32xf32> to vector<16x8xf32>
    %161 = vector.shape_cast %160 : vector<16x8xf32> to vector<2x8x8xf32>
    %162 = vector.extract_strided_slice %151 {offsets = [0, 0], sizes = [16, 8], strides = [1, 1]} : vector<16x32xf32> to vector<16x8xf32>
    %163 = vector.shape_cast %162 : vector<16x8xf32> to vector<2x8x8xf32>
    %164 = vector.extract_strided_slice %157 {offsets = [0, 0], sizes = [16, 8], strides = [1, 1]} : vector<16x32xf32> to vector<16x8xf32>
    %165 = vector.shape_cast %164 : vector<16x8xf32> to vector<2x8x8xf32>
    %cst_57 = arith.constant dense<0.000000e+00> : vector<2x8x8xf32>
    %166 = tpu.matmul %161, %163, %cst_57 {dimension_numbers = #tpu.dot_dimension_numbers<[2], [2], [1], [1], [0, 0, 0, 1, 1, 1], [0], [0]>} : vector<2x8x8xf32>, vector<2x8x8xf32>, vector<2x8x8xf32> -> vector<2x8x8xf32>
    %cst_58 = arith.constant dense<0xFF800000> : vector<2x8xf32>
    %167 = vector.multi_reduction <maximumf>, %166, %cst_58 [2] : vector<2x8x8xf32> to vector<2x8xf32>
    %168 = vector.shape_cast %167 : vector<2x8xf32> to vector<2x8x1xf32>
    %169 = vector.broadcast %168 : vector<2x8x1xf32> to vector<2x8x8xf32>
    %170 = arith.subf %166, %169 : vector<2x8x8xf32>
    %171 = math.exp %170 : vector<2x8x8xf32>
    %cst_59 = arith.constant dense<0.000000e+00> : vector<2x8xf32>
    %172 = vector.multi_reduction <add>, %171, %cst_59 [2] : vector<2x8x8xf32> to vector<2x8xf32>
    %173 = vector.shape_cast %172 : vector<2x8xf32> to vector<2x8x1xf32>
    %cst_60 = arith.constant dense<0.000000e+00> : vector<2x8x8xf32>
    %174 = tpu.matmul %171, %165, %cst_60 {dimension_numbers = #tpu.dot_dimension_numbers<[2], [1], [1], [2], [0, 0, 0, 1, 1, 2], [0], [0]>} : vector<2x8x8xf32>, vector<2x8x8xf32>, vector<2x8x8xf32> -> vector<2x8x8xf32>
    %175 = tpu.reciprocal %173 {approx = true} : vector<2x8x1xf32> -> vector<2x8x1xf32>
    %176 = vector.broadcast %175 : vector<2x8x1xf32> to vector<2x8x8xf32>
    %177 = arith.mulf %174, %176 : vector<2x8x8xf32>
    %178 = vector.shape_cast %177 : vector<2x8x8xf32> to vector<16x8xf32>
    %179 = vector.extract_strided_slice %159 {offsets = [0, 0], sizes = [8, 32], strides = [1, 1]} : vector<32x32xf32> to vector<8x32xf32>
    %cst_61 = arith.constant dense<0.000000e+00> : vector<16x32xf32>
    %180 = tpu.matmul %178, %179, %cst_61 {dimension_numbers = #tpu.dot_dimension_numbers<[1], [0], [0], [1], [0, 0, 1, 1], [], []>} : vector<16x8xf32>, vector<8x32xf32>, vector<16x32xf32> -> vector<16x32xf32>
    %181 = vector.extract_strided_slice %145 {offsets = [0, 8], sizes = [16, 8], strides = [1, 1]} : vector<16x32xf32> to vector<16x8xf32>
    %182 = vector.shape_cast %181 : vector<16x8xf32> to vector<2x8x8xf32>
    %183 = vector.extract_strided_slice %151 {offsets = [0, 8], sizes = [16, 8], strides = [1, 1]} : vector<16x32xf32> to vector<16x8xf32>
    %184 = vector.shape_cast %183 : vector<16x8xf32> to vector<2x8x8xf32>
    %185 = vector.extract_strided_slice %157 {offsets = [0, 8], sizes = [16, 8], strides = [1, 1]} : vector<16x32xf32> to vector<16x8xf32>
    %186 = vector.shape_cast %185 : vector<16x8xf32> to vector<2x8x8xf32>
    %cst_62 = arith.constant dense<0.000000e+00> : vector<2x8x8xf32>
    %187 = tpu.matmul %182, %184, %cst_62 {dimension_numbers = #tpu.dot_dimension_numbers<[2], [2], [1], [1], [0, 0, 0, 1, 1, 1], [0], [0]>} : vector<2x8x8xf32>, vector<2x8x8xf32>, vector<2x8x8xf32> -> vector<2x8x8xf32>
    %cst_63 = arith.constant dense<0xFF800000> : vector<2x8xf32>
    %188 = vector.multi_reduction <maximumf>, %187, %cst_63 [2] : vector<2x8x8xf32> to vector<2x8xf32>
    %189 = vector.shape_cast %188 : vector<2x8xf32> to vector<2x8x1xf32>
    %190 = vector.broadcast %189 : vector<2x8x1xf32> to vector<2x8x8xf32>
    %191 = arith.subf %187, %190 : vector<2x8x8xf32>
    %192 = math.exp %191 : vector<2x8x8xf32>
    %cst_64 = arith.constant dense<0.000000e+00> : vector<2x8xf32>
    %193 = vector.multi_reduction <add>, %192, %cst_64 [2] : vector<2x8x8xf32> to vector<2x8xf32>
    %194 = vector.shape_cast %193 : vector<2x8xf32> to vector<2x8x1xf32>
    %cst_65 = arith.constant dense<0.000000e+00> : vector<2x8x8xf32>
    %195 = tpu.matmul %192, %186, %cst_65 {dimension_numbers = #tpu.dot_dimension_numbers<[2], [1], [1], [2], [0, 0, 0, 1, 1, 2], [0], [0]>} : vector<2x8x8xf32>, vector<2x8x8xf32>, vector<2x8x8xf32> -> vector<2x8x8xf32>
    %196 = tpu.reciprocal %194 {approx = true} : vector<2x8x1xf32> -> vector<2x8x1xf32>
    %197 = vector.broadcast %196 : vector<2x8x1xf32> to vector<2x8x8xf32>
    %198 = arith.mulf %195, %197 : vector<2x8x8xf32>
    %199 = vector.shape_cast %198 : vector<2x8x8xf32> to vector<16x8xf32>
    %200 = vector.extract_strided_slice %159 {offsets = [8, 0], sizes = [8, 32], strides = [1, 1]} : vector<32x32xf32> to vector<8x32xf32>
    %cst_66 = arith.constant dense<0.000000e+00> : vector<16x32xf32>
    %201 = tpu.matmul %199, %200, %cst_66 {dimension_numbers = #tpu.dot_dimension_numbers<[1], [0], [0], [1], [0, 0, 1, 1], [], []>} : vector<16x8xf32>, vector<8x32xf32>, vector<16x32xf32> -> vector<16x32xf32>
    %202 = arith.addf %180, %201 : vector<16x32xf32>
    %203 = vector.extract_strided_slice %145 {offsets = [0, 16], sizes = [16, 8], strides = [1, 1]} : vector<16x32xf32> to vector<16x8xf32>
    %204 = vector.shape_cast %203 : vector<16x8xf32> to vector<2x8x8xf32>
    %205 = vector.extract_strided_slice %151 {offsets = [0, 16], sizes = [16, 8], strides = [1, 1]} : vector<16x32xf32> to vector<16x8xf32>
    %206 = vector.shape_cast %205 : vector<16x8xf32> to vector<2x8x8xf32>
    %207 = vector.extract_strided_slice %157 {offsets = [0, 16], sizes = [16, 8], strides = [1, 1]} : vector<16x32xf32> to vector<16x8xf32>
    %208 = vector.shape_cast %207 : vector<16x8xf32> to vector<2x8x8xf32>
    %cst_67 = arith.constant dense<0.000000e+00> : vector<2x8x8xf32>
    %209 = tpu.matmul %204, %206, %cst_67 {dimension_numbers = #tpu.dot_dimension_numbers<[2], [2], [1], [1], [0, 0, 0, 1, 1, 1], [0], [0]>} : vector<2x8x8xf32>, vector<2x8x8xf32>, vector<2x8x8xf32> -> vector<2x8x8xf32>
    %cst_68 = arith.constant dense<0xFF800000> : vector<2x8xf32>
    %210 = vector.multi_reduction <maximumf>, %209, %cst_68 [2] : vector<2x8x8xf32> to vector<2x8xf32>
    %211 = vector.shape_cast %210 : vector<2x8xf32> to vector<2x8x1xf32>
    %212 = vector.broadcast %211 : vector<2x8x1xf32> to vector<2x8x8xf32>
    %213 = arith.subf %209, %212 : vector<2x8x8xf32>
    %214 = math.exp %213 : vector<2x8x8xf32>
    %cst_69 = arith.constant dense<0.000000e+00> : vector<2x8xf32>
    %215 = vector.multi_reduction <add>, %214, %cst_69 [2] : vector<2x8x8xf32> to vector<2x8xf32>
    %216 = vector.shape_cast %215 : vector<2x8xf32> to vector<2x8x1xf32>
    %cst_70 = arith.constant dense<0.000000e+00> : vector<2x8x8xf32>
    %217 = tpu.matmul %214, %208, %cst_70 {dimension_numbers = #tpu.dot_dimension_numbers<[2], [1], [1], [2], [0, 0, 0, 1, 1, 2], [0], [0]>} : vector<2x8x8xf32>, vector<2x8x8xf32>, vector<2x8x8xf32> -> vector<2x8x8xf32>
    %218 = tpu.reciprocal %216 {approx = true} : vector<2x8x1xf32> -> vector<2x8x1xf32>
    %219 = vector.broadcast %218 : vector<2x8x1xf32> to vector<2x8x8xf32>
    %220 = arith.mulf %217, %219 : vector<2x8x8xf32>
    %221 = vector.shape_cast %220 : vector<2x8x8xf32> to vector<16x8xf32>
    %222 = vector.extract_strided_slice %159 {offsets = [16, 0], sizes = [8, 32], strides = [1, 1]} : vector<32x32xf32> to vector<8x32xf32>
    %cst_71 = arith.constant dense<0.000000e+00> : vector<16x32xf32>
    %223 = tpu.matmul %221, %222, %cst_71 {dimension_numbers = #tpu.dot_dimension_numbers<[1], [0], [0], [1], [0, 0, 1, 1], [], []>} : vector<16x8xf32>, vector<8x32xf32>, vector<16x32xf32> -> vector<16x32xf32>
    %224 = arith.addf %202, %223 : vector<16x32xf32>
    %225 = vector.extract_strided_slice %145 {offsets = [0, 24], sizes = [16, 8], strides = [1, 1]} : vector<16x32xf32> to vector<16x8xf32>
    %226 = vector.shape_cast %225 : vector<16x8xf32> to vector<2x8x8xf32>
    %227 = vector.extract_strided_slice %151 {offsets = [0, 24], sizes = [16, 8], strides = [1, 1]} : vector<16x32xf32> to vector<16x8xf32>
    %228 = vector.shape_cast %227 : vector<16x8xf32> to vector<2x8x8xf32>
    %229 = vector.extract_strided_slice %157 {offsets = [0, 24], sizes = [16, 8], strides = [1, 1]} : vector<16x32xf32> to vector<16x8xf32>
    %230 = vector.shape_cast %229 : vector<16x8xf32> to vector<2x8x8xf32>
    %cst_72 = arith.constant dense<0.000000e+00> : vector<2x8x8xf32>
    %231 = tpu.matmul %226, %228, %cst_72 {dimension_numbers = #tpu.dot_dimension_numbers<[2], [2], [1], [1], [0, 0, 0, 1, 1, 1], [0], [0]>} : vector<2x8x8xf32>, vector<2x8x8xf32>, vector<2x8x8xf32> -> vector<2x8x8xf32>
    %cst_73 = arith.constant dense<0xFF800000> : vector<2x8xf32>
    %232 = vector.multi_reduction <maximumf>, %231, %cst_73 [2] : vector<2x8x8xf32> to vector<2x8xf32>
    %233 = vector.shape_cast %232 : vector<2x8xf32> to vector<2x8x1xf32>
    %234 = vector.broadcast %233 : vector<2x8x1xf32> to vector<2x8x8xf32>
    %235 = arith.subf %231, %234 : vector<2x8x8xf32>
    %236 = math.exp %235 : vector<2x8x8xf32>
    %cst_74 = arith.constant dense<0.000000e+00> : vector<2x8xf32>
    %237 = vector.multi_reduction <add>, %236, %cst_74 [2] : vector<2x8x8xf32> to vector<2x8xf32>
    %238 = vector.shape_cast %237 : vector<2x8xf32> to vector<2x8x1xf32>
    %cst_75 = arith.constant dense<0.000000e+00> : vector<2x8x8xf32>
    %239 = tpu.matmul %236, %230, %cst_75 {dimension_numbers = #tpu.dot_dimension_numbers<[2], [1], [1], [2], [0, 0, 0, 1, 1, 2], [0], [0]>} : vector<2x8x8xf32>, vector<2x8x8xf32>, vector<2x8x8xf32> -> vector<2x8x8xf32>
    %240 = tpu.reciprocal %238 {approx = true} : vector<2x8x1xf32> -> vector<2x8x1xf32>
    %241 = vector.broadcast %240 : vector<2x8x1xf32> to vector<2x8x8xf32>
    %242 = arith.mulf %239, %241 : vector<2x8x8xf32>
    %243 = vector.shape_cast %242 : vector<2x8x8xf32> to vector<16x8xf32>
    %244 = vector.extract_strided_slice %159 {offsets = [24, 0], sizes = [8, 32], strides = [1, 1]} : vector<32x32xf32> to vector<8x32xf32>
    %cst_76 = arith.constant dense<0.000000e+00> : vector<16x32xf32>
    %245 = tpu.matmul %243, %244, %cst_76 {dimension_numbers = #tpu.dot_dimension_numbers<[1], [0], [0], [1], [0, 0, 1, 1], [], []>} : vector<16x8xf32>, vector<8x32xf32>, vector<16x32xf32> -> vector<16x32xf32>
    %246 = arith.addf %224, %245 : vector<16x32xf32>
    %247 = vector.extract_strided_slice %6 {offsets = [9, 0], sizes = [1, 32], strides = [1, 1]} : vector<12x32xf32> to vector<1x32xf32>
    %248 = vector.broadcast %247 : vector<1x32xf32> to vector<16x32xf32>
    %249 = arith.addf %246, %248 : vector<16x32xf32>
    %250 = arith.addf %139, %249 : vector<16x32xf32>
    %251 = vector.extract_strided_slice %6 {offsets = [10, 0], sizes = [1, 32], strides = [1, 1]} : vector<12x32xf32> to vector<1x32xf32>
    %252 = vector.extract_strided_slice %6 {offsets = [11, 0], sizes = [1, 32], strides = [1, 1]} : vector<12x32xf32> to vector<1x32xf32>
    %cst_77 = arith.constant dense<0.000000e+00> : vector<16xf32>
    %253 = vector.multi_reduction <add>, %250, %cst_77 [1] : vector<16x32xf32> to vector<16xf32>
    %254 = vector.shape_cast %253 : vector<16xf32> to vector<16x1xf32>
    %cst_78 = arith.constant 3.200000e+01 : f32
    %255 = vector.broadcast %cst_78 : f32 to vector<16x1xf32>
    %256 = arith.divf %254, %255 : vector<16x1xf32>
    %257 = vector.broadcast %256 : vector<16x1xf32> to vector<16x32xf32>
    %258 = arith.subf %250, %257 : vector<16x32xf32>
    %259 = arith.mulf %258, %258 : vector<16x32xf32>
    %cst_79 = arith.constant dense<0.000000e+00> : vector<16xf32>
    %260 = vector.multi_reduction <add>, %259, %cst_79 [1] : vector<16x32xf32> to vector<16xf32>
    %261 = vector.shape_cast %260 : vector<16xf32> to vector<16x1xf32>
    %cst_80 = arith.constant 3.200000e+01 : f32
    %262 = vector.broadcast %cst_80 : f32 to vector<16x1xf32>
    %263 = arith.divf %261, %262 : vector<16x1xf32>
    %cst_81 = arith.constant 9.99999974E-6 : f32
    %264 = vector.broadcast %cst_81 : f32 to vector<16x1xf32>
    %265 = arith.addf %263, %264 : vector<16x1xf32>
    %266 = math.rsqrt %265 : vector<16x1xf32>
    %267 = vector.broadcast %266 : vector<16x1xf32> to vector<16x32xf32>
    %268 = arith.mulf %258, %267 : vector<16x32xf32>
    %269 = vector.broadcast %251 : vector<1x32xf32> to vector<16x32xf32>
    %270 = arith.mulf %268, %269 : vector<16x32xf32>
    %271 = vector.broadcast %252 : vector<1x32xf32> to vector<16x32xf32>
    %272 = arith.addf %270, %271 : vector<16x32xf32>
    %273 = vector.shape_cast %272 : vector<16x32xf32> to vector<2x8x32xf32>
    %c0_82 = arith.constant 0 : index
    %c0_83 = arith.constant 0 : index
    %c0_84 = arith.constant 0 : index
    %274 = vector.load %arg6[%c0_82, %c0_83, %c0_84] : memref<2x8x32xf32, #tpu.memory_space<vmem>>, vector<2x8x32xf32>
    tpu.vector_store %arg6[%c0_82, %c0_83, %c0_84], %273 {strides = array<i32>} : memref<2x8x32xf32, #tpu.memory_space<vmem>>, vector<2x8x32xf32>,
    return
  }
  func.func @transform_0(%arg0: i32) -> (i32, i32, i32) {
    %c0_i32 = arith.constant 0 : i32
    %c0_i32_0 = arith.constant 0 : i32
    %c0_i32_1 = arith.constant 0 : i32
    return %arg0, %c0_i32, %c0_i32_0 : i32, i32, i32
  }
  func.func @transform_1(%arg0: i32) -> (i32, i32, i32) {
    %c0_i32 = arith.constant 0 : i32
    %c0_i32_0 = arith.constant 0 : i32
    %c0_i32_1 = arith.constant 0 : i32
    return %arg0, %c0_i32, %c0_i32_0 : i32, i32, i32
  }
  func.func @transform_2(%arg0: i32) -> (i32, i32, i32) {
    %c0_i32 = arith.constant 0 : i32
    %c0_i32_0 = arith.constant 0 : i32
    %c0_i32_1 = arith.constant 0 : i32
    return %arg0, %c0_i32, %c0_i32_0 : i32, i32, i32
  }
  func.func @transform_3(%arg0: i32) -> (i32, i32, i32) {
    %c0_i32 = arith.constant 0 : i32
    %c0_i32_0 = arith.constant 0 : i32
    %c0_i32_1 = arith.constant 0 : i32
    %c0_i32_2 = arith.constant 0 : i32
    return %c0_i32, %c0_i32_0, %c0_i32_1 : i32, i32, i32
  }
  func.func @transform_4(%arg0: i32) -> (i32, i32) {
    %c0_i32 = arith.constant 0 : i32
    %c0_i32_0 = arith.constant 0 : i32
    %c0_i32_1 = arith.constant 0 : i32
    return %c0_i32, %c0_i32_0 : i32, i32
  }
  func.func @transform_5(%arg0: i32) -> (i32, i32, i32) {
    %c0_i32 = arith.constant 0 : i32
    %c0_i32_0 = arith.constant 0 : i32
    %c0_i32_1 = arith.constant 0 : i32
    return %arg0, %c0_i32, %c0_i32_0 : i32, i32, i32
  }
}

</mosaic_0001>

<llo_original>
// kernel: tpu_custom_call.1
$region0: #{tpu_custom_call.1}
  #allocation0 [shape = 'u32[]', space=smem, size = 0x4, offset = 0x4, fixed_abs, tag = 'smem constant byte address 0x4 - core index']
  #allocation1 [shape = 'u32[144,128]{1,0:T(1,128)}', space=vmem, size = 0x12000, scoped, tag = 'internal scratch']
  %s0 = inlined_call_operand.hbm [shape: f32[4,8,32], index: 0, kind: input, shape index: {}]
  %s1 = inlined_call_operand.hbm [shape: f32[4,8,32], index: 1, kind: input, shape index: {}]
  %s2 = inlined_call_operand.hbm [shape: f32[4,8,32], index: 2, kind: input, shape index: {}]
  %s3 = inlined_call_operand.hbm [shape: f32[8,32,32], index: 3, kind: input, shape index: {}]
  %s4 = inlined_call_operand.hbm [shape: f32[12,32], index: 4, kind: input, shape index: {}]
  %s5 = inlined_call_operand.hbm [shape: f32[4,8,32], index: 5, kind: output, shape index: {}]
  %s6 = sld [smem:[#allocation0]]
  $region73: #{tpu_custom_call.1} parent=0
    _
  %s8 = ssub.s32 1, %s6
  %s9 = scalar_select 0, %s8, %s6
  $region1: #{tpu_custom_call.1} parent=0
    #allocation2 [shape = 'u8[16384]{0}', space=vmem, size = 0x4000, scoped, tag = 'input window, operand 0']
    #allocation3 [shape = 's32[2]{0}', space=sflag, size = 0x8, scoped, tag = 'scoped memory for tpu_custom_call.1']
    #allocation4 [shape = 's32[2]{0}', space=sflag, size = 0x8, scoped, tag = 'scoped memory for tpu_custom_call.1']
    #allocation5 [shape = 'u8[16384]{0}', space=vmem, size = 0x4000, scoped, tag = 'input window, operand 1']
    #allocation6 [shape = 's32[2]{0}', space=sflag, size = 0x8, scoped, tag = 'scoped memory for tpu_custom_call.1']
    #allocation7 [shape = 'u8[16384]{0}', space=vmem, size = 0x4000, scoped, tag = 'input window, operand 2']
    #allocation8 [shape = 'u8[131072]{0}', space=vmem, size = 0x20000, scoped, tag = 'input window, operand 3, single buffered']
    #allocation9 [shape = 's32[1]{0}', space=sflag, size = 0x4, scoped, tag = 'scoped memory for tpu_custom_call.1']
    #allocation10 [shape = 'u8[8192]{0}', space=vmem, size = 0x2000, scoped, tag = 'input window, operand 4, single buffered']
    #allocation11 [shape = 'u8[16384]{0}', space=vmem, size = 0x4000, scoped, tag = 'output window, operand 0']
    %10 = vsyncpa [#allocation3], 0
    %s11 = scalar_lea.sflag [#allocation3], 1
    %12 = vsyncpa %s11, 0
    %13 = vsyncpa [#allocation6], 0
    %s14 = scalar_lea.sflag [#allocation6], 1
    %15 = vsyncpa %s14, 0
    %16 = vsyncpa [#allocation9], 0
    %17 = vsyncpa [#allocation4], 0
    %s18 = scalar_lea.sflag [#allocation4], 1
    %19 = vsyncpa %s18, 0
    loop: start=0, step=1, limit=4
    $region2: #{tpu_custom_call.1} parent=1 // loop_pre_header
      _
    $region3: #{tpu_custom_call.1} parent=1 // loop_header
      %s21 = sphi 0, %s25
      %p22 = scmp.ge.s32.totalorder %s21, 4
      %s31 = sphi 0, %s33
      %s34 = sphi 0, %s31
      %s35 = sphi 0, %s34
      %s51 = sphi 0, %s35
      %s57 = sphi 0, %s59
      %s60 = sphi 0, %s57
      %s61 = sphi 0, %s60
      %s77 = sphi 0, %s61
      %s83 = sphi 0, %s85
      %s86 = sphi 0, %s83
      %s87 = sphi 0, %s86
      %s103 = sphi 0, %s87
      %s107 = sphi 0, %s107
      %s109 = sphi 0, %s107
      %s110 = sphi 0, %s109
      %s124 = sphi 0, %s110
      %s128 = sphi 0, %s128
      %s130 = sphi 0, %s128
      %s131 = sphi 0, %s130
      %s145 = sphi 0, %s131
      %s151 = sphi 0, %s153
      %s154 = sphi 0, %s151
      %s155 = sphi 0, %s154
      %s171 = sphi 0, %s155
    $region4: #{tpu_custom_call.1} parent=1 // loop_header_branch
      %24 = sbr.rel (%p22) target = $region8
    $region5: #{tpu_custom_call.1} parent=1 // loop_body
      %s26 = ssub.s32 %s21, 1
      %s27 = ssub.s32 %s21, 2
      %s28 = sadd.s32 %s21, 1
      %s29 = ssub.s32 %s21, %s28
      %p30 = scmp.eq.s32.totalorder %s29, 0
      %s32 = sadd.s32 %s31, 1
      %s33 = scalar_select %p30, %s31, %s32
      %p36 = pneg %p30
      %p37 = scmp.eq.s32.totalorder %s21, 1
      %p38 = por %p36, %p37
      %p39 = scmp.ne.s32.totalorder %s31, %s34
      %p40 = scmp.eq.s32.totalorder %s21, 0
      %p41 = por %p39, %p40
      %p42 = scmp.ne.s32.totalorder %s31, %s34
      %p43 = scmp.eq.s32.totalorder %s26, 1
      %p44 = por %p42, %p43
      %p45 = scmp.ne.s32.totalorder %s34, %s35
      %p46 = scmp.eq.s32.totalorder %s26, 0
      %p47 = por %p45, %p46
      %p48 = scmp.ne.s32.totalorder %s34, %s35
      %p49 = scmp.eq.s32.totalorder %s27, 1
      %p50 = por %p48, %p49
      %p52 = scmp.ne.s32.totalorder %s35, %s51
      %p53 = scmp.eq.s32.totalorder %s27, 0
      %p54 = por %p52, %p53
      %s55 = ssub.s32 %s21, %s28
      %p56 = scmp.eq.s32.totalorder %s55, 0
      %s58 = sadd.s32 %s57, 1
      %s59 = scalar_select %p56, %s57, %s58
      %p62 = pneg %p56
      %p63 = scmp.eq.s32.totalorder %s21, 1
      %p64 = por %p62, %p63
      %p65 = scmp.ne.s32.totalorder %s57, %s60
      %p66 = scmp.eq.s32.totalorder %s21, 0
      %p67 = por %p65, %p66
      %p68 = scmp.ne.s32.totalorder %s57, %s60
      %p69 = scmp.eq.s32.totalorder %s26, 1
      %p70 = por %p68, %p69
      %p71 = scmp.ne.s32.totalorder %s60, %s61
      %p72 = scmp.eq.s32.totalorder %s26, 0
      %p73 = por %p71, %p72
      %p74 = scmp.ne.s32.totalorder %s60, %s61
      %p75 = scmp.eq.s32.totalorder %s27, 1
      %p76 = por %p74, %p75
      %p78 = scmp.ne.s32.totalorder %s61, %s77
      %p79 = scmp.eq.s32.totalorder %s27, 0
      %p80 = por %p78, %p79
      %s81 = ssub.s32 %s21, %s28
      %p82 = scmp.eq.s32.totalorder %s81, 0
      %s84 = sadd.s32 %s83, 1
      %s85 = scalar_select %p82, %s83, %s84
      %p88 = pneg %p82
      %p89 = scmp.eq.s32.totalorder %s21, 1
      %p90 = por %p88, %p89
      %p91 = scmp.ne.s32.totalorder %s83, %s86
      %p92 = scmp.eq.s32.totalorder %s21, 0
      %p93 = por %p91, %p92
      %p94 = scmp.ne.s32.totalorder %s83, %s86
      %p95 = scmp.eq.s32.totalorder %s26, 1
      %p96 = por %p94, %p95
      %p97 = scmp.ne.s32.totalorder %s86, %s87
      %p98 = scmp.eq.s32.totalorder %s26, 0
      %p99 = por %p97, %p98
      %p100 = scmp.ne.s32.totalorder %s86, %s87
      %p101 = scmp.eq.s32.totalorder %s27, 1
      %p102 = por %p100, %p101
      %p104 = scmp.ne.s32.totalorder %s87, %s103
      %p105 = scmp.eq.s32.totalorder %s27, 0
      %p106 = por %p104, %p105
      %s108 = sadd.s32 %s107, 1
      %p111 = scmp.eq.s32.totalorder %s21, 1
      %p112 = scmp.ne.s32.totalorder %s107, %s109
      %p113 = scmp.eq.s32.totalorder %s21, 0
      %p114 = por %p112, %p113
      %p115 = scmp.ne.s32.totalorder %s107, %s109
      %p116 = scmp.eq.s32.totalorder %s26, 1
      %p117 = por %p115, %p116
      %p118 = scmp.ne.s32.totalorder %s109, %s110
      %p119 = scmp.eq.s32.totalorder %s26, 0
      %p120 = por %p118, %p119
      %p121 = scmp.ne.s32.totalorder %s109, %s110
      %p122 = scmp.eq.s32.totalorder %s27, 1
      %p123 = por %p121, %p122
      %p125 = scmp.ne.s32.totalorder %s110, %s124
      %p126 = scmp.eq.s32.totalorder %s27, 0
      %p127 = por %p125, %p126
      %s129 = sadd.s32 %s128, 1
      %p132 = scmp.eq.s32.totalorder %s21, 1
      %p133 = scmp.ne.s32.totalorder %s128, %s130
      %p134 = scmp.eq.s32.totalorder %s21, 0
      %p135 = por %p133, %p134
      %p136 = scmp.ne.s32.totalorder %s128, %s130
      %p137 = scmp.eq.s32.totalorder %s26, 1
      %p138 = por %p136, %p137
      %p139 = scmp.ne.s32.totalorder %s130, %s131
      %p140 = scmp.eq.s32.totalorder %s26, 0
      %p141 = por %p139, %p140
      %p142 = scmp.ne.s32.totalorder %s130, %s131
      %p143 = scmp.eq.s32.totalorder %s27, 1
      %p144 = por %p142, %p143
      %p146 = scmp.ne.s32.totalorder %s131, %s145
      %p147 = scmp.eq.s32.totalorder %s27, 0
      %p148 = por %p146, %p147
      %s149 = ssub.s32 %s21, %s28
      %p150 = scmp.eq.s32.totalorder %s149, 0
      %s152 = sadd.s32 %s151, 1
      %s153 = scalar_select %p150, %s151, %s152
      %p156 = pneg %p150
      %p157 = scmp.eq.s32.totalorder %s21, 1
      %p158 = por %p156, %p157
      %p159 = scmp.ne.s32.totalorder %s151, %s154
      %p160 = scmp.eq.s32.totalorder %s21, 0
      %p161 = por %p159, %p160
      %p162 = scmp.ne.s32.totalorder %s151, %s154
      %p163 = scmp.eq.s32.totalorder %s26, 1
      %p164 = por %p162, %p163
      %p165 = scmp.ne.s32.totalorder %s154, %s155
      %p166 = scmp.eq.s32.totalorder %s26, 0
      %p167 = por %p165, %p166
      %p168 = scmp.ne.s32.totalorder %s154, %s155
      %p169 = scmp.eq.s32.totalorder %s27, 1
      %p170 = por %p168, %p169
      %p172 = scmp.ne.s32.totalorder %s155, %s171
      %p173 = scmp.eq.s32.totalorder %s27, 0
      %p174 = por %p172, %p173
      %p175 = scmp.le.s32.totalorder 1, %s21
      %p176 = scmp.lt.s32.totalorder %s21, 3
      %p177 = pnand %p175, %p176
      %p178 = pneg %p177
      // Predicated region
      $region9: #{tpu_custom_call.1} parent=5 // pred_check
        _
      $region10: #{tpu_custom_call.1} parent=5 // pred_check_branch
        %180 = sbr.rel (%p177) target = $region12
      $region11: #{tpu_custom_call.1} parent=5 // pred_region
        %s181 = ssub.s32 %s21, 1
        // Predicated region
        $region13: #{tpu_custom_call.1} parent=11 // pred_check
          %p182 = pneg %p120
        $region14: #{tpu_custom_call.1} parent=11 // pred_check_branch
          %184 = sbr.rel (%p182) target = $region16
        $region15: #{tpu_custom_call.1} parent=11 // pred_region
          %s186 = ssub.s32 4096, 4096
          %187 = vsyncadd [#allocation9], %s186
          %s188 = sshll.u32 [#allocation8], 4
          %s189 = int_to_ptr.vmem [resolvable:$true] %s188
          %194 = dma.hbm_to_vmem [thread:$0]  %s3, 4096, %s189, [#allocation9], 128, 128, 8
        $region16: #{tpu_custom_call.1} parent=11 // pred_fallthru
          _
        // Predicated region
        $region17: #{tpu_custom_call.1} parent=11 // pred_check
          %p195 = pneg %p141
        $region18: #{tpu_custom_call.1} parent=11 // pred_check_branch
          %197 = sbr.rel (%p195) target = $region20
        $region19: #{tpu_custom_call.1} parent=11 // pred_region
          %s199 = ssub.s32 256, 256
          %200 = vsyncadd [#allocation9], %s199
          %s201 = sshll.u32 [#allocation10], 4
          %s202 = int_to_ptr.vmem [resolvable:$true] %s201
          %207 = dma.hbm_to_vmem [thread:$0]  %s4, 256, %s202, [#allocation9], 128, 128, 8
        $region20: #{tpu_custom_call.1} parent=11 // pred_fallthru
          _
      $region12: #{tpu_custom_call.1} parent=5 // pred_fallthru
        _
      %p208 = scmp.lt.s32.totalorder %s21, 2
      // Predicated region
      $region21: #{tpu_custom_call.1} parent=5 // pred_check
        %p209 = pneg %p208
      $region22: #{tpu_custom_call.1} parent=5 // pred_check_branch
        %211 = sbr.rel (%p209) target = $region24
      $region23: #{tpu_custom_call.1} parent=5 // pred_region
        // Predicated region
        $region25: #{tpu_custom_call.1} parent=23 // pred_check
          %p212 = pneg %p41
        $region26: #{tpu_custom_call.1} parent=23 // pred_check_branch
          %214 = sbr.rel (%p212) target = $region28
        $region27: #{tpu_custom_call.1} parent=23 // pred_region
          %s215 = sand.u32 %s31, 1
          %s216 = scalar_lea.sflag [#allocation3], %s215
          %s217 = sand.u32 %s31, 1
          %s218 = smul.addr %s217, 16
          %s219 = scalar_lea.vmem [#allocation2], %s218
          %s220 = smul.u32 2, %s21
          %s222 = ssub.s32 256, 256
          %223 = vsyncadd %s216, %s222
          %s224 = smul.addr %s220, 128
          %s225 = scalar_lea.hbm %s0, %s224
          %s226 = sshll.u32 %s219, 4
          %s227 = int_to_ptr.vmem [resolvable:$true] %s226
          %232 = dma.hbm_to_vmem [thread:$0]  %s225, 256, %s227, %s216, 128, 128, 8
        $region28: #{tpu_custom_call.1} parent=23 // pred_fallthru
          _
        // Predicated region
        $region29: #{tpu_custom_call.1} parent=23 // pred_check
          %p233 = pneg %p67
        $region30: #{tpu_custom_call.1} parent=23 // pred_check_branch
          %235 = sbr.rel (%p233) target = $region32
        $region31: #{tpu_custom_call.1} parent=23 // pred_region
          %s236 = sand.u32 %s21, 1
          %s237 = scalar_lea.sflag [#allocation6], %s236
          %s238 = sand.u32 %s57, 1
          %s239 = smul.addr %s238, 16
          %s240 = scalar_lea.vmem [#allocation5], %s239
          %s241 = smul.u32 2, %s21
          %s243 = ssub.s32 256, 256
          %244 = vsyncadd %s237, %s243
          %s245 = smul.addr %s241, 128
          %s246 = scalar_lea.hbm %s1, %s245
          %s247 = sshll.u32 %s240, 4
          %s248 = int_to_ptr.vmem [resolvable:$true] %s247
          %253 = dma.hbm_to_vmem [thread:$0]  %s246, 256, %s248, %s237, 128, 128, 8
        $region32: #{tpu_custom_call.1} parent=23 // pred_fallthru
          _
        // Predicated region
        $region33: #{tpu_custom_call.1} parent=23 // pred_check
          %p254 = pneg %p93
        $region34: #{tpu_custom_call.1} parent=23 // pred_check_branch
          %256 = sbr.rel (%p254) target = $region36
        $region35: #{tpu_custom_call.1} parent=23 // pred_region
          %s257 = sand.u32 %s21, 1
          %s258 = scalar_lea.sflag [#allocation6], %s257
          %s259 = sand.u32 %s83, 1
          %s260 = smul.addr %s259, 16
          %s261 = scalar_lea.vmem [#allocation7], %s260
          %s262 = smul.u32 2, %s21
          %s264 = ssub.s32 256, 256
          %265 = vsyncadd %s258, %s264
          %s266 = smul.addr %s262, 128
          %s267 = scalar_lea.hbm %s2, %s266
          %s268 = sshll.u32 %s261, 4
          %s269 = int_to_ptr.vmem [resolvable:$true] %s268
          %274 = dma.hbm_to_vmem [thread:$0]  %s267, 256, %s269, %s258, 128, 128, 8
        $region36: #{tpu_custom_call.1} parent=23 // pred_fallthru
          _
      $region24: #{tpu_custom_call.1} parent=5 // pred_fallthru
        _
      %p275 = scmp.le.s32.totalorder 1, %s21
      %p276 = scmp.lt.s32.totalorder %s21, 3
      %p277 = pnand %p275, %p276
      %p278 = pneg %p277
      // Predicated region
      $region37: #{tpu_custom_call.1} parent=5 // pred_check
        _
      $region38: #{tpu_custom_call.1} parent=5 // pred_check_branch
        %280 = sbr.rel (%p277) target = $region40
      $region39: #{tpu_custom_call.1} parent=5 // pred_region
        %s281 = ssub.s32 %s21, 1
        %s282 = sand.u32 %s34, 1
        %s283 = scalar_lea.sflag [#allocation3], %s282
        %s284 = sand.u32 %s34, 1
        %s285 = smul.addr %s284, 16
        %s286 = scalar_lea.vmem [#allocation2], %s285
        // Predicated region
        $region41: #{tpu_custom_call.1} parent=39 // pred_check
          %p287 = pneg %p47
        $region42: #{tpu_custom_call.1} parent=39 // pred_check_branch
          %289 = sbr.rel (%p287) target = $region44
        $region43: #{tpu_custom_call.1} parent=39 // pred_region
          %290 = dma.done %s283, 256
        $region44: #{tpu_custom_call.1} parent=39 // pred_fallthru
          _
        %s291 = sand.u32 %s26, 1
        %s292 = scalar_lea.sflag [#allocation6], %s291
        %s293 = sand.u32 %s60, 1
        %s294 = smul.addr %s293, 16
        %s295 = scalar_lea.vmem [#allocation5], %s294
        // Predicated region
        $region45: #{tpu_custom_call.1} parent=39 // pred_check
          %p296 = pneg %p73
        $region46: #{tpu_custom_call.1} parent=39 // pred_check_branch
          %298 = sbr.rel (%p296) target = $region48
        $region47: #{tpu_custom_call.1} parent=39 // pred_region
          %299 = dma.done %s292, 256
        $region48: #{tpu_custom_call.1} parent=39 // pred_fallthru
          _
        %s300 = sand.u32 %s26, 1
        %s301 = scalar_lea.sflag [#allocation6], %s300
        %s302 = sand.u32 %s86, 1
        %s303 = smul.addr %s302, 16
        %s304 = scalar_lea.vmem [#allocation7], %s303
        // Predicated region
        $region49: #{tpu_custom_call.1} parent=39 // pred_check
          %p305 = pneg %p99
        $region50: #{tpu_custom_call.1} parent=39 // pred_check_branch
          %307 = sbr.rel (%p305) target = $region52
        $region51: #{tpu_custom_call.1} parent=39 // pred_region
          %308 = dma.done %s301, 256
        $region52: #{tpu_custom_call.1} parent=39 // pred_fallthru
          _
        // Predicated region
        $region53: #{tpu_custom_call.1} parent=39 // pred_check
          %p309 = pneg %p120
        $region54: #{tpu_custom_call.1} parent=39 // pred_check_branch
          %311 = sbr.rel (%p309) target = $region56
        $region55: #{tpu_custom_call.1} parent=39 // pred_region
          %312 = dma.done [#allocation9], 4096
        $region56: #{tpu_custom_call.1} parent=39 // pred_fallthru
          _
        // Predicated region
        $region57: #{tpu_custom_call.1} parent=39 // pred_check
          %p313 = pneg %p141
        $region58: #{tpu_custom_call.1} parent=39 // pred_check_branch
          %315 = sbr.rel (%p313) target = $region60
        $region59: #{tpu_custom_call.1} parent=39 // pred_region
          %316 = dma.done [#allocation9], 256
        $region60: #{tpu_custom_call.1} parent=39 // pred_fallthru
          _
        %s317 = sand.u32 %s34, 1
        %s318 = scalar_lea.sflag [#allocation3], %s317
        %s319 = sand.u32 %s34, 1
        %s320 = smul.addr %s319, 16
        %s321 = scalar_lea.vmem [#allocation2], %s320
        %p322 = pneg %p47
        %p323 = pneg %p44
        %s324 = sand.u32 %s26, 1
        %s325 = scalar_lea.sflag [#allocation6], %s324
        %s326 = sand.u32 %s60, 1
        %s327 = smul.addr %s326, 16
        %s328 = scalar_lea.vmem [#allocation5], %s327
        %p329 = pneg %p73
        %p330 = pneg %p70
        %s331 = sand.u32 %s26, 1
        %s332 = scalar_lea.sflag [#allocation6], %s331
        %s333 = sand.u32 %s86, 1
        %s334 = smul.addr %s333, 16
        %s335 = scalar_lea.vmem [#allocation7], %s334
        %p336 = pneg %p99
        %p337 = pneg %p96
        %p338 = pneg %p120
        %p339 = pneg %p117
        %p340 = pneg %p141
        %p341 = pneg %p138
        %p342 = pneg %p167
        %p343 = pneg %p164
        %s344 = sand.u32 %s154, 1
        %s345 = scalar_lea.sflag [#allocation4], %s344
        %s346 = sand.u32 %s154, 1
        %s347 = smul.addr %s346, 16
        %s348 = scalar_lea.vmem [#allocation11], %s347
        %s349 = smul.u32 2, %s26
        %s350 = smul.u32 2, %s26
        %s351 = smul.u32 2, %s26
        %s352 = smul.u32 2, %s26
        %v353 = vld [vmem:[%s286] sm:$0xff]
        %v354 = vld [vmem:[%s286 + $0x8] sm:$0xff]
        %v355 = vld [vmem:[%s295] sm:$0xff]
        %v356 = vld [vmem:[%s295 + $0x8] sm:$0xff]
        %v357 = vld [vmem:[%s304] sm:$0xff]
        %v358 = vld [vmem:[%s304 + $0x8] sm:$0xff]
        %v359 = vld [vmem:[#allocation10] sm:$0xff]
        %v360 = vld [vmem:[#allocation10 + $0x8] sm:$0xf]
        %v361 = vld [vmem:[#allocation8] sm:$0xff]
        %v362 = vld [vmem:[#allocation8 + $0x8] sm:$0xff]
        %v363 = vld [vmem:[#allocation8 + $0x10] sm:$0xff]
        %v364 = vld [vmem:[#allocation8 + $0x18] sm:$0xff]
        %v365 = vlaneseq
        %v366 = vshrl.u32 %v365, 7
        %v367 = vsub.s32 0, %v366
        %v368 = vrot.slane %v359, %v367
        %vm369 = vcmask 261120
        %v371 = vsel %vm369, %v353, 0
        %v374 = vsel %vm369, %v354, 0
        %376 = vmatprep.subr.mxu0 0.0
        %377 = vmatpush1.msra.mxu0 %v361
        %378 = vmatprep.subr.mxu0 0.0
        %379 = vmatpush1.msra.mxu0 %v362
        %380 = vmatprep.subr.mxu0 0.0
        %381 = vmatpush1.msra.mxu0 %v363
        %382 = vmatprep.subr.mxu0 0.0
        %383 = vmatpush1.msra.mxu0 %v364
        %384 = vmatprep.subr.mxu0 0.0
        %385 = vmatpush1.msra.mxu0 0.0
        %386 = vmatprep.subr.mxu0 0.0
        %387 = vmatpush1.msra.mxu0 0.0
        %388 = vmatprep.subr.mxu0 0.0
        %389 = vmatpush1.msra.mxu0 0.0
        %390 = vmatprep.subr.mxu0 0.0
        %391 = vmatpush1.msra.mxu0 0.0
        %392 = vmatprep.subr.mxu0 0.0
        %393 = vmatpush1.msra.mxu0 0.0
        %394 = vmatprep.subr.mxu0 0.0
        %395 = vmatpush1.msra.mxu0 0.0
        %396 = vmatprep.subr.mxu0 0.0
        %397 = vmatpush1.msra.mxu0 0.0
        %398 = vmatprep.subr.mxu0 0.0
        %399 = vmatpush1.msra.mxu0 0.0
        %400 = vmatprep.subr.mxu0 0.0
        %401 = vmatpush1.msra.mxu0 0.0
        %402 = vmatprep.subr.mxu0 0.0
        %403 = vmatpush1.msra.mxu0 0.0
        %404 = vmatprep.subr.mxu0 0.0
        %405 = vmatpush1.msra.mxu0 0.0
        %406 = vmatprep.subr.mxu0 0.0
        %407 = vmatpush1.msra.mxu0 0.0
        %408 = vmatprep.subr.mxu0 0.0
        %409 = vmatpush1.msra.mxu0 0.0
        %410 = vmatprep.subr.mxu0 0.0
        %411 = vmatpush1.msra.mxu0 0.0
        %412 = vmatprep.subr.mxu0 0.0
        %413 = vmatpush1.msra.mxu0 0.0
        %414 = vmatprep.subr.mxu0 0.0
        %415 = vmatpush1.msra.mxu0 0.0
        %416 = vmatprep.subr.mxu0 0.0
        %417 = vmatpush1.msra.mxu0 0.0
        %418 = vmatprep.subr.mxu0 0.0
        %419 = vmatpush1.msra.mxu0 0.0
        %420 = vmatprep.subr.mxu0 0.0
        %421 = vmatpush1.msra.mxu0 0.0
        %422 = vmatprep.subr.mxu0 0.0
        %423 = vmatpush1.msra.mxu0 0.0
        %424 = vmatprep.subr.mxu0 0.0
        %425 = vmatpush1.msra.mxu0 0.0
        %426 = vmatprep.subr.mxu0 0.0
        %427 = vmatpush1.msra.mxu0 0.0
        %428 = vmatprep.subr.mxu0 0.0
        %429 = vmatpush1.msra.mxu0 0.0
        %430 = vmatprep.subr.mxu0 0.0
        %431 = vmatpush1.msra.mxu0 0.0
        %432 = vmatprep.subr.mxu0 0.0
        %433 = vmatpush1.msra.mxu0 0.0
        %434 = vmatprep.subr.mxu0 0.0
        %435 = vmatpush1.msra.mxu0 0.0
        %436 = vmatprep.subr.mxu0 0.0
        %437 = vmatpush1.msra.mxu0 0.0
        %438 = vmatprep.subr.mxu0 0.0
        %439 = vmatpush1.msra.mxu0 0.0
        %440 = vmatprep.mubr.f32.mxu0 0.0
        %441 = vmatmul.mubr.f32.gmra.mrb[0].mxu0 %v371
        %v442 = vpop.f32.mrb[0].mxu0
        %v443 = vadd.f32 %v368, %v442
        %v444 = vpop.f32.mrb[0].mxu0
        %445 = vmatprep.mubr.f32.mxu0 0.0
        %446 = vmatmul.mubr.f32.gmra.mrb[0].mxu0 %v374
        %v447 = vpop.f32.mrb[0].mxu0
        %v448 = vadd.f32 %v368, %v447
        %v449 = vpop.f32.mrb[0].mxu0
        %450 = vdwg.mxu0
        %s451 = scalar_lea.vmem [#allocation8], 32
        %v452 = vld [vmem:[%s451] sm:$0xff]
        %v453 = vld [vmem:[%s451 + $0x8] sm:$0xff]
        %v454 = vld [vmem:[%s451 + $0x10] sm:$0xff]
        %v455 = vld [vmem:[%s451 + $0x18] sm:$0xff]
        %v456 = vlaneseq
        %v457 = vshrl.u32 %v456, 7
        %v458 = vsub.s32 1, %v457
        %v459 = vrot.slane %v359, %v458
        %v461 = vsel %vm369, %v355, 0
        %v464 = vsel %vm369, %v356, 0
        %466 = vmatprep.subr.mxu0 0.0
        %467 = vmatpush1.msra.mxu0 %v452
        %468 = vmatprep.subr.mxu0 0.0
        %469 = vmatpush1.msra.mxu0 %v453
        %470 = vmatprep.subr.mxu0 0.0
        %471 = vmatpush1.msra.mxu0 %v454
        %472 = vmatprep.subr.mxu0 0.0
        %473 = vmatpush1.msra.mxu0 %v455
        %474 = vmatprep.subr.mxu0 0.0
        %475 = vmatpush1.msra.mxu0 0.0
        %476 = vmatprep.subr.mxu0 0.0
        %477 = vmatpush1.msra.mxu0 0.0
        %478 = vmatprep.subr.mxu0 0.0
        %479 = vmatpush1.msra.mxu0 0.0
        %480 = vmatprep.subr.mxu0 0.0
        %481 = vmatpush1.msra.mxu0 0.0
        %482 = vmatprep.subr.mxu0 0.0
        %483 = vmatpush1.msra.mxu0 0.0
        %484 = vmatprep.subr.mxu0 0.0
        %485 = vmatpush1.msra.mxu0 0.0
        %486 = vmatprep.subr.mxu0 0.0
        %487 = vmatpush1.msra.mxu0 0.0
        %488 = vmatprep.subr.mxu0 0.0
        %489 = vmatpush1.msra.mxu0 0.0
        %490 = vmatprep.subr.mxu0 0.0
        %491 = vmatpush1.msra.mxu0 0.0
        %492 = vmatprep.subr.mxu0 0.0
        %493 = vmatpush1.msra.mxu0 0.0
        %494 = vmatprep.subr.mxu0 0.0
        %495 = vmatpush1.msra.mxu0 0.0
        %496 = vmatprep.subr.mxu0 0.0
        %497 = vmatpush1.msra.mxu0 0.0
        %498 = vmatprep.subr.mxu0 0.0
        %499 = vmatpush1.msra.mxu0 0.0
        %500 = vmatprep.subr.mxu0 0.0
        %501 = vmatpush1.msra.mxu0 0.0
        %502 = vmatprep.subr.mxu0 0.0
        %503 = vmatpush1.msra.mxu0 0.0
        %504 = vmatprep.subr.mxu0 0.0
        %505 = vmatpush1.msra.mxu0 0.0
        %506 = vmatprep.subr.mxu0 0.0
        %507 = vmatpush1.msra.mxu0 0.0
        %508 = vmatprep.subr.mxu0 0.0
        %509 = vmatpush1.msra.mxu0 0.0
        %510 = vmatprep.subr.mxu0 0.0
        %511 = vmatpush1.msra.mxu0 0.0
        %512 = vmatprep.subr.mxu0 0.0
        %513 = vmatpush1.msra.mxu0 0.0
        %514 = vmatprep.subr.mxu0 0.0
        %515 = vmatpush1.msra.mxu0 0.0
        %516 = vmatprep.subr.mxu0 0.0
        %517 = vmatpush1.msra.mxu0 0.0
        %518 = vmatprep.subr.mxu0 0.0
        %519 = vmatpush1.msra.mxu0 0.0
        %520 = vmatprep.subr.mxu0 0.0
        %521 = vmatpush1.msra.mxu0 0.0
        %522 = vmatprep.subr.mxu0 0.0
        %523 = vmatpush1.msra.mxu0 0.0
        %524 = vmatprep.subr.mxu0 0.0
        %525 = vmatpush1.msra.mxu0 0.0
        %526 = vmatprep.subr.mxu0 0.0
        %527 = vmatpush1.msra.mxu0 0.0
        %528 = vmatprep.subr.mxu0 0.0
        %529 = vmatpush1.msra.mxu0 0.0
        %530 = vmatprep.mubr.f32.mxu0 0.0
        %531 = vmatmul.mubr.f32.gmra.mrb[0].mxu0 %v461
        %v532 = vpop.f32.mrb[0].mxu0
        %v533 = vadd.f32 %v459, %v532
        %v534 = vpop.f32.mrb[0].mxu0
        %535 = vmatprep.mubr.f32.mxu0 0.0
        %536 = vmatmul.mubr.f32.gmra.mrb[0].mxu0 %v464
        %v537 = vpop.f32.mrb[0].mxu0
        %v538 = vadd.f32 %v459, %v537
        %v539 = vpop.f32.mrb[0].mxu0
        %540 = vdwg.mxu0
        %s541 = scalar_lea.vmem [#allocation8], 64
        %v542 = vld [vmem:[%s541] sm:$0xff]
        %v543 = vld [vmem:[%s541 + $0x8] sm:$0xff]
        %v544 = vld [vmem:[%s541 + $0x10] sm:$0xff]
        %v545 = vld [vmem:[%s541 + $0x18] sm:$0xff]
        %v546 = vlaneseq
        %v547 = vshrl.u32 %v546, 7
        %v548 = vsub.s32 2, %v547
        %v549 = vrot.slane %v359, %v548
        %v551 = vsel %vm369, %v357, 0
        %v554 = vsel %vm369, %v358, 0
        %556 = vmatprep.subr.mxu0 0.0
        %557 = vmatpush1.msra.mxu0 %v542
        %558 = vmatprep.subr.mxu0 0.0
        %559 = vmatpush1.msra.mxu0 %v543
        %560 = vmatprep.subr.mxu0 0.0
        %561 = vmatpush1.msra.mxu0 %v544
        %562 = vmatprep.subr.mxu0 0.0
        %563 = vmatpush1.msra.mxu0 %v545
        %564 = vmatprep.subr.mxu0 0.0
        %565 = vmatpush1.msra.mxu0 0.0
        %566 = vmatprep.subr.mxu0 0.0
        %567 = vmatpush1.msra.mxu0 0.0
        %568 = vmatprep.subr.mxu0 0.0
        %569 = vmatpush1.msra.mxu0 0.0
        %570 = vmatprep.subr.mxu0 0.0
        %571 = vmatpush1.msra.mxu0 0.0
        %572 = vmatprep.subr.mxu0 0.0
        %573 = vmatpush1.msra.mxu0 0.0
        %574 = vmatprep.subr.mxu0 0.0
        %575 = vmatpush1.msra.mxu0 0.0
        %576 = vmatprep.subr.mxu0 0.0
        %577 = vmatpush1.msra.mxu0 0.0
        %578 = vmatprep.subr.mxu0 0.0
        %579 = vmatpush1.msra.mxu0 0.0
        %580 = vmatprep.subr.mxu0 0.0
        %581 = vmatpush1.msra.mxu0 0.0
        %582 = vmatprep.subr.mxu0 0.0
        %583 = vmatpush1.msra.mxu0 0.0
        %584 = vmatprep.subr.mxu0 0.0
        %585 = vmatpush1.msra.mxu0 0.0
        %586 = vmatprep.subr.mxu0 0.0
        %587 = vmatpush1.msra.mxu0 0.0
        %588 = vmatprep.subr.mxu0 0.0
        %589 = vmatpush1.msra.mxu0 0.0
        %590 = vmatprep.subr.mxu0 0.0
        %591 = vmatpush1.msra.mxu0 0.0
        %592 = vmatprep.subr.mxu0 0.0
        %593 = vmatpush1.msra.mxu0 0.0
        %594 = vmatprep.subr.mxu0 0.0
        %595 = vmatpush1.msra.mxu0 0.0
        %596 = vmatprep.subr.mxu0 0.0
        %597 = vmatpush1.msra.mxu0 0.0
        %598 = vmatprep.subr.mxu0 0.0
        %599 = vmatpush1.msra.mxu0 0.0
        %600 = vmatprep.subr.mxu0 0.0
        %601 = vmatpush1.msra.mxu0 0.0
        %602 = vmatprep.subr.mxu0 0.0
        %603 = vmatpush1.msra.mxu0 0.0
        %604 = vmatprep.subr.mxu0 0.0
        %605 = vmatpush1.msra.mxu0 0.0
        %606 = vmatprep.subr.mxu0 0.0
        %607 = vmatpush1.msra.mxu0 0.0
        %608 = vmatprep.subr.mxu0 0.0
        %609 = vmatpush1.msra.mxu0 0.0
        %610 = vmatprep.subr.mxu0 0.0
        %611 = vmatpush1.msra.mxu0 0.0
        %612 = vmatprep.subr.mxu0 0.0
        %613 = vmatpush1.msra.mxu0 0.0
        %614 = vmatprep.subr.mxu0 0.0
        %615 = vmatpush1.msra.mxu0 0.0
        %616 = vmatprep.subr.mxu0 0.0
        %617 = vmatpush1.msra.mxu0 0.0
        %618 = vmatprep.subr.mxu0 0.0
        %619 = vmatpush1.msra.mxu0 0.0
        %620 = vmatprep.mubr.f32.mxu0 0.0
        %621 = vmatmul.mubr.f32.gmra.mrb[0].mxu0 %v551
        %v622 = vpop.f32.mrb[0].mxu0
        %v623 = vadd.f32 %v549, %v622
        %v624 = vpop.f32.mrb[0].mxu0
        %625 = vmatprep.mubr.f32.mxu0 0.0
        %626 = vmatmul.mubr.f32.gmra.mrb[0].mxu0 %v554
        %v627 = vpop.f32.mrb[0].mxu0
        %v628 = vadd.f32 %v549, %v627
        %v629 = vpop.f32.mrb[0].mxu0
        %630 = vdwg.mxu0
        %s631 = scalar_lea.vmem [#allocation8], 96
        %v632 = vld [vmem:[%s631] sm:$0xff]
        %v633 = vld [vmem:[%s631 + $0x8] sm:$0xff]
        %v634 = vld [vmem:[%s631 + $0x10] sm:$0xff]
        %v635 = vld [vmem:[%s631 + $0x18] sm:$0xff]
        %vm636 = vcmask 64512
        %v638 = vsel %vm636, %v443, 0
        %v641 = vsel %vm636, %v533, 0
        %643 = vmatprep.subr.mxu0 0.0
        %644 = vmatpush1.xpose.msra.mxu0 %v641
        %645 = vmatprep.subr.mxu0 0.0
        %646 = vmatpush1.xpose.msra.mxu0 0.0
        %647 = vmatprep.subr.mxu0 0.0
        %648 = vmatpush1.xpose.msra.mxu0 0.0
        %649 = vmatprep.subr.mxu0 0.0
        %650 = vmatpush1.xpose.msra.mxu0 0.0
        %651 = vmatprep.subr.mxu0 0.0
        %652 = vmatpush1.xpose.msra.mxu0 0.0
        %653 = vmatprep.subr.mxu0 0.0
        %654 = vmatpush1.xpose.msra.mxu0 0.0
        %655 = vmatprep.subr.mxu0 0.0
        %656 = vmatpush1.xpose.msra.mxu0 0.0
        %657 = vmatprep.subr.mxu0 0.0
        %658 = vmatpush1.xpose.msra.mxu0 0.0
        %659 = vmatprep.subr.mxu0 0.0
        %660 = vmatpush1.xpose.msra.mxu0 0.0
        %661 = vmatprep.subr.mxu0 0.0
        %662 = vmatpush1.xpose.msra.mxu0 0.0
        %663 = vmatprep.subr.mxu0 0.0
        %664 = vmatpush1.xpose.msra.mxu0 0.0
        %665 = vmatprep.subr.mxu0 0.0
        %666 = vmatpush1.xpose.msra.mxu0 0.0
        %667 = vmatprep.subr.mxu0 0.0
        %668 = vmatpush1.xpose.msra.mxu0 0.0
        %669 = vmatprep.subr.mxu0 0.0
        %670 = vmatpush1.xpose.msra.mxu0 0.0
        %671 = vmatprep.subr.mxu0 0.0
        %672 = vmatpush1.xpose.msra.mxu0 0.0
        %673 = vmatprep.subr.mxu0 0.0
        %674 = vmatpush1.xpose.msra.mxu0 0.0
        %675 = vmatprep.subr.mxu0 0.0
        %676 = vmatpush1.xpose.msra.mxu0 0.0
        %677 = vmatprep.subr.mxu0 0.0
        %678 = vmatpush1.xpose.msra.mxu0 0.0
        %679 = vmatprep.subr.mxu0 0.0
        %680 = vmatpush1.xpose.msra.mxu0 0.0
        %681 = vmatprep.subr.mxu0 0.0
        %682 = vmatpush1.xpose.msra.mxu0 0.0
        %683 = vmatprep.subr.mxu0 0.0
        %684 = vmatpush1.xpose.msra.mxu0 0.0
        %685 = vmatprep.subr.mxu0 0.0
        %686 = vmatpush1.xpose.msra.mxu0 0.0
        %687 = vmatprep.subr.mxu0 0.0
        %688 = vmatpush1.xpose.msra.mxu0 0.0
        %689 = vmatprep.subr.mxu0 0.0
        %690 = vmatpush1.xpose.msra.mxu0 0.0
        %691 = vmatprep.subr.mxu0 0.0
        %692 = vmatpush1.xpose.msra.mxu0 0.0
        %693 = vmatprep.subr.mxu0 0.0
        %694 = vmatpush1.xpose.msra.mxu0 0.0
        %695 = vmatprep.subr.mxu0 0.0
        %696 = vmatpush1.xpose.msra.mxu0 0.0
        %697 = vmatprep.subr.mxu0 0.0
        %698 = vmatpush1.xpose.msra.mxu0 0.0
        %699 = vmatprep.subr.mxu0 0.0
        %700 = vmatpush1.xpose.msra.mxu0 0.0
        %701 = vmatprep.subr.mxu0 0.0
        %702 = vmatpush1.xpose.msra.mxu0 0.0
        %703 = vmatprep.subr.mxu0 0.0
        %704 = vmatpush1.xpose.msra.mxu0 0.0
        %705 = vmatprep.subr.mxu0 0.0
        %706 = vmatpush1.xpose.msra.mxu0 0.0
        %707 = vmatprep.mubr.f32.mxu0 0.0
        %708 = vmatmul.mubr.f32.gmra.mrb[0].mxu0 %v638
        %v709 = vpop.f32.mrb[0].mxu0
        %v710 = vadd.f32 0.0, %v709
        %v711 = vpop.f32.mrb[0].mxu0
        %712 = vdwg.mxu0
        %v714 = vsel %vm636, %v448, 0
        %v717 = vsel %vm636, %v538, 0
        %719 = vmatprep.subr.mxu0 0.0
        %720 = vmatpush1.xpose.msra.mxu0 %v717
        %721 = vmatprep.subr.mxu0 0.0
        %722 = vmatpush1.xpose.msra.mxu0 0.0
        %723 = vmatprep.subr.mxu0 0.0
        %724 = vmatpush1.xpose.msra.mxu0 0.0
        %725 = vmatprep.subr.mxu0 0.0
        %726 = vmatpush1.xpose.msra.mxu0 0.0
        %727 = vmatprep.subr.mxu0 0.0
        %728 = vmatpush1.xpose.msra.mxu0 0.0
        %729 = vmatprep.subr.mxu0 0.0
        %730 = vmatpush1.xpose.msra.mxu0 0.0
        %731 = vmatprep.subr.mxu0 0.0
        %732 = vmatpush1.xpose.msra.mxu0 0.0
        %733 = vmatprep.subr.mxu0 0.0
        %734 = vmatpush1.xpose.msra.mxu0 0.0
        %735 = vmatprep.subr.mxu0 0.0
        %736 = vmatpush1.xpose.msra.mxu0 0.0
        %737 = vmatprep.subr.mxu0 0.0
        %738 = vmatpush1.xpose.msra.mxu0 0.0
        %739 = vmatprep.subr.mxu0 0.0
        %740 = vmatpush1.xpose.msra.mxu0 0.0
        %741 = vmatprep.subr.mxu0 0.0
        %742 = vmatpush1.xpose.msra.mxu0 0.0
        %743 = vmatprep.subr.mxu0 0.0
        %744 = vmatpush1.xpose.msra.mxu0 0.0
        %745 = vmatprep.subr.mxu0 0.0
        %746 = vmatpush1.xpose.msra.mxu0 0.0
        %747 = vmatprep.subr.mxu0 0.0
        %748 = vmatpush1.xpose.msra.mxu0 0.0
        %749 = vmatprep.subr.mxu0 0.0
        %750 = vmatpush1.xpose.msra.mxu0 0.0
        %751 = vmatprep.subr.mxu0 0.0
        %752 = vmatpush1.xpose.msra.mxu0 0.0
        %753 = vmatprep.subr.mxu0 0.0
        %754 = vmatpush1.xpose.msra.mxu0 0.0
        %755 = vmatprep.subr.mxu0 0.0
        %756 = vmatpush1.xpose.msra.mxu0 0.0
        %757 = vmatprep.subr.mxu0 0.0
        %758 = vmatpush1.xpose.msra.mxu0 0.0
        %759 = vmatprep.subr.mxu0 0.0
        %760 = vmatpush1.xpose.msra.mxu0 0.0
        %761 = vmatprep.subr.mxu0 0.0
        %762 = vmatpush1.xpose.msra.mxu0 0.0
        %763 = vmatprep.subr.mxu0 0.0
        %764 = vmatpush1.xpose.msra.mxu0 0.0
        %765 = vmatprep.subr.mxu0 0.0
        %766 = vmatpush1.xpose.msra.mxu0 0.0
        %767 = vmatprep.subr.mxu0 0.0
        %768 = vmatpush1.xpose.msra.mxu0 0.0
        %769 = vmatprep.subr.mxu0 0.0
        %770 = vmatpush1.xpose.msra.mxu0 0.0
        %771 = vmatprep.subr.mxu0 0.0
        %772 = vmatpush1.xpose.msra.mxu0 0.0
        %773 = vmatprep.subr.mxu0 0.0
        %774 = vmatpush1.xpose.msra.mxu0 0.0
        %775 = vmatprep.subr.mxu0 0.0
        %776 = vmatpush1.xpose.msra.mxu0 0.0
        %777 = vmatprep.subr.mxu0 0.0
        %778 = vmatpush1.xpose.msra.mxu0 0.0
        %779 = vmatprep.subr.mxu0 0.0
        %780 = vmatpush1.xpose.msra.mxu0 0.0
        %781 = vmatprep.subr.mxu0 0.0
        %782 = vmatpush1.xpose.msra.mxu0 0.0
        %783 = vmatprep.mubr.f32.mxu0 0.0
        %784 = vmatmul.mubr.f32.gmra.mrb[0].mxu0 %v714
        %v785 = vpop.f32.mrb[0].mxu0
        %v786 = vadd.f32 0.0, %v785
        %v787 = vpop.f32.mrb[0].mxu0
        %788 = vdwg.mxu0
        %v789 = vsel %vm636, %v710, -inf
        %790 = vmax.xlane.f32.xlu0 %v789
        %v791 = vpop.xlane.xlu0 %790
        %v792 = vsel %vm636, %v786, -inf
        %793 = vmax.xlane.f32.xlu0 %v792
        %v794 = vpop.xlane.xlu0 %793
        %v795 = vsub.f32 %v710, %v791
        %v796 = vsub.f32 %v786, %v794
        %v797 = vmul.f32 %v795, 1.442695
        %v798 = vpow.pop %v797
        %v799 = vmul.f32 %v796, 1.442695
        %v800 = vpow.pop %v799
        %v801 = vsel %vm636, %v798, 0.0
        %802 = vadd.xlane.f32.xlu0 %v801
        %v803 = vpop.xlane.xlu0 %802
        %v804 = vsel %vm636, %v800, 0.0
        %805 = vadd.xlane.f32.xlu0 %v804
        %v806 = vpop.xlane.xlu0 %805
        %v808 = vsel %vm636, %v798, 0
        %810 = vmatprep.subr.mxu0 0.0
        %811 = vmatpush1.msra.mxu0 %v623
        %812 = vmatprep.subr.mxu0 0.0
        %813 = vmatpush1.msra.mxu0 0.0
        %814 = vmatprep.subr.mxu0 0.0
        %815 = vmatpush1.msra.mxu0 0.0
        %816 = vmatprep.subr.mxu0 0.0
        %817 = vmatpush1.msra.mxu0 0.0
        %818 = vmatprep.subr.mxu0 0.0
        %819 = vmatpush1.msra.mxu0 0.0
        %820 = vmatprep.subr.mxu0 0.0
        %821 = vmatpush1.msra.mxu0 0.0
        %822 = vmatprep.subr.mxu0 0.0
        %823 = vmatpush1.msra.mxu0 0.0
        %824 = vmatprep.subr.mxu0 0.0
        %825 = vmatpush1.msra.mxu0 0.0
        %826 = vmatprep.subr.mxu0 0.0
        %827 = vmatpush1.msra.mxu0 0.0
        %828 = vmatprep.subr.mxu0 0.0
        %829 = vmatpush1.msra.mxu0 0.0
        %830 = vmatprep.subr.mxu0 0.0
        %831 = vmatpush1.msra.mxu0 0.0
        %832 = vmatprep.subr.mxu0 0.0
        %833 = vmatpush1.msra.mxu0 0.0
        %834 = vmatprep.subr.mxu0 0.0
        %835 = vmatpush1.msra.mxu0 0.0
        %836 = vmatprep.subr.mxu0 0.0
        %837 = vmatpush1.msra.mxu0 0.0
        %838 = vmatprep.subr.mxu0 0.0
        %839 = vmatpush1.msra.mxu0 0.0
        %840 = vmatprep.subr.mxu0 0.0
        %841 = vmatpush1.msra.mxu0 0.0
        %842 = vmatprep.subr.mxu0 0.0
        %843 = vmatpush1.msra.mxu0 0.0
        %844 = vmatprep.subr.mxu0 0.0
        %845 = vmatpush1.msra.mxu0 0.0
        %846 = vmatprep.subr.mxu0 0.0
        %847 = vmatpush1.msra.mxu0 0.0
        %848 = vmatprep.subr.mxu0 0.0
        %849 = vmatpush1.msra.mxu0 0.0
        %850 = vmatprep.subr.mxu0 0.0
        %851 = vmatpush1.msra.mxu0 0.0
        %852 = vmatprep.subr.mxu0 0.0
        %853 = vmatpush1.msra.mxu0 0.0
        %854 = vmatprep.subr.mxu0 0.0
        %855 = vmatpush1.msra.mxu0 0.0
        %856 = vmatprep.subr.mxu0 0.0
        %857 = vmatpush1.msra.mxu0 0.0
        %858 = vmatprep.subr.mxu0 0.0
        %859 = vmatpush1.msra.mxu0 0.0
        %860 = vmatprep.subr.mxu0 0.0
        %861 = vmatpush1.msra.mxu0 0.0
        %862 = vmatprep.subr.mxu0 0.0
        %863 = vmatpush1.msra.mxu0 0.0
        %864 = vmatprep.subr.mxu0 0.0
        %865 = vmatpush1.msra.mxu0 0.0
        %866 = vmatprep.subr.mxu0 0.0
        %867 = vmatpush1.msra.mxu0 0.0
        %868 = vmatprep.subr.mxu0 0.0
        %869 = vmatpush1.msra.mxu0 0.0
        %870 = vmatprep.subr.mxu0 0.0
        %871 = vmatpush1.msra.mxu0 0.0
        %872 = vmatprep.subr.mxu0 0.0
        %873 = vmatpush1.msra.mxu0 0.0
        %874 = vmatprep.mubr.f32.mxu0 0.0
        %875 = vmatmul.mubr.f32.gmra.mrb[0].mxu0 %v808
        %v876 = vpop.f32.mrb[0].mxu0
        %v877 = vadd.f32 0.0, %v876
        %v878 = vpop.f32.mrb[0].mxu0
        %879 = vdwg.mxu0
        %v881 = vsel %vm636, %v800, 0
        %883 = vmatprep.subr.mxu0 0.0
        %884 = vmatpush1.msra.mxu0 %v628
        %885 = vmatprep.subr.mxu0 0.0
        %886 = vmatpush1.msra.mxu0 0.0
        %887 = vmatprep.subr.mxu0 0.0
        %888 = vmatpush1.msra.mxu0 0.0
        %889 = vmatprep.subr.mxu0 0.0
        %890 = vmatpush1.msra.mxu0 0.0
        %891 = vmatprep.subr.mxu0 0.0
        %892 = vmatpush1.msra.mxu0 0.0
        %893 = vmatprep.subr.mxu0 0.0
        %894 = vmatpush1.msra.mxu0 0.0
        %895 = vmatprep.subr.mxu0 0.0
        %896 = vmatpush1.msra.mxu0 0.0
        %897 = vmatprep.subr.mxu0 0.0
        %898 = vmatpush1.msra.mxu0 0.0
        %899 = vmatprep.subr.mxu0 0.0
        %900 = vmatpush1.msra.mxu0 0.0
        %901 = vmatprep.subr.mxu0 0.0
        %902 = vmatpush1.msra.mxu0 0.0
        %903 = vmatprep.subr.mxu0 0.0
        %904 = vmatpush1.msra.mxu0 0.0
        %905 = vmatprep.subr.mxu0 0.0
        %906 = vmatpush1.msra.mxu0 0.0
        %907 = vmatprep.subr.mxu0 0.0
        %908 = vmatpush1.msra.mxu0 0.0
        %909 = vmatprep.subr.mxu0 0.0
        %910 = vmatpush1.msra.mxu0 0.0
        %911 = vmatprep.subr.mxu0 0.0
        %912 = vmatpush1.msra.mxu0 0.0
        %913 = vmatprep.subr.mxu0 0.0
        %914 = vmatpush1.msra.mxu0 0.0
        %915 = vmatprep.subr.mxu0 0.0
        %916 = vmatpush1.msra.mxu0 0.0
        %917 = vmatprep.subr.mxu0 0.0
        %918 = vmatpush1.msra.mxu0 0.0
        %919 = vmatprep.subr.mxu0 0.0
        %920 = vmatpush1.msra.mxu0 0.0
        %921 = vmatprep.subr.mxu0 0.0
        %922 = vmatpush1.msra.mxu0 0.0
        %923 = vmatprep.subr.mxu0 0.0
        %924 = vmatpush1.msra.mxu0 0.0
        %925 = vmatprep.subr.mxu0 0.0
        %926 = vmatpush1.msra.mxu0 0.0
        %927 = vmatprep.subr.mxu0 0.0
        %928 = vmatpush1.msra.mxu0 0.0
        %929 = vmatprep.subr.mxu0 0.0
        %930 = vmatpush1.msra.mxu0 0.0
        %931 = vmatprep.subr.mxu0 0.0
        %932 = vmatpush1.msra.mxu0 0.0
        %933 = vmatprep.subr.mxu0 0.0
        %934 = vmatpush1.msra.mxu0 0.0
        %935 = vmatprep.subr.mxu0 0.0
        %936 = vmatpush1.msra.mxu0 0.0
        %937 = vmatprep.subr.mxu0 0.0
        %938 = vmatpush1.msra.mxu0 0.0
        %939 = vmatprep.subr.mxu0 0.0
        %940 = vmatpush1.msra.mxu0 0.0
        %941 = vmatprep.subr.mxu0 0.0
        %942 = vmatpush1.msra.mxu0 0.0
        %943 = vmatprep.subr.mxu0 0.0
        %944 = vmatpush1.msra.mxu0 0.0
        %945 = vmatprep.subr.mxu0 0.0
        %946 = vmatpush1.msra.mxu0 0.0
        %947 = vmatprep.mubr.f32.mxu0 0.0
        %948 = vmatmul.mubr.f32.gmra.mrb[0].mxu0 %v881
        %v949 = vpop.f32.mrb[0].mxu0
        %v950 = vadd.f32 0.0, %v949
        %v951 = vpop.f32.mrb[0].mxu0
        %952 = vdwg.mxu0
        %v953 = vrcp.pop %v803
        %v954 = vrcp.pop %v806
        %v955 = vmul.f32 %v877, %v953
        %v956 = vmul.f32 %v950, %v954
        %957 = vrot.lane.b32.xlu0 %v443, 120
        %v958 = vpop.permute.xlu0 %957
        %959 = vrot.lane.b32.xlu0 %v533, 120
        %v960 = vpop.permute.xlu0 %959
        %v961 = vsel %vm636, %v958, 0
        %v963 = vsel %vm636, %v960, 0
        %965 = vmatprep.subr.mxu0 0.0
        %966 = vmatpush1.xpose.msra.mxu0 %v963
        %967 = vmatprep.subr.mxu0 0.0
        %968 = vmatpush1.xpose.msra.mxu0 0.0
        %969 = vmatprep.subr.mxu0 0.0
        %970 = vmatpush1.xpose.msra.mxu0 0.0
        %971 = vmatprep.subr.mxu0 0.0
        %972 = vmatpush1.xpose.msra.mxu0 0.0
        %973 = vmatprep.subr.mxu0 0.0
        %974 = vmatpush1.xpose.msra.mxu0 0.0
        %975 = vmatprep.subr.mxu0 0.0
        %976 = vmatpush1.xpose.msra.mxu0 0.0
        %977 = vmatprep.subr.mxu0 0.0
        %978 = vmatpush1.xpose.msra.mxu0 0.0
        %979 = vmatprep.subr.mxu0 0.0
        %980 = vmatpush1.xpose.msra.mxu0 0.0
        %981 = vmatprep.subr.mxu0 0.0
        %982 = vmatpush1.xpose.msra.mxu0 0.0
        %983 = vmatprep.subr.mxu0 0.0
        %984 = vmatpush1.xpose.msra.mxu0 0.0
        %985 = vmatprep.subr.mxu0 0.0
        %986 = vmatpush1.xpose.msra.mxu0 0.0
        %987 = vmatprep.subr.mxu0 0.0
        %988 = vmatpush1.xpose.msra.mxu0 0.0
        %989 = vmatprep.subr.mxu0 0.0
        %990 = vmatpush1.xpose.msra.mxu0 0.0
        %991 = vmatprep.subr.mxu0 0.0
        %992 = vmatpush1.xpose.msra.mxu0 0.0
        %993 = vmatprep.subr.mxu0 0.0
        %994 = vmatpush1.xpose.msra.mxu0 0.0
        %995 = vmatprep.subr.mxu0 0.0
        %996 = vmatpush1.xpose.msra.mxu0 0.0
        %997 = vmatprep.subr.mxu0 0.0
        %998 = vmatpush1.xpose.msra.mxu0 0.0
        %999 = vmatprep.subr.mxu0 0.0
        %1000 = vmatpush1.xpose.msra.mxu0 0.0
        %1001 = vmatprep.subr.mxu0 0.0
        %1002 = vmatpush1.xpose.msra.mxu0 0.0
        %1003 = vmatprep.subr.mxu0 0.0
        %1004 = vmatpush1.xpose.msra.mxu0 0.0
        %1005 = vmatprep.subr.mxu0 0.0
        %1006 = vmatpush1.xpose.msra.mxu0 0.0
        %1007 = vmatprep.subr.mxu0 0.0
        %1008 = vmatpush1.xpose.msra.mxu0 0.0
        %1009 = vmatprep.subr.mxu0 0.0
        %1010 = vmatpush1.xpose.msra.mxu0 0.0
        %1011 = vmatprep.subr.mxu0 0.0
        %1012 = vmatpush1.xpose.msra.mxu0 0.0
        %1013 = vmatprep.subr.mxu0 0.0
        %1014 = vmatpush1.xpose.msra.mxu0 0.0
        %1015 = vmatprep.subr.mxu0 0.0
        %1016 = vmatpush1.xpose.msra.mxu0 0.0
        %1017 = vmatprep.subr.mxu0 0.0
        %1018 = vmatpush1.xpose.msra.mxu0 0.0
        %1019 = vmatprep.subr.mxu0 0.0
        %1020 = vmatpush1.xpose.msra.mxu0 0.0
        %1021 = vmatprep.subr.mxu0 0.0
        %1022 = vmatpush1.xpose.msra.mxu0 0.0
        %1023 = vmatprep.subr.mxu0 0.0
        %1024 = vmatpush1.xpose.msra.mxu0 0.0
        %1025 = vmatprep.subr.mxu0 0.0
        %1026 = vmatpush1.xpose.msra.mxu0 0.0
        %1027 = vmatprep.subr.mxu0 0.0
        %1028 = vmatpush1.xpose.msra.mxu0 0.0
        %1029 = vmatprep.mubr.f32.mxu0 0.0
        %1030 = vmatmul.mubr.f32.gmra.mrb[0].mxu0 %v961
        %v1031 = vpop.f32.mrb[0].mxu0
        %v1032 = vadd.f32 0.0, %v1031
        %v1033 = vpop.f32.mrb[0].mxu0
        %1034 = vdwg.mxu0
        %1035 = vrot.lane.b32.xlu0 %v448, 120
        %v1036 = vpop.permute.xlu0 %1035
        %1037 = vrot.lane.b32.xlu0 %v538, 120
        %v1038 = vpop.permute.xlu0 %1037
        %v1039 = vsel %vm636, %v1036, 0
        %v1041 = vsel %vm636, %v1038, 0
        %1043 = vmatprep.subr.mxu0 0.0
        %1044 = vmatpush1.xpose.msra.mxu0 %v1041
        %1045 = vmatprep.subr.mxu0 0.0
        %1046 = vmatpush1.xpose.msra.mxu0 0.0
        %1047 = vmatprep.subr.mxu0 0.0
        %1048 = vmatpush1.xpose.msra.mxu0 0.0
        %1049 = vmatprep.subr.mxu0 0.0
        %1050 = vmatpush1.xpose.msra.mxu0 0.0
        %1051 = vmatprep.subr.mxu0 0.0
        %1052 = vmatpush1.xpose.msra.mxu0 0.0
        %1053 = vmatprep.subr.mxu0 0.0
        %1054 = vmatpush1.xpose.msra.mxu0 0.0
        %1055 = vmatprep.subr.mxu0 0.0
        %1056 = vmatpush1.xpose.msra.mxu0 0.0
        %1057 = vmatprep.subr.mxu0 0.0
        %1058 = vmatpush1.xpose.msra.mxu0 0.0
        %1059 = vmatprep.subr.mxu0 0.0
        %1060 = vmatpush1.xpose.msra.mxu0 0.0
        %1061 = vmatprep.subr.mxu0 0.0
        %1062 = vmatpush1.xpose.msra.mxu0 0.0
        %1063 = vmatprep.subr.mxu0 0.0
        %1064 = vmatpush1.xpose.msra.mxu0 0.0
        %1065 = vmatprep.subr.mxu0 0.0
        %1066 = vmatpush1.xpose.msra.mxu0 0.0
        %1067 = vmatprep.subr.mxu0 0.0
        %1068 = vmatpush1.xpose.msra.mxu0 0.0
        %1069 = vmatprep.subr.mxu0 0.0
        %1070 = vmatpush1.xpose.msra.mxu0 0.0
        %1071 = vmatprep.subr.mxu0 0.0
        %1072 = vmatpush1.xpose.msra.mxu0 0.0
        %1073 = vmatprep.subr.mxu0 0.0
        %1074 = vmatpush1.xpose.msra.mxu0 0.0
        %1075 = vmatprep.subr.mxu0 0.0
        %1076 = vmatpush1.xpose.msra.mxu0 0.0
        %1077 = vmatprep.subr.mxu0 0.0
        %1078 = vmatpush1.xpose.msra.mxu0 0.0
        %1079 = vmatprep.subr.mxu0 0.0
        %1080 = vmatpush1.xpose.msra.mxu0 0.0
        %1081 = vmatprep.subr.mxu0 0.0
        %1082 = vmatpush1.xpose.msra.mxu0 0.0
        %1083 = vmatprep.subr.mxu0 0.0
        %1084 = vmatpush1.xpose.msra.mxu0 0.0
        %1085 = vmatprep.subr.mxu0 0.0
        %1086 = vmatpush1.xpose.msra.mxu0 0.0
        %1087 = vmatprep.subr.mxu0 0.0
        %1088 = vmatpush1.xpose.msra.mxu0 0.0
        %1089 = vmatprep.subr.mxu0 0.0
        %1090 = vmatpush1.xpose.msra.mxu0 0.0
        %1091 = vmatprep.subr.mxu0 0.0
        %1092 = vmatpush1.xpose.msra.mxu0 0.0
        %1093 = vmatprep.subr.mxu0 0.0
        %1094 = vmatpush1.xpose.msra.mxu0 0.0
        %1095 = vmatprep.subr.mxu0 0.0
        %1096 = vmatpush1.xpose.msra.mxu0 0.0
        %1097 = vmatprep.subr.mxu0 0.0
        %1098 = vmatpush1.xpose.msra.mxu0 0.0
        %1099 = vmatprep.subr.mxu0 0.0
        %1100 = vmatpush1.xpose.msra.mxu0 0.0
        %1101 = vmatprep.subr.mxu0 0.0
        %1102 = vmatpush1.xpose.msra.mxu0 0.0
        %1103 = vmatprep.subr.mxu0 0.0
        %1104 = vmatpush1.xpose.msra.mxu0 0.0
        %1105 = vmatprep.subr.mxu0 0.0
        %1106 = vmatpush1.xpose.msra.mxu0 0.0
        %1107 = vmatprep.mubr.f32.mxu0 0.0
        %1108 = vmatmul.mubr.f32.gmra.mrb[0].mxu0 %v1039
        %v1109 = vpop.f32.mrb[0].mxu0
        %v1110 = vadd.f32 0.0, %v1109
        %v1111 = vpop.f32.mrb[0].mxu0
        %1112 = vdwg.mxu0
        %v1113 = vsel %vm636, %v1032, -inf
        %1114 = vmax.xlane.f32.xlu0 %v1113
        %v1115 = vpop.xlane.xlu0 %1114
        %v1116 = vsel %vm636, %v1110, -inf
        %1117 = vmax.xlane.f32.xlu0 %v1116
        %v1118 = vpop.xlane.xlu0 %1117
        %v1119 = vsub.f32 %v1032, %v1115
        %v1120 = vsub.f32 %v1110, %v1118
        %v1121 = vmul.f32 %v1119, 1.442695
        %v1122 = vpow.pop %v1121
        %v1123 = vmul.f32 %v1120, 1.442695
        %v1124 = vpow.pop %v1123
        %v1125 = vsel %vm636, %v1122, 0.0
        %1126 = vadd.xlane.f32.xlu0 %v1125
        %v1127 = vpop.xlane.xlu0 %1126
        %v1128 = vsel %vm636, %v1124, 0.0
        %1129 = vadd.xlane.f32.xlu0 %v1128
        %v1130 = vpop.xlane.xlu0 %1129
        %1132 = vrot.lane.b32.xlu0 %v623, 120
        %v1133 = vpop.permute.xlu0 %1132
        %v1136 = vsel %vm636, %v1122, 0
        %1138 = vmatprep.subr.mxu0 0.0
        %1139 = vmatpush1.msra.mxu0 %v1133
        %1140 = vmatprep.subr.mxu0 0.0
        %1141 = vmatpush1.msra.mxu0 0.0
        %1142 = vmatprep.subr.mxu0 0.0
        %1143 = vmatpush1.msra.mxu0 0.0
        %1144 = vmatprep.subr.mxu0 0.0
        %1145 = vmatpush1.msra.mxu0 0.0
        %1146 = vmatprep.subr.mxu0 0.0
        %1147 = vmatpush1.msra.mxu0 0.0
        %1148 = vmatprep.subr.mxu0 0.0
        %1149 = vmatpush1.msra.mxu0 0.0
        %1150 = vmatprep.subr.mxu0 0.0
        %1151 = vmatpush1.msra.mxu0 0.0
        %1152 = vmatprep.subr.mxu0 0.0
        %1153 = vmatpush1.msra.mxu0 0.0
        %1154 = vmatprep.subr.mxu0 0.0
        %1155 = vmatpush1.msra.mxu0 0.0
        %1156 = vmatprep.subr.mxu0 0.0
        %1157 = vmatpush1.msra.mxu0 0.0
        %1158 = vmatprep.subr.mxu0 0.0
        %1159 = vmatpush1.msra.mxu0 0.0
        %1160 = vmatprep.subr.mxu0 0.0
        %1161 = vmatpush1.msra.mxu0 0.0
        %1162 = vmatprep.subr.mxu0 0.0
        %1163 = vmatpush1.msra.mxu0 0.0
        %1164 = vmatprep.subr.mxu0 0.0
        %1165 = vmatpush1.msra.mxu0 0.0
        %1166 = vmatprep.subr.mxu0 0.0
        %1167 = vmatpush1.msra.mxu0 0.0
        %1168 = vmatprep.subr.mxu0 0.0
        %1169 = vmatpush1.msra.mxu0 0.0
        %1170 = vmatprep.subr.mxu0 0.0
        %1171 = vmatpush1.msra.mxu0 0.0
        %1172 = vmatprep.subr.mxu0 0.0
        %1173 = vmatpush1.msra.mxu0 0.0
        %1174 = vmatprep.subr.mxu0 0.0
        %1175 = vmatpush1.msra.mxu0 0.0
        %1176 = vmatprep.subr.mxu0 0.0
        %1177 = vmatpush1.msra.mxu0 0.0
        %1178 = vmatprep.subr.mxu0 0.0
        %1179 = vmatpush1.msra.mxu0 0.0
        %1180 = vmatprep.subr.mxu0 0.0
        %1181 = vmatpush1.msra.mxu0 0.0
        %1182 = vmatprep.subr.mxu0 0.0
        %1183 = vmatpush1.msra.mxu0 0.0
        %1184 = vmatprep.subr.mxu0 0.0
        %1185 = vmatpush1.msra.mxu0 0.0
        %1186 = vmatprep.subr.mxu0 0.0
        %1187 = vmatpush1.msra.mxu0 0.0
        %1188 = vmatprep.subr.mxu0 0.0
        %1189 = vmatpush1.msra.mxu0 0.0
        %1190 = vmatprep.subr.mxu0 0.0
        %1191 = vmatpush1.msra.mxu0 0.0
        %1192 = vmatprep.subr.mxu0 0.0
        %1193 = vmatpush1.msra.mxu0 0.0
        %1194 = vmatprep.subr.mxu0 0.0
        %1195 = vmatpush1.msra.mxu0 0.0
        %1196 = vmatprep.subr.mxu0 0.0
        %1197 = vmatpush1.msra.mxu0 0.0
        %1198 = vmatprep.subr.mxu0 0.0
        %1199 = vmatpush1.msra.mxu0 0.0
        %1200 = vmatprep.subr.mxu0 0.0
        %1201 = vmatpush1.msra.mxu0 0.0
        %1202 = vmatprep.mubr.f32.mxu0 0.0
        %1203 = vmatmul.mubr.f32.gmra.mrb[0].mxu0 %v1136
        %v1204 = vpop.f32.mrb[0].mxu0
        %v1205 = vadd.f32 0.0, %v1204
        %v1206 = vpop.f32.mrb[0].mxu0
        %1207 = vdwg.mxu0
        %1209 = vrot.lane.b32.xlu0 %v628, 120
        %v1210 = vpop.permute.xlu0 %1209
        %v1213 = vsel %vm636, %v1124, 0
        %1215 = vmatprep.subr.mxu0 0.0
        %1216 = vmatpush1.msra.mxu0 %v1210
        %1217 = vmatprep.subr.mxu0 0.0
        %1218 = vmatpush1.msra.mxu0 0.0
        %1219 = vmatprep.subr.mxu0 0.0
        %1220 = vmatpush1.msra.mxu0 0.0
        %1221 = vmatprep.subr.mxu0 0.0
        %1222 = vmatpush1.msra.mxu0 0.0
        %1223 = vmatprep.subr.mxu0 0.0
        %1224 = vmatpush1.msra.mxu0 0.0
        %1225 = vmatprep.subr.mxu0 0.0
        %1226 = vmatpush1.msra.mxu0 0.0
        %1227 = vmatprep.subr.mxu0 0.0
        %1228 = vmatpush1.msra.mxu0 0.0
        %1229 = vmatprep.subr.mxu0 0.0
        %1230 = vmatpush1.msra.mxu0 0.0
        %1231 = vmatprep.subr.mxu0 0.0
        %1232 = vmatpush1.msra.mxu0 0.0
        %1233 = vmatprep.subr.mxu0 0.0
        %1234 = vmatpush1.msra.mxu0 0.0
        %1235 = vmatprep.subr.mxu0 0.0
        %1236 = vmatpush1.msra.mxu0 0.0
        %1237 = vmatprep.subr.mxu0 0.0
        %1238 = vmatpush1.msra.mxu0 0.0
        %1239 = vmatprep.subr.mxu0 0.0
        %1240 = vmatpush1.msra.mxu0 0.0
        %1241 = vmatprep.subr.mxu0 0.0
        %1242 = vmatpush1.msra.mxu0 0.0
        %1243 = vmatprep.subr.mxu0 0.0
        %1244 = vmatpush1.msra.mxu0 0.0
        %1245 = vmatprep.subr.mxu0 0.0
        %1246 = vmatpush1.msra.mxu0 0.0
        %1247 = vmatprep.subr.mxu0 0.0
        %1248 = vmatpush1.msra.mxu0 0.0
        %1249 = vmatprep.subr.mxu0 0.0
        %1250 = vmatpush1.msra.mxu0 0.0
        %1251 = vmatprep.subr.mxu0 0.0
        %1252 = vmatpush1.msra.mxu0 0.0
        %1253 = vmatprep.subr.mxu0 0.0
        %1254 = vmatpush1.msra.mxu0 0.0
        %1255 = vmatprep.subr.mxu0 0.0
        %1256 = vmatpush1.msra.mxu0 0.0
        %1257 = vmatprep.subr.mxu0 0.0
        %1258 = vmatpush1.msra.mxu0 0.0
        %1259 = vmatprep.subr.mxu0 0.0
        %1260 = vmatpush1.msra.mxu0 0.0
        %1261 = vmatprep.subr.mxu0 0.0
        %1262 = vmatpush1.msra.mxu0 0.0
        %1263 = vmatprep.subr.mxu0 0.0
        %1264 = vmatpush1.msra.mxu0 0.0
        %1265 = vmatprep.subr.mxu0 0.0
        %1266 = vmatpush1.msra.mxu0 0.0
        %1267 = vmatprep.subr.mxu0 0.0
        %1268 = vmatpush1.msra.mxu0 0.0
        %1269 = vmatprep.subr.mxu0 0.0
        %1270 = vmatpush1.msra.mxu0 0.0
        %1271 = vmatprep.subr.mxu0 0.0
        %1272 = vmatpush1.msra.mxu0 0.0
        %1273 = vmatprep.subr.mxu0 0.0
        %1274 = vmatpush1.msra.mxu0 0.0
        %1275 = vmatprep.subr.mxu0 0.0
        %1276 = vmatpush1.msra.mxu0 0.0
        %1277 = vmatprep.subr.mxu0 0.0
        %1278 = vmatpush1.msra.mxu0 0.0
        %1279 = vmatprep.mubr.f32.mxu0 0.0
        %1280 = vmatmul.mubr.f32.gmra.mrb[0].mxu0 %v1213
        %v1281 = vpop.f32.mrb[0].mxu0
        %v1282 = vadd.f32 0.0, %v1281
        %v1283 = vpop.f32.mrb[0].mxu0
        %1284 = vdwg.mxu0
        %v1285 = vrcp.pop %v1127
        %v1286 = vrcp.pop %v1130
        %v1287 = vmul.f32 %v1205, %v1285
        %v1288 = vmul.f32 %v1282, %v1286
        %v1290 = vsel %vm636, %v1287, 0
        %v1293 = vsel %vm636, %v1288, 0
        %1295 = vmatprep.subr.mxu0 0.0
        %1296 = vmatpush1.msra.mxu0 %v633
        %1297 = vmatprep.subr.mxu0 0.0
        %1298 = vmatpush1.msra.mxu0 0.0
        %1299 = vmatprep.subr.mxu0 0.0
        %1300 = vmatpush1.msra.mxu0 0.0
        %1301 = vmatprep.subr.mxu0 0.0
        %1302 = vmatpush1.msra.mxu0 0.0
        %1303 = vmatprep.subr.mxu0 0.0
        %1304 = vmatpush1.msra.mxu0 0.0
        %1305 = vmatprep.subr.mxu0 0.0
        %1306 = vmatpush1.msra.mxu0 0.0
        %1307 = vmatprep.subr.mxu0 0.0
        %1308 = vmatpush1.msra.mxu0 0.0
        %1309 = vmatprep.subr.mxu0 0.0
        %1310 = vmatpush1.msra.mxu0 0.0
        %1311 = vmatprep.subr.mxu0 0.0
        %1312 = vmatpush1.msra.mxu0 0.0
        %1313 = vmatprep.subr.mxu0 0.0
        %1314 = vmatpush1.msra.mxu0 0.0
        %1315 = vmatprep.subr.mxu0 0.0
        %1316 = vmatpush1.msra.mxu0 0.0
        %1317 = vmatprep.subr.mxu0 0.0
        %1318 = vmatpush1.msra.mxu0 0.0
        %1319 = vmatprep.subr.mxu0 0.0
        %1320 = vmatpush1.msra.mxu0 0.0
        %1321 = vmatprep.subr.mxu0 0.0
        %1322 = vmatpush1.msra.mxu0 0.0
        %1323 = vmatprep.subr.mxu0 0.0
        %1324 = vmatpush1.msra.mxu0 0.0
        %1325 = vmatprep.subr.mxu0 0.0
        %1326 = vmatpush1.msra.mxu0 0.0
        %1327 = vmatprep.subr.mxu0 0.0
        %1328 = vmatpush1.msra.mxu0 0.0
        %1329 = vmatprep.subr.mxu0 0.0
        %1330 = vmatpush1.msra.mxu0 0.0
        %1331 = vmatprep.subr.mxu0 0.0
        %1332 = vmatpush1.msra.mxu0 0.0
        %1333 = vmatprep.subr.mxu0 0.0
        %1334 = vmatpush1.msra.mxu0 0.0
        %1335 = vmatprep.subr.mxu0 0.0
        %1336 = vmatpush1.msra.mxu0 0.0
        %1337 = vmatprep.subr.mxu0 0.0
        %1338 = vmatpush1.msra.mxu0 0.0
        %1339 = vmatprep.subr.mxu0 0.0
        %1340 = vmatpush1.msra.mxu0 0.0
        %1341 = vmatprep.subr.mxu0 0.0
        %1342 = vmatpush1.msra.mxu0 0.0
        %1343 = vmatprep.subr.mxu0 0.0
        %1344 = vmatpush1.msra.mxu0 0.0
        %1345 = vmatprep.subr.mxu0 0.0
        %1346 = vmatpush1.msra.mxu0 0.0
        %1347 = vmatprep.subr.mxu0 0.0
        %1348 = vmatpush1.msra.mxu0 0.0
        %1349 = vmatprep.subr.mxu0 0.0
        %1350 = vmatpush1.msra.mxu0 0.0
        %1351 = vmatprep.subr.mxu0 0.0
        %1352 = vmatpush1.msra.mxu0 0.0
        %1353 = vmatprep.subr.mxu0 0.0
        %1354 = vmatpush1.msra.mxu0 0.0
        %1355 = vmatprep.subr.mxu0 0.0
        %1356 = vmatpush1.msra.mxu0 0.0
        %1357 = vmatprep.subr.mxu0 0.0
        %1358 = vmatpush1.msra.mxu0 0.0
        %1359 = vmatprep.mubr.f32.mxu0 0.0
        %1360 = vmatmul.mubr.f32.gmra.mrb[0].mxu0 %v1290
        %v1361 = vpop.f32.mrb[0].mxu0
        %v1362 = vadd.f32 0.0, %v1361
        %v1363 = vpop.f32.mrb[0].mxu0
        %1364 = vmatprep.mubr.f32.mxu0 0.0
        %1365 = vmatmul.mubr.f32.gmra.mrb[0].mxu0 %v1293
        %v1366 = vpop.f32.mrb[0].mxu0
        %v1367 = vadd.f32 0.0, %v1366
        %v1368 = vpop.f32.mrb[0].mxu0
        %1369 = vdwg.mxu0
        %v1371 = vsel %vm636, %v955, 0
        %v1374 = vsel %vm636, %v956, 0
        %1376 = vmatprep.subr.mxu0 0.0
        %1377 = vmatpush1.msra.mxu0 %v632
        %1378 = vmatprep.subr.mxu0 0.0
        %1379 = vmatpush1.msra.mxu0 0.0
        %1380 = vmatprep.subr.mxu0 0.0
        %1381 = vmatpush1.msra.mxu0 0.0
        %1382 = vmatprep.subr.mxu0 0.0
        %1383 = vmatpush1.msra.mxu0 0.0
        %1384 = vmatprep.subr.mxu0 0.0
        %1385 = vmatpush1.msra.mxu0 0.0
        %1386 = vmatprep.subr.mxu0 0.0
        %1387 = vmatpush1.msra.mxu0 0.0
        %1388 = vmatprep.subr.mxu0 0.0
        %1389 = vmatpush1.msra.mxu0 0.0
        %1390 = vmatprep.subr.mxu0 0.0
        %1391 = vmatpush1.msra.mxu0 0.0
        %1392 = vmatprep.subr.mxu0 0.0
        %1393 = vmatpush1.msra.mxu0 0.0
        %1394 = vmatprep.subr.mxu0 0.0
        %1395 = vmatpush1.msra.mxu0 0.0
        %1396 = vmatprep.subr.mxu0 0.0
        %1397 = vmatpush1.msra.mxu0 0.0
        %1398 = vmatprep.subr.mxu0 0.0
        %1399 = vmatpush1.msra.mxu0 0.0
        %1400 = vmatprep.subr.mxu0 0.0
        %1401 = vmatpush1.msra.mxu0 0.0
        %1402 = vmatprep.subr.mxu0 0.0
        %1403 = vmatpush1.msra.mxu0 0.0
        %1404 = vmatprep.subr.mxu0 0.0
        %1405 = vmatpush1.msra.mxu0 0.0
        %1406 = vmatprep.subr.mxu0 0.0
        %1407 = vmatpush1.msra.mxu0 0.0
        %1408 = vmatprep.subr.mxu0 0.0
        %1409 = vmatpush1.msra.mxu0 0.0
        %1410 = vmatprep.subr.mxu0 0.0
        %1411 = vmatpush1.msra.mxu0 0.0
        %1412 = vmatprep.subr.mxu0 0.0
        %1413 = vmatpush1.msra.mxu0 0.0
        %1414 = vmatprep.subr.mxu0 0.0
        %1415 = vmatpush1.msra.mxu0 0.0
        %1416 = vmatprep.subr.mxu0 0.0
        %1417 = vmatpush1.msra.mxu0 0.0
        %1418 = vmatprep.subr.mxu0 0.0
        %1419 = vmatpush1.msra.mxu0 0.0
        %1420 = vmatprep.subr.mxu0 0.0
        %1421 = vmatpush1.msra.mxu0 0.0
        %1422 = vmatprep.subr.mxu0 0.0
        %1423 = vmatpush1.msra.mxu0 0.0
        %1424 = vmatprep.subr.mxu0 0.0
        %1425 = vmatpush1.msra.mxu0 0.0
        %1426 = vmatprep.subr.mxu0 0.0
        %1427 = vmatpush1.msra.mxu0 0.0
        %1428 = vmatprep.subr.mxu0 0.0
        %1429 = vmatpush1.msra.mxu0 0.0
        %1430 = vmatprep.subr.mxu0 0.0
        %1431 = vmatpush1.msra.mxu0 0.0
        %1432 = vmatprep.subr.mxu0 0.0
        %1433 = vmatpush1.msra.mxu0 0.0
        %1434 = vmatprep.subr.mxu0 0.0
        %1435 = vmatpush1.msra.mxu0 0.0
        %1436 = vmatprep.subr.mxu0 0.0
        %1437 = vmatpush1.msra.mxu0 0.0
        %1438 = vmatprep.subr.mxu0 0.0
        %1439 = vmatpush1.msra.mxu0 0.0
        %1440 = vmatprep.mubr.f32.mxu0 0.0
        %1441 = vmatmul.mubr.f32.gmra.mrb[0].mxu0 %v1371
        %v1442 = vpop.f32.mrb[0].mxu0
        %v1443 = vadd.f32 %v1362, %v1442
        %v1444 = vpop.f32.mrb[0].mxu0
        %1445 = vmatprep.mubr.f32.mxu0 0.0
        %1446 = vmatmul.mubr.f32.gmra.mrb[0].mxu0 %v1374
        %v1447 = vpop.f32.mrb[0].mxu0
        %v1448 = vadd.f32 %v1367, %v1447
        %v1449 = vpop.f32.mrb[0].mxu0
        %1450 = vdwg.mxu0
        %1451 = vrot.lane.b32.xlu0 %v443, 112
        %v1452 = vpop.permute.xlu0 %1451
        %1453 = vrot.lane.b32.xlu0 %v533, 112
        %v1454 = vpop.permute.xlu0 %1453
        %v1455 = vsel %vm636, %v1452, 0
        %v1457 = vsel %vm636, %v1454, 0
        %1459 = vmatprep.subr.mxu0 0.0
        %1460 = vmatpush1.xpose.msra.mxu0 %v1457
        %1461 = vmatprep.subr.mxu0 0.0
        %1462 = vmatpush1.xpose.msra.mxu0 0.0
        %1463 = vmatprep.subr.mxu0 0.0
        %1464 = vmatpush1.xpose.msra.mxu0 0.0
        %1465 = vmatprep.subr.mxu0 0.0
        %1466 = vmatpush1.xpose.msra.mxu0 0.0
        %1467 = vmatprep.subr.mxu0 0.0
        %1468 = vmatpush1.xpose.msra.mxu0 0.0
        %1469 = vmatprep.subr.mxu0 0.0
        %1470 = vmatpush1.xpose.msra.mxu0 0.0
        %1471 = vmatprep.subr.mxu0 0.0
        %1472 = vmatpush1.xpose.msra.mxu0 0.0
        %1473 = vmatprep.subr.mxu0 0.0
        %1474 = vmatpush1.xpose.msra.mxu0 0.0
        %1475 = vmatprep.subr.mxu0 0.0
        %1476 = vmatpush1.xpose.msra.mxu0 0.0
        %1477 = vmatprep.subr.mxu0 0.0
        %1478 = vmatpush1.xpose.msra.mxu0 0.0
        %1479 = vmatprep.subr.mxu0 0.0
        %1480 = vmatpush1.xpose.msra.mxu0 0.0
        %1481 = vmatprep.subr.mxu0 0.0
        %1482 = vmatpush1.xpose.msra.mxu0 0.0
        %1483 = vmatprep.subr.mxu0 0.0
        %1484 = vmatpush1.xpose.msra.mxu0 0.0
        %1485 = vmatprep.subr.mxu0 0.0
        %1486 = vmatpush1.xpose.msra.mxu0 0.0
        %1487 = vmatprep.subr.mxu0 0.0
        %1488 = vmatpush1.xpose.msra.mxu0 0.0
        %1489 = vmatprep.subr.mxu0 0.0
        %1490 = vmatpush1.xpose.msra.mxu0 0.0
        %1491 = vmatprep.subr.mxu0 0.0
        %1492 = vmatpush1.xpose.msra.mxu0 0.0
        %1493 = vmatprep.subr.mxu0 0.0
        %1494 = vmatpush1.xpose.msra.mxu0 0.0
        %1495 = vmatprep.subr.mxu0 0.0
        %1496 = vmatpush1.xpose.msra.mxu0 0.0
        %1497 = vmatprep.subr.mxu0 0.0
        %1498 = vmatpush1.xpose.msra.mxu0 0.0
        %1499 = vmatprep.subr.mxu0 0.0
        %1500 = vmatpush1.xpose.msra.mxu0 0.0
        %1501 = vmatprep.subr.mxu0 0.0
        %1502 = vmatpush1.xpose.msra.mxu0 0.0
        %1503 = vmatprep.subr.mxu0 0.0
        %1504 = vmatpush1.xpose.msra.mxu0 0.0
        %1505 = vmatprep.subr.mxu0 0.0
        %1506 = vmatpush1.xpose.msra.mxu0 0.0
        %1507 = vmatprep.subr.mxu0 0.0
        %1508 = vmatpush1.xpose.msra.mxu0 0.0
        %1509 = vmatprep.subr.mxu0 0.0
        %1510 = vmatpush1.xpose.msra.mxu0 0.0
        %1511 = vmatprep.subr.mxu0 0.0
        %1512 = vmatpush1.xpose.msra.mxu0 0.0
        %1513 = vmatprep.subr.mxu0 0.0
        %1514 = vmatpush1.xpose.msra.mxu0 0.0
        %1515 = vmatprep.subr.mxu0 0.0
        %1516 = vmatpush1.xpose.msra.mxu0 0.0
        %1517 = vmatprep.subr.mxu0 0.0
        %1518 = vmatpush1.xpose.msra.mxu0 0.0
        %1519 = vmatprep.subr.mxu0 0.0
        %1520 = vmatpush1.xpose.msra.mxu0 0.0
        %1521 = vmatprep.subr.mxu0 0.0
        %1522 = vmatpush1.xpose.msra.mxu0 0.0
        %1523 = vmatprep.mubr.f32.mxu0 0.0
        %1524 = vmatmul.mubr.f32.gmra.mrb[0].mxu0 %v1455
        %v1525 = vpop.f32.mrb[0].mxu0
        %v1526 = vadd.f32 0.0, %v1525
        %v1527 = vpop.f32.mrb[0].mxu0
        %1528 = vdwg.mxu0
        %1529 = vrot.lane.b32.xlu0 %v448, 112
        %v1530 = vpop.permute.xlu0 %1529
        %1531 = vrot.lane.b32.xlu0 %v538, 112
        %v1532 = vpop.permute.xlu0 %1531
        %v1533 = vsel %vm636, %v1530, 0
        %v1535 = vsel %vm636, %v1532, 0
        %1537 = vmatprep.subr.mxu0 0.0
        %1538 = vmatpush1.xpose.msra.mxu0 %v1535
        %1539 = vmatprep.subr.mxu0 0.0
        %1540 = vmatpush1.xpose.msra.mxu0 0.0
        %1541 = vmatprep.subr.mxu0 0.0
        %1542 = vmatpush1.xpose.msra.mxu0 0.0
        %1543 = vmatprep.subr.mxu0 0.0
        %1544 = vmatpush1.xpose.msra.mxu0 0.0
        %1545 = vmatprep.subr.mxu0 0.0
        %1546 = vmatpush1.xpose.msra.mxu0 0.0
        %1547 = vmatprep.subr.mxu0 0.0
        %1548 = vmatpush1.xpose.msra.mxu0 0.0
        %1549 = vmatprep.subr.mxu0 0.0
        %1550 = vmatpush1.xpose.msra.mxu0 0.0
        %1551 = vmatprep.subr.mxu0 0.0
        %1552 = vmatpush1.xpose.msra.mxu0 0.0
        %1553 = vmatprep.subr.mxu0 0.0
        %1554 = vmatpush1.xpose.msra.mxu0 0.0
        %1555 = vmatprep.subr.mxu0 0.0
        %1556 = vmatpush1.xpose.msra.mxu0 0.0
        %1557 = vmatprep.subr.mxu0 0.0
        %1558 = vmatpush1.xpose.msra.mxu0 0.0
        %1559 = vmatprep.subr.mxu0 0.0
        %1560 = vmatpush1.xpose.msra.mxu0 0.0
        %1561 = vmatprep.subr.mxu0 0.0
        %1562 = vmatpush1.xpose.msra.mxu0 0.0
        %1563 = vmatprep.subr.mxu0 0.0
        %1564 = vmatpush1.xpose.msra.mxu0 0.0
        %1565 = vmatprep.subr.mxu0 0.0
        %1566 = vmatpush1.xpose.msra.mxu0 0.0
        %1567 = vmatprep.subr.mxu0 0.0
        %1568 = vmatpush1.xpose.msra.mxu0 0.0
        %1569 = vmatprep.subr.mxu0 0.0
        %1570 = vmatpush1.xpose.msra.mxu0 0.0
        %1571 = vmatprep.subr.mxu0 0.0
        %1572 = vmatpush1.xpose.msra.mxu0 0.0
        %1573 = vmatprep.subr.mxu0 0.0
        %1574 = vmatpush1.xpose.msra.mxu0 0.0
        %1575 = vmatprep.subr.mxu0 0.0
        %1576 = vmatpush1.xpose.msra.mxu0 0.0
        %1577 = vmatprep.subr.mxu0 0.0
        %1578 = vmatpush1.xpose.msra.mxu0 0.0
        %1579 = vmatprep.subr.mxu0 0.0
        %1580 = vmatpush1.xpose.msra.mxu0 0.0
        %1581 = vmatprep.subr.mxu0 0.0
        %1582 = vmatpush1.xpose.msra.mxu0 0.0
        %1583 = vmatprep.subr.mxu0 0.0
        %1584 = vmatpush1.xpose.msra.mxu0 0.0
        %1585 = vmatprep.subr.mxu0 0.0
        %1586 = vmatpush1.xpose.msra.mxu0 0.0
        %1587 = vmatprep.subr.mxu0 0.0
        %1588 = vmatpush1.xpose.msra.mxu0 0.0
        %1589 = vmatprep.subr.mxu0 0.0
        %1590 = vmatpush1.xpose.msra.mxu0 0.0
        %1591 = vmatprep.subr.mxu0 0.0
        %1592 = vmatpush1.xpose.msra.mxu0 0.0
        %1593 = vmatprep.subr.mxu0 0.0
        %1594 = vmatpush1.xpose.msra.mxu0 0.0
        %1595 = vmatprep.subr.mxu0 0.0
        %1596 = vmatpush1.xpose.msra.mxu0 0.0
        %1597 = vmatprep.subr.mxu0 0.0
        %1598 = vmatpush1.xpose.msra.mxu0 0.0
        %1599 = vmatprep.subr.mxu0 0.0
        %1600 = vmatpush1.xpose.msra.mxu0 0.0
        %1601 = vmatprep.mubr.f32.mxu0 0.0
        %1602 = vmatmul.mubr.f32.gmra.mrb[0].mxu0 %v1533
        %v1603 = vpop.f32.mrb[0].mxu0
        %v1604 = vadd.f32 0.0, %v1603
        %v1605 = vpop.f32.mrb[0].mxu0
        %1606 = vdwg.mxu0
        %v1607 = vsel %vm636, %v1526, -inf
        %1608 = vmax.xlane.f32.xlu0 %v1607
        %v1609 = vpop.xlane.xlu0 %1608
        %v1610 = vsel %vm636, %v1604, -inf
        %1611 = vmax.xlane.f32.xlu0 %v1610
        %v1612 = vpop.xlane.xlu0 %1611
        %v1613 = vsub.f32 %v1526, %v1609
        %v1614 = vsub.f32 %v1604, %v1612
        %v1615 = vmul.f32 %v1613, 1.442695
        %v1616 = vpow.pop %v1615
        %v1617 = vmul.f32 %v1614, 1.442695
        %v1618 = vpow.pop %v1617
        %v1619 = vsel %vm636, %v1616, 0.0
        %1620 = vadd.xlane.f32.xlu0 %v1619
        %v1621 = vpop.xlane.xlu0 %1620
        %v1622 = vsel %vm636, %v1618, 0.0
        %1623 = vadd.xlane.f32.xlu0 %v1622
        %v1624 = vpop.xlane.xlu0 %1623
        %1625 = vrot.lane.b32.xlu0 %v623, 112
        %v1626 = vpop.permute.xlu0 %1625
        %v1629 = vsel %vm636, %v1616, 0
        %1631 = vmatprep.subr.mxu0 0.0
        %1632 = vmatpush1.msra.mxu0 %v1626
        %1633 = vmatprep.subr.mxu0 0.0
        %1634 = vmatpush1.msra.mxu0 0.0
        %1635 = vmatprep.subr.mxu0 0.0
        %1636 = vmatpush1.msra.mxu0 0.0
        %1637 = vmatprep.subr.mxu0 0.0
        %1638 = vmatpush1.msra.mxu0 0.0
        %1639 = vmatprep.subr.mxu0 0.0
        %1640 = vmatpush1.msra.mxu0 0.0
        %1641 = vmatprep.subr.mxu0 0.0
        %1642 = vmatpush1.msra.mxu0 0.0
        %1643 = vmatprep.subr.mxu0 0.0
        %1644 = vmatpush1.msra.mxu0 0.0
        %1645 = vmatprep.subr.mxu0 0.0
        %1646 = vmatpush1.msra.mxu0 0.0
        %1647 = vmatprep.subr.mxu0 0.0
        %1648 = vmatpush1.msra.mxu0 0.0
        %1649 = vmatprep.subr.mxu0 0.0
        %1650 = vmatpush1.msra.mxu0 0.0
        %1651 = vmatprep.subr.mxu0 0.0
        %1652 = vmatpush1.msra.mxu0 0.0
        %1653 = vmatprep.subr.mxu0 0.0
        %1654 = vmatpush1.msra.mxu0 0.0
        %1655 = vmatprep.subr.mxu0 0.0
        %1656 = vmatpush1.msra.mxu0 0.0
        %1657 = vmatprep.subr.mxu0 0.0
        %1658 = vmatpush1.msra.mxu0 0.0
        %1659 = vmatprep.subr.mxu0 0.0
        %1660 = vmatpush1.msra.mxu0 0.0
        %1661 = vmatprep.subr.mxu0 0.0
        %1662 = vmatpush1.msra.mxu0 0.0
        %1663 = vmatprep.subr.mxu0 0.0
        %1664 = vmatpush1.msra.mxu0 0.0
        %1665 = vmatprep.subr.mxu0 0.0
        %1666 = vmatpush1.msra.mxu0 0.0
        %1667 = vmatprep.subr.mxu0 0.0
        %1668 = vmatpush1.msra.mxu0 0.0
        %1669 = vmatprep.subr.mxu0 0.0
        %1670 = vmatpush1.msra.mxu0 0.0
        %1671 = vmatprep.subr.mxu0 0.0
        %1672 = vmatpush1.msra.mxu0 0.0
        %1673 = vmatprep.subr.mxu0 0.0
        %1674 = vmatpush1.msra.mxu0 0.0
        %1675 = vmatprep.subr.mxu0 0.0
        %1676 = vmatpush1.msra.mxu0 0.0
        %1677 = vmatprep.subr.mxu0 0.0
        %1678 = vmatpush1.msra.mxu0 0.0
        %1679 = vmatprep.subr.mxu0 0.0
        %1680 = vmatpush1.msra.mxu0 0.0
        %1681 = vmatprep.subr.mxu0 0.0
        %1682 = vmatpush1.msra.mxu0 0.0
        %1683 = vmatprep.subr.mxu0 0.0
        %1684 = vmatpush1.msra.mxu0 0.0
        %1685 = vmatprep.subr.mxu0 0.0
        %1686 = vmatpush1.msra.mxu0 0.0
        %1687 = vmatprep.subr.mxu0 0.0
        %1688 = vmatpush1.msra.mxu0 0.0
        %1689 = vmatprep.subr.mxu0 0.0
        %1690 = vmatpush1.msra.mxu0 0.0
        %1691 = vmatprep.subr.mxu0 0.0
        %1692 = vmatpush1.msra.mxu0 0.0
        %1693 = vmatprep.subr.mxu0 0.0
        %1694 = vmatpush1.msra.mxu0 0.0
        %1695 = vmatprep.mubr.f32.mxu0 0.0
        %1696 = vmatmul.mubr.f32.gmra.mrb[0].mxu0 %v1629
        %v1697 = vpop.f32.mrb[0].mxu0
        %v1698 = vadd.f32 0.0, %v1697
        %v1699 = vpop.f32.mrb[0].mxu0
        %1700 = vdwg.mxu0
        %1701 = vrot.lane.b32.xlu0 %v628, 112
        %v1702 = vpop.permute.xlu0 %1701
        %v1705 = vsel %vm636, %v1618, 0
        %1707 = vmatprep.subr.mxu0 0.0
        %1708 = vmatpush1.msra.mxu0 %v1702
        %1709 = vmatprep.subr.mxu0 0.0
        %1710 = vmatpush1.msra.mxu0 0.0
        %1711 = vmatprep.subr.mxu0 0.0
        %1712 = vmatpush1.msra.mxu0 0.0
        %1713 = vmatprep.subr.mxu0 0.0
        %1714 = vmatpush1.msra.mxu0 0.0
        %1715 = vmatprep.subr.mxu0 0.0
        %1716 = vmatpush1.msra.mxu0 0.0
        %1717 = vmatprep.subr.mxu0 0.0
        %1718 = vmatpush1.msra.mxu0 0.0
        %1719 = vmatprep.subr.mxu0 0.0
        %1720 = vmatpush1.msra.mxu0 0.0
        %1721 = vmatprep.subr.mxu0 0.0
        %1722 = vmatpush1.msra.mxu0 0.0
        %1723 = vmatprep.subr.mxu0 0.0
        %1724 = vmatpush1.msra.mxu0 0.0
        %1725 = vmatprep.subr.mxu0 0.0
        %1726 = vmatpush1.msra.mxu0 0.0
        %1727 = vmatprep.subr.mxu0 0.0
        %1728 = vmatpush1.msra.mxu0 0.0
        %1729 = vmatprep.subr.mxu0 0.0
        %1730 = vmatpush1.msra.mxu0 0.0
        %1731 = vmatprep.subr.mxu0 0.0
        %1732 = vmatpush1.msra.mxu0 0.0
        %1733 = vmatprep.subr.mxu0 0.0
        %1734 = vmatpush1.msra.mxu0 0.0
        %1735 = vmatprep.subr.mxu0 0.0
        %1736 = vmatpush1.msra.mxu0 0.0
        %1737 = vmatprep.subr.mxu0 0.0
        %1738 = vmatpush1.msra.mxu0 0.0
        %1739 = vmatprep.subr.mxu0 0.0
        %1740 = vmatpush1.msra.mxu0 0.0
        %1741 = vmatprep.subr.mxu0 0.0
        %1742 = vmatpush1.msra.mxu0 0.0
        %1743 = vmatprep.subr.mxu0 0.0
        %1744 = vmatpush1.msra.mxu0 0.0
        %1745 = vmatprep.subr.mxu0 0.0
        %1746 = vmatpush1.msra.mxu0 0.0
        %1747 = vmatprep.subr.mxu0 0.0
        %1748 = vmatpush1.msra.mxu0 0.0
        %1749 = vmatprep.subr.mxu0 0.0
        %1750 = vmatpush1.msra.mxu0 0.0
        %1751 = vmatprep.subr.mxu0 0.0
        %1752 = vmatpush1.msra.mxu0 0.0
        %1753 = vmatprep.subr.mxu0 0.0
        %1754 = vmatpush1.msra.mxu0 0.0
        %1755 = vmatprep.subr.mxu0 0.0
        %1756 = vmatpush1.msra.mxu0 0.0
        %1757 = vmatprep.subr.mxu0 0.0
        %1758 = vmatpush1.msra.mxu0 0.0
        %1759 = vmatprep.subr.mxu0 0.0
        %1760 = vmatpush1.msra.mxu0 0.0
        %1761 = vmatprep.subr.mxu0 0.0
        %1762 = vmatpush1.msra.mxu0 0.0
        %1763 = vmatprep.subr.mxu0 0.0
        %1764 = vmatpush1.msra.mxu0 0.0
        %1765 = vmatprep.subr.mxu0 0.0
        %1766 = vmatpush1.msra.mxu0 0.0
        %1767 = vmatprep.subr.mxu0 0.0
        %1768 = vmatpush1.msra.mxu0 0.0
        %1769 = vmatprep.subr.mxu0 0.0
        %1770 = vmatpush1.msra.mxu0 0.0
        %1771 = vmatprep.mubr.f32.mxu0 0.0
        %1772 = vmatmul.mubr.f32.gmra.mrb[0].mxu0 %v1705
        %v1773 = vpop.f32.mrb[0].mxu0
        %v1774 = vadd.f32 0.0, %v1773
        %v1775 = vpop.f32.mrb[0].mxu0
        %1776 = vdwg.mxu0
        %v1777 = vrcp.pop %v1621
        %v1778 = vrcp.pop %v1624
        %v1779 = vmul.f32 %v1698, %v1777
        %v1780 = vmul.f32 %v1774, %v1778
        %v1782 = vsel %vm636, %v1779, 0
        %v1785 = vsel %vm636, %v1780, 0
        %1787 = vmatprep.subr.mxu0 0.0
        %1788 = vmatpush1.msra.mxu0 %v634
        %1789 = vmatprep.subr.mxu0 0.0
        %1790 = vmatpush1.msra.mxu0 0.0
        %1791 = vmatprep.subr.mxu0 0.0
        %1792 = vmatpush1.msra.mxu0 0.0
        %1793 = vmatprep.subr.mxu0 0.0
        %1794 = vmatpush1.msra.mxu0 0.0
        %1795 = vmatprep.subr.mxu0 0.0
        %1796 = vmatpush1.msra.mxu0 0.0
        %1797 = vmatprep.subr.mxu0 0.0
        %1798 = vmatpush1.msra.mxu0 0.0
        %1799 = vmatprep.subr.mxu0 0.0
        %1800 = vmatpush1.msra.mxu0 0.0
        %1801 = vmatprep.subr.mxu0 0.0
        %1802 = vmatpush1.msra.mxu0 0.0
        %1803 = vmatprep.subr.mxu0 0.0
        %1804 = vmatpush1.msra.mxu0 0.0
        %1805 = vmatprep.subr.mxu0 0.0
        %1806 = vmatpush1.msra.mxu0 0.0
        %1807 = vmatprep.subr.mxu0 0.0
        %1808 = vmatpush1.msra.mxu0 0.0
        %1809 = vmatprep.subr.mxu0 0.0
        %1810 = vmatpush1.msra.mxu0 0.0
        %1811 = vmatprep.subr.mxu0 0.0
        %1812 = vmatpush1.msra.mxu0 0.0
        %1813 = vmatprep.subr.mxu0 0.0
        %1814 = vmatpush1.msra.mxu0 0.0
        %1815 = vmatprep.subr.mxu0 0.0
        %1816 = vmatpush1.msra.mxu0 0.0
        %1817 = vmatprep.subr.mxu0 0.0
        %1818 = vmatpush1.msra.mxu0 0.0
        %1819 = vmatprep.subr.mxu0 0.0
        %1820 = vmatpush1.msra.mxu0 0.0
        %1821 = vmatprep.subr.mxu0 0.0
        %1822 = vmatpush1.msra.mxu0 0.0
        %1823 = vmatprep.subr.mxu0 0.0
        %1824 = vmatpush1.msra.mxu0 0.0
        %1825 = vmatprep.subr.mxu0 0.0
        %1826 = vmatpush1.msra.mxu0 0.0
        %1827 = vmatprep.subr.mxu0 0.0
        %1828 = vmatpush1.msra.mxu0 0.0
        %1829 = vmatprep.subr.mxu0 0.0
        %1830 = vmatpush1.msra.mxu0 0.0
        %1831 = vmatprep.subr.mxu0 0.0
        %1832 = vmatpush1.msra.mxu0 0.0
        %1833 = vmatprep.subr.mxu0 0.0
        %1834 = vmatpush1.msra.mxu0 0.0
        %1835 = vmatprep.subr.mxu0 0.0
        %1836 = vmatpush1.msra.mxu0 0.0
        %1837 = vmatprep.subr.mxu0 0.0
        %1838 = vmatpush1.msra.mxu0 0.0
        %1839 = vmatprep.subr.mxu0 0.0
        %1840 = vmatpush1.msra.mxu0 0.0
        %1841 = vmatprep.subr.mxu0 0.0
        %1842 = vmatpush1.msra.mxu0 0.0
        %1843 = vmatprep.subr.mxu0 0.0
        %1844 = vmatpush1.msra.mxu0 0.0
        %1845 = vmatprep.subr.mxu0 0.0
        %1846 = vmatpush1.msra.mxu0 0.0
        %1847 = vmatprep.subr.mxu0 0.0
        %1848 = vmatpush1.msra.mxu0 0.0
        %1849 = vmatprep.subr.mxu0 0.0
        %1850 = vmatpush1.msra.mxu0 0.0
        %1851 = vmatprep.mubr.f32.mxu0 0.0
        %1852 = vmatmul.mubr.f32.gmra.mrb[0].mxu0 %v1782
        %v1853 = vpop.f32.mrb[0].mxu0
        %v1854 = vadd.f32 0.0, %v1853
        %v1855 = vpop.f32.mrb[0].mxu0
        %1856 = vmatprep.mubr.f32.mxu0 0.0
        %1857 = vmatmul.mubr.f32.gmra.mrb[0].mxu0 %v1785
        %v1858 = vpop.f32.mrb[0].mxu0
        %v1859 = vadd.f32 0.0, %v1858
        %v1860 = vpop.f32.mrb[0].mxu0
        %1861 = vdwg.mxu0
        %v1862 = vadd.f32 %v1443, %v1854
        %v1863 = vadd.f32 %v1448, %v1859
        %1864 = vrot.lane.b32.xlu0 %v443, 104
        %v1865 = vpop.permute.xlu0 %1864
        %1866 = vrot.lane.b32.xlu0 %v533, 104
        %v1867 = vpop.permute.xlu0 %1866
        %v1868 = vsel %vm636, %v1865, 0
        %v1870 = vsel %vm636, %v1867, 0
        %1872 = vmatprep.subr.mxu0 0.0
        %1873 = vmatpush1.xpose.msra.mxu0 %v1870
        %1874 = vmatprep.subr.mxu0 0.0
        %1875 = vmatpush1.xpose.msra.mxu0 0.0
        %1876 = vmatprep.subr.mxu0 0.0
        %1877 = vmatpush1.xpose.msra.mxu0 0.0
        %1878 = vmatprep.subr.mxu0 0.0
        %1879 = vmatpush1.xpose.msra.mxu0 0.0
        %1880 = vmatprep.subr.mxu0 0.0
        %1881 = vmatpush1.xpose.msra.mxu0 0.0
        %1882 = vmatprep.subr.mxu0 0.0
        %1883 = vmatpush1.xpose.msra.mxu0 0.0
        %1884 = vmatprep.subr.mxu0 0.0
        %1885 = vmatpush1.xpose.msra.mxu0 0.0
        %1886 = vmatprep.subr.mxu0 0.0
        %1887 = vmatpush1.xpose.msra.mxu0 0.0
        %1888 = vmatprep.subr.mxu0 0.0
        %1889 = vmatpush1.xpose.msra.mxu0 0.0
        %1890 = vmatprep.subr.mxu0 0.0
        %1891 = vmatpush1.xpose.msra.mxu0 0.0
        %1892 = vmatprep.subr.mxu0 0.0
        %1893 = vmatpush1.xpose.msra.mxu0 0.0
        %1894 = vmatprep.subr.mxu0 0.0
        %1895 = vmatpush1.xpose.msra.mxu0 0.0
        %1896 = vmatprep.subr.mxu0 0.0
        %1897 = vmatpush1.xpose.msra.mxu0 0.0
        %1898 = vmatprep.subr.mxu0 0.0
        %1899 = vmatpush1.xpose.msra.mxu0 0.0
        %1900 = vmatprep.subr.mxu0 0.0
        %1901 = vmatpush1.xpose.msra.mxu0 0.0
        %1902 = vmatprep.subr.mxu0 0.0
        %1903 = vmatpush1.xpose.msra.mxu0 0.0
        %1904 = vmatprep.subr.mxu0 0.0
        %1905 = vmatpush1.xpose.msra.mxu0 0.0
        %1906 = vmatprep.subr.mxu0 0.0
        %1907 = vmatpush1.xpose.msra.mxu0 0.0
        %1908 = vmatprep.subr.mxu0 0.0
        %1909 = vmatpush1.xpose.msra.mxu0 0.0
        %1910 = vmatprep.subr.mxu0 0.0
        %1911 = vmatpush1.xpose.msra.mxu0 0.0
        %1912 = vmatprep.subr.mxu0 0.0
        %1913 = vmatpush1.xpose.msra.mxu0 0.0
        %1914 = vmatprep.subr.mxu0 0.0
        %1915 = vmatpush1.xpose.msra.mxu0 0.0
        %1916 = vmatprep.subr.mxu0 0.0
        %1917 = vmatpush1.xpose.msra.mxu0 0.0
        %1918 = vmatprep.subr.mxu0 0.0
        %1919 = vmatpush1.xpose.msra.mxu0 0.0
        %1920 = vmatprep.subr.mxu0 0.0
        %1921 = vmatpush1.xpose.msra.mxu0 0.0
        %1922 = vmatprep.subr.mxu0 0.0
        %1923 = vmatpush1.xpose.msra.mxu0 0.0
        %1924 = vmatprep.subr.mxu0 0.0
        %1925 = vmatpush1.xpose.msra.mxu0 0.0
        %1926 = vmatprep.subr.mxu0 0.0
        %1927 = vmatpush1.xpose.msra.mxu0 0.0
        %1928 = vmatprep.subr.mxu0 0.0
        %1929 = vmatpush1.xpose.msra.mxu0 0.0
        %1930 = vmatprep.subr.mxu0 0.0
        %1931 = vmatpush1.xpose.msra.mxu0 0.0
        %1932 = vmatprep.subr.mxu0 0.0
        %1933 = vmatpush1.xpose.msra.mxu0 0.0
        %1934 = vmatprep.subr.mxu0 0.0
        %1935 = vmatpush1.xpose.msra.mxu0 0.0
        %1936 = vmatprep.mubr.f32.mxu0 0.0
        %1937 = vmatmul.mubr.f32.gmra.mrb[0].mxu0 %v1868
        %v1938 = vpop.f32.mrb[0].mxu0
        %v1939 = vadd.f32 0.0, %v1938
        %v1940 = vpop.f32.mrb[0].mxu0
        %1941 = vdwg.mxu0
        %1942 = vrot.lane.b32.xlu0 %v448, 104
        %v1943 = vpop.permute.xlu0 %1942
        %1944 = vrot.lane.b32.xlu0 %v538, 104
        %v1945 = vpop.permute.xlu0 %1944
        %v1946 = vsel %vm636, %v1943, 0
        %v1948 = vsel %vm636, %v1945, 0
        %1950 = vmatprep.subr.mxu0 0.0
        %1951 = vmatpush1.xpose.msra.mxu0 %v1948
        %1952 = vmatprep.subr.mxu0 0.0
        %1953 = vmatpush1.xpose.msra.mxu0 0.0
        %1954 = vmatprep.subr.mxu0 0.0
        %1955 = vmatpush1.xpose.msra.mxu0 0.0
        %1956 = vmatprep.subr.mxu0 0.0
        %1957 = vmatpush1.xpose.msra.mxu0 0.0
        %1958 = vmatprep.subr.mxu0 0.0
        %1959 = vmatpush1.xpose.msra.mxu0 0.0
        %1960 = vmatprep.subr.mxu0 0.0
        %1961 = vmatpush1.xpose.msra.mxu0 0.0
        %1962 = vmatprep.subr.mxu0 0.0
        %1963 = vmatpush1.xpose.msra.mxu0 0.0
        %1964 = vmatprep.subr.mxu0 0.0
        %1965 = vmatpush1.xpose.msra.mxu0 0.0
        %1966 = vmatprep.subr.mxu0 0.0
        %1967 = vmatpush1.xpose.msra.mxu0 0.0
        %1968 = vmatprep.subr.mxu0 0.0
        %1969 = vmatpush1.xpose.msra.mxu0 0.0
        %1970 = vmatprep.subr.mxu0 0.0
        %1971 = vmatpush1.xpose.msra.mxu0 0.0
        %1972 = vmatprep.subr.mxu0 0.0
        %1973 = vmatpush1.xpose.msra.mxu0 0.0
        %1974 = vmatprep.subr.mxu0 0.0
        %1975 = vmatpush1.xpose.msra.mxu0 0.0
        %1976 = vmatprep.subr.mxu0 0.0
        %1977 = vmatpush1.xpose.msra.mxu0 0.0
        %1978 = vmatprep.subr.mxu0 0.0
        %1979 = vmatpush1.xpose.msra.mxu0 0.0
        %1980 = vmatprep.subr.mxu0 0.0
        %1981 = vmatpush1.xpose.msra.mxu0 0.0
        %1982 = vmatprep.subr.mxu0 0.0
        %1983 = vmatpush1.xpose.msra.mxu0 0.0
        %1984 = vmatprep.subr.mxu0 0.0
        %1985 = vmatpush1.xpose.msra.mxu0 0.0
        %1986 = vmatprep.subr.mxu0 0.0
        %1987 = vmatpush1.xpose.msra.mxu0 0.0
        %1988 = vmatprep.subr.mxu0 0.0
        %1989 = vmatpush1.xpose.msra.mxu0 0.0
        %1990 = vmatprep.subr.mxu0 0.0
        %1991 = vmatpush1.xpose.msra.mxu0 0.0
        %1992 = vmatprep.subr.mxu0 0.0
        %1993 = vmatpush1.xpose.msra.mxu0 0.0
        %1994 = vmatprep.subr.mxu0 0.0
        %1995 = vmatpush1.xpose.msra.mxu0 0.0
        %1996 = vmatprep.subr.mxu0 0.0
        %1997 = vmatpush1.xpose.msra.mxu0 0.0
        %1998 = vmatprep.subr.mxu0 0.0
        %1999 = vmatpush1.xpose.msra.mxu0 0.0
        %2000 = vmatprep.subr.mxu0 0.0
        %2001 = vmatpush1.xpose.msra.mxu0 0.0
        %2002 = vmatprep.subr.mxu0 0.0
        %2003 = vmatpush1.xpose.msra.mxu0 0.0
        %2004 = vmatprep.subr.mxu0 0.0
        %2005 = vmatpush1.xpose.msra.mxu0 0.0
        %2006 = vmatprep.subr.mxu0 0.0
        %2007 = vmatpush1.xpose.msra.mxu0 0.0
        %2008 = vmatprep.subr.mxu0 0.0
        %2009 = vmatpush1.xpose.msra.mxu0 0.0
        %2010 = vmatprep.subr.mxu0 0.0
        %2011 = vmatpush1.xpose.msra.mxu0 0.0
        %2012 = vmatprep.subr.mxu0 0.0
        %2013 = vmatpush1.xpose.msra.mxu0 0.0
        %2014 = vmatprep.mubr.f32.mxu0 0.0
        %2015 = vmatmul.mubr.f32.gmra.mrb[0].mxu0 %v1946
        %v2016 = vpop.f32.mrb[0].mxu0
        %v2017 = vadd.f32 0.0, %v2016
        %v2018 = vpop.f32.mrb[0].mxu0
        %2019 = vdwg.mxu0
        %v2020 = vsel %vm636, %v1939, -inf
        %2021 = vmax.xlane.f32.xlu0 %v2020
        %v2022 = vpop.xlane.xlu0 %2021
        %v2023 = vsel %vm636, %v2017, -inf
        %2024 = vmax.xlane.f32.xlu0 %v2023
        %v2025 = vpop.xlane.xlu0 %2024
        %v2026 = vsub.f32 %v1939, %v2022
        %v2027 = vsub.f32 %v2017, %v2025
        %v2028 = vmul.f32 %v2026, 1.442695
        %v2029 = vpow.pop %v2028
        %v2030 = vmul.f32 %v2027, 1.442695
        %v2031 = vpow.pop %v2030
        %v2032 = vsel %vm636, %v2029, 0.0
        %2033 = vadd.xlane.f32.xlu0 %v2032
        %v2034 = vpop.xlane.xlu0 %2033
        %v2035 = vsel %vm636, %v2031, 0.0
        %2036 = vadd.xlane.f32.xlu0 %v2035
        %v2037 = vpop.xlane.xlu0 %2036
        %2038 = vrot.lane.b32.xlu0 %v623, 104
        %v2039 = vpop.permute.xlu0 %2038
        %v2042 = vsel %vm636, %v2029, 0
        %2044 = vmatprep.subr.mxu0 0.0
        %2045 = vmatpush1.msra.mxu0 %v2039
        %2046 = vmatprep.subr.mxu0 0.0
        %2047 = vmatpush1.msra.mxu0 0.0
        %2048 = vmatprep.subr.mxu0 0.0
        %2049 = vmatpush1.msra.mxu0 0.0
        %2050 = vmatprep.subr.mxu0 0.0
        %2051 = vmatpush1.msra.mxu0 0.0
        %2052 = vmatprep.subr.mxu0 0.0
        %2053 = vmatpush1.msra.mxu0 0.0
        %2054 = vmatprep.subr.mxu0 0.0
        %2055 = vmatpush1.msra.mxu0 0.0
        %2056 = vmatprep.subr.mxu0 0.0
        %2057 = vmatpush1.msra.mxu0 0.0
        %2058 = vmatprep.subr.mxu0 0.0
        %2059 = vmatpush1.msra.mxu0 0.0
        %2060 = vmatprep.subr.mxu0 0.0
        %2061 = vmatpush1.msra.mxu0 0.0
        %2062 = vmatprep.subr.mxu0 0.0
        %2063 = vmatpush1.msra.mxu0 0.0
        %2064 = vmatprep.subr.mxu0 0.0
        %2065 = vmatpush1.msra.mxu0 0.0
        %2066 = vmatprep.subr.mxu0 0.0
        %2067 = vmatpush1.msra.mxu0 0.0
        %2068 = vmatprep.subr.mxu0 0.0
        %2069 = vmatpush1.msra.mxu0 0.0
        %2070 = vmatprep.subr.mxu0 0.0
        %2071 = vmatpush1.msra.mxu0 0.0
        %2072 = vmatprep.subr.mxu0 0.0
        %2073 = vmatpush1.msra.mxu0 0.0
        %2074 = vmatprep.subr.mxu0 0.0
        %2075 = vmatpush1.msra.mxu0 0.0
        %2076 = vmatprep.subr.mxu0 0.0
        %2077 = vmatpush1.msra.mxu0 0.0
        %2078 = vmatprep.subr.mxu0 0.0
        %2079 = vmatpush1.msra.mxu0 0.0
        %2080 = vmatprep.subr.mxu0 0.0
        %2081 = vmatpush1.msra.mxu0 0.0
        %2082 = vmatprep.subr.mxu0 0.0
        %2083 = vmatpush1.msra.mxu0 0.0
        %2084 = vmatprep.subr.mxu0 0.0
        %2085 = vmatpush1.msra.mxu0 0.0
        %2086 = vmatprep.subr.mxu0 0.0
        %2087 = vmatpush1.msra.mxu0 0.0
        %2088 = vmatprep.subr.mxu0 0.0
        %2089 = vmatpush1.msra.mxu0 0.0
        %2090 = vmatprep.subr.mxu0 0.0
        %2091 = vmatpush1.msra.mxu0 0.0
        %2092 = vmatprep.subr.mxu0 0.0
        %2093 = vmatpush1.msra.mxu0 0.0
        %2094 = vmatprep.subr.mxu0 0.0
        %2095 = vmatpush1.msra.mxu0 0.0
        %2096 = vmatprep.subr.mxu0 0.0
        %2097 = vmatpush1.msra.mxu0 0.0
        %2098 = vmatprep.subr.mxu0 0.0
        %2099 = vmatpush1.msra.mxu0 0.0
        %2100 = vmatprep.subr.mxu0 0.0
        %2101 = vmatpush1.msra.mxu0 0.0
        %2102 = vmatprep.subr.mxu0 0.0
        %2103 = vmatpush1.msra.mxu0 0.0
        %2104 = vmatprep.subr.mxu0 0.0
        %2105 = vmatpush1.msra.mxu0 0.0
        %2106 = vmatprep.subr.mxu0 0.0
        %2107 = vmatpush1.msra.mxu0 0.0
        %2108 = vmatprep.mubr.f32.mxu0 0.0
        %2109 = vmatmul.mubr.f32.gmra.mrb[0].mxu0 %v2042
        %v2110 = vpop.f32.mrb[0].mxu0
        %v2111 = vadd.f32 0.0, %v2110
        %v2112 = vpop.f32.mrb[0].mxu0
        %2113 = vdwg.mxu0
        %2114 = vrot.lane.b32.xlu0 %v628, 104
        %v2115 = vpop.permute.xlu0 %2114
        %v2118 = vsel %vm636, %v2031, 0
        %2120 = vmatprep.subr.mxu0 0.0
        %2121 = vmatpush1.msra.mxu0 %v2115
        %2122 = vmatprep.subr.mxu0 0.0
        %2123 = vmatpush1.msra.mxu0 0.0
        %2124 = vmatprep.subr.mxu0 0.0
        %2125 = vmatpush1.msra.mxu0 0.0
        %2126 = vmatprep.subr.mxu0 0.0
        %2127 = vmatpush1.msra.mxu0 0.0
        %2128 = vmatprep.subr.mxu0 0.0
        %2129 = vmatpush1.msra.mxu0 0.0
        %2130 = vmatprep.subr.mxu0 0.0
        %2131 = vmatpush1.msra.mxu0 0.0
        %2132 = vmatprep.subr.mxu0 0.0
        %2133 = vmatpush1.msra.mxu0 0.0
        %2134 = vmatprep.subr.mxu0 0.0
        %2135 = vmatpush1.msra.mxu0 0.0
        %2136 = vmatprep.subr.mxu0 0.0
        %2137 = vmatpush1.msra.mxu0 0.0
        %2138 = vmatprep.subr.mxu0 0.0
        %2139 = vmatpush1.msra.mxu0 0.0
        %2140 = vmatprep.subr.mxu0 0.0
        %2141 = vmatpush1.msra.mxu0 0.0
        %2142 = vmatprep.subr.mxu0 0.0
        %2143 = vmatpush1.msra.mxu0 0.0
        %2144 = vmatprep.subr.mxu0 0.0
        %2145 = vmatpush1.msra.mxu0 0.0
        %2146 = vmatprep.subr.mxu0 0.0
        %2147 = vmatpush1.msra.mxu0 0.0
        %2148 = vmatprep.subr.mxu0 0.0
        %2149 = vmatpush1.msra.mxu0 0.0
        %2150 = vmatprep.subr.mxu0 0.0
        %2151 = vmatpush1.msra.mxu0 0.0
        %2152 = vmatprep.subr.mxu0 0.0
        %2153 = vmatpush1.msra.mxu0 0.0
        %2154 = vmatprep.subr.mxu0 0.0
        %2155 = vmatpush1.msra.mxu0 0.0
        %2156 = vmatprep.subr.mxu0 0.0
        %2157 = vmatpush1.msra.mxu0 0.0
        %2158 = vmatprep.subr.mxu0 0.0
        %2159 = vmatpush1.msra.mxu0 0.0
        %2160 = vmatprep.subr.mxu0 0.0
        %2161 = vmatpush1.msra.mxu0 0.0
        %2162 = vmatprep.subr.mxu0 0.0
        %2163 = vmatpush1.msra.mxu0 0.0
        %2164 = vmatprep.subr.mxu0 0.0
        %2165 = vmatpush1.msra.mxu0 0.0
        %2166 = vmatprep.subr.mxu0 0.0
        %2167 = vmatpush1.msra.mxu0 0.0
        %2168 = vmatprep.subr.mxu0 0.0
        %2169 = vmatpush1.msra.mxu0 0.0
        %2170 = vmatprep.subr.mxu0 0.0
        %2171 = vmatpush1.msra.mxu0 0.0
        %2172 = vmatprep.subr.mxu0 0.0
        %2173 = vmatpush1.msra.mxu0 0.0
        %2174 = vmatprep.subr.mxu0 0.0
        %2175 = vmatpush1.msra.mxu0 0.0
        %2176 = vmatprep.subr.mxu0 0.0
        %2177 = vmatpush1.msra.mxu0 0.0
        %2178 = vmatprep.subr.mxu0 0.0
        %2179 = vmatpush1.msra.mxu0 0.0
        %2180 = vmatprep.subr.mxu0 0.0
        %2181 = vmatpush1.msra.mxu0 0.0
        %2182 = vmatprep.subr.mxu0 0.0
        %2183 = vmatpush1.msra.mxu0 0.0
        %2184 = vmatprep.mubr.f32.mxu0 0.0
        %2185 = vmatmul.mubr.f32.gmra.mrb[0].mxu0 %v2118
        %v2186 = vpop.f32.mrb[0].mxu0
        %v2187 = vadd.f32 0.0, %v2186
        %v2188 = vpop.f32.mrb[0].mxu0
        %2189 = vdwg.mxu0
        %v2190 = vrcp.pop %v2034
        %v2191 = vrcp.pop %v2037
        %v2192 = vmul.f32 %v2111, %v2190
        %v2193 = vmul.f32 %v2187, %v2191
        %v2195 = vsel %vm636, %v2192, 0
        %v2198 = vsel %vm636, %v2193, 0
        %2200 = vmatprep.subr.mxu0 0.0
        %2201 = vmatpush1.msra.mxu0 %v635
        %2202 = vmatprep.subr.mxu0 0.0
        %2203 = vmatpush1.msra.mxu0 0.0
        %2204 = vmatprep.subr.mxu0 0.0
        %2205 = vmatpush1.msra.mxu0 0.0
        %2206 = vmatprep.subr.mxu0 0.0
        %2207 = vmatpush1.msra.mxu0 0.0
        %2208 = vmatprep.subr.mxu0 0.0
        %2209 = vmatpush1.msra.mxu0 0.0
        %2210 = vmatprep.subr.mxu0 0.0
        %2211 = vmatpush1.msra.mxu0 0.0
        %2212 = vmatprep.subr.mxu0 0.0
        %2213 = vmatpush1.msra.mxu0 0.0
        %2214 = vmatprep.subr.mxu0 0.0
        %2215 = vmatpush1.msra.mxu0 0.0
        %2216 = vmatprep.subr.mxu0 0.0
        %2217 = vmatpush1.msra.mxu0 0.0
        %2218 = vmatprep.subr.mxu0 0.0
        %2219 = vmatpush1.msra.mxu0 0.0
        %2220 = vmatprep.subr.mxu0 0.0
        %2221 = vmatpush1.msra.mxu0 0.0
        %2222 = vmatprep.subr.mxu0 0.0
        %2223 = vmatpush1.msra.mxu0 0.0
        %2224 = vmatprep.subr.mxu0 0.0
        %2225 = vmatpush1.msra.mxu0 0.0
        %2226 = vmatprep.subr.mxu0 0.0
        %2227 = vmatpush1.msra.mxu0 0.0
        %2228 = vmatprep.subr.mxu0 0.0
        %2229 = vmatpush1.msra.mxu0 0.0
        %2230 = vmatprep.subr.mxu0 0.0
        %2231 = vmatpush1.msra.mxu0 0.0
        %2232 = vmatprep.subr.mxu0 0.0
        %2233 = vmatpush1.msra.mxu0 0.0
        %2234 = vmatprep.subr.mxu0 0.0
        %2235 = vmatpush1.msra.mxu0 0.0
        %2236 = vmatprep.subr.mxu0 0.0
        %2237 = vmatpush1.msra.mxu0 0.0
        %2238 = vmatprep.subr.mxu0 0.0
        %2239 = vmatpush1.msra.mxu0 0.0
        %2240 = vmatprep.subr.mxu0 0.0
        %2241 = vmatpush1.msra.mxu0 0.0
        %2242 = vmatprep.subr.mxu0 0.0
        %2243 = vmatpush1.msra.mxu0 0.0
        %2244 = vmatprep.subr.mxu0 0.0
        %2245 = vmatpush1.msra.mxu0 0.0
        %2246 = vmatprep.subr.mxu0 0.0
        %2247 = vmatpush1.msra.mxu0 0.0
        %2248 = vmatprep.subr.mxu0 0.0
        %2249 = vmatpush1.msra.mxu0 0.0
        %2250 = vmatprep.subr.mxu0 0.0
        %2251 = vmatpush1.msra.mxu0 0.0
        %2252 = vmatprep.subr.mxu0 0.0
        %2253 = vmatpush1.msra.mxu0 0.0
        %2254 = vmatprep.subr.mxu0 0.0
        %2255 = vmatpush1.msra.mxu0 0.0
        %2256 = vmatprep.subr.mxu0 0.0
        %2257 = vmatpush1.msra.mxu0 0.0
        %2258 = vmatprep.subr.mxu0 0.0
        %2259 = vmatpush1.msra.mxu0 0.0
        %2260 = vmatprep.subr.mxu0 0.0
        %2261 = vmatpush1.msra.mxu0 0.0
        %2262 = vmatprep.subr.mxu0 0.0
        %2263 = vmatpush1.msra.mxu0 0.0
        %2264 = vmatprep.mubr.f32.mxu0 0.0
        %2265 = vmatmul.mubr.f32.gmra.mrb[0].mxu0 %v2195
        %v2266 = vpop.f32.mrb[0].mxu0
        %v2267 = vadd.f32 0.0, %v2266
        %v2268 = vpop.f32.mrb[0].mxu0
        %2269 = vmatprep.mubr.f32.mxu0 0.0
        %2270 = vmatmul.mubr.f32.gmra.mrb[0].mxu0 %v2198
        %v2271 = vpop.f32.mrb[0].mxu0
        %v2272 = vadd.f32 0.0, %v2271
        %v2273 = vpop.f32.mrb[0].mxu0
        %2274 = vdwg.mxu0
        %v2275 = vadd.f32 %v1862, %v2267
        %v2276 = vadd.f32 %v1863, %v2272
        %v2277 = vlaneseq
        %v2278 = vshrl.u32 %v2277, 7
        %v2279 = vsub.s32 3, %v2278
        %v2280 = vrot.slane %v359, %v2279
        %v2281 = vadd.f32 %v2275, %v2280
        %v2282 = vadd.f32 %v2276, %v2280
        %v2283 = vadd.f32 %v357, %v2281
        %v2284 = vadd.f32 %v358, %v2282
        %v2285 = vsel %vm369, %v2283, 0.0
        %2286 = vadd.xlane.f32.xlu0 %v2285
        %v2287 = vpop.xlane.xlu0 %2286
        %v2288 = vsel %vm369, %v2284, 0.0
        %2289 = vadd.xlane.f32.xlu0 %v2288
        %v2290 = vpop.xlane.xlu0 %2289
        %v2291 = vrcp.pop 32.0
        %v2292 = vmul.f32 %v2287, %v2291
        %v2293 = vmul.f32 %v2290, %v2291
        %v2294 = vsub.f32 %v2283, %v2292
        %v2295 = vsub.f32 %v2284, %v2293
        %v2296 = vmul.f32 %v2294, %v2294
        %v2297 = vmul.f32 %v2295, %v2295
        %v2298 = vsel %vm369, %v2296, 0.0
        %2299 = vadd.xlane.f32.xlu0 %v2298
        %v2300 = vpop.xlane.xlu0 %2299
        %v2301 = vsel %vm369, %v2297, 0.0
        %2302 = vadd.xlane.f32.xlu0 %v2301
        %v2303 = vpop.xlane.xlu0 %2302
        %v2304 = vmul.f32 %v2300, %v2291
        %v2305 = vmul.f32 %v2303, %v2291
        %v2306 = vadd.f32 %v2304, 1e-05
        %v2307 = vadd.f32 %v2305, 1e-05
        %v2308 = vrsqrt.pop %v2306
        %v2309 = vrsqrt.pop %v2307
        %v2310 = vmul.f32 %v2294, %v2308
        %v2311 = vmul.f32 %v2295, %v2309
        %v2312 = vlaneseq
        %v2313 = vshrl.u32 %v2312, 7
        %v2314 = vsub.s32 4, %v2313
        %v2315 = vrot.slane %v359, %v2314
        %v2316 = vmul.f32 %v2310, %v2315
        %v2317 = vmul.f32 %v2311, %v2315
        %v2318 = vlaneseq
        %v2319 = vshrl.u32 %v2318, 7
        %v2320 = vsub.s32 5, %v2319
        %v2321 = vrot.slane %v359, %v2320
        %v2322 = vadd.f32 %v2316, %v2321
        %v2323 = vadd.f32 %v2317, %v2321
        %s2324 = scalar_lea.vmem [#allocation8], 128
        %v2325 = vld [vmem:[%s2324] sm:$0xff]
        %v2326 = vld [vmem:[%s2324 + $0x8] sm:$0xff]
        %v2327 = vld [vmem:[%s2324 + $0x10] sm:$0xff]
        %v2328 = vld [vmem:[%s2324 + $0x18] sm:$0xff]
        %v2329 = vlaneseq
        %v2330 = vshrl.u32 %v2329, 7
        %v2331 = vsub.s32 6, %v2330
        %v2332 = vrot.slane %v359, %v2331
        %v2334 = vsel %vm369, %v2322, 0
        %v2337 = vsel %vm369, %v2323, 0
        %2339 = vmatprep.subr.mxu0 0.0
        %2340 = vmatpush1.msra.mxu0 %v2325
        %2341 = vmatprep.subr.mxu0 0.0
        %2342 = vmatpush1.msra.mxu0 %v2326
        %2343 = vmatprep.subr.mxu0 0.0
        %2344 = vmatpush1.msra.mxu0 %v2327
        %2345 = vmatprep.subr.mxu0 0.0
        %2346 = vmatpush1.msra.mxu0 %v2328
        %2347 = vmatprep.subr.mxu0 0.0
        %2348 = vmatpush1.msra.mxu0 0.0
        %2349 = vmatprep.subr.mxu0 0.0
        %2350 = vmatpush1.msra.mxu0 0.0
        %2351 = vmatprep.subr.mxu0 0.0
        %2352 = vmatpush1.msra.mxu0 0.0
        %2353 = vmatprep.subr.mxu0 0.0
        %2354 = vmatpush1.msra.mxu0 0.0
        %2355 = vmatprep.subr.mxu0 0.0
        %2356 = vmatpush1.msra.mxu0 0.0
        %2357 = vmatprep.subr.mxu0 0.0
        %2358 = vmatpush1.msra.mxu0 0.0
        %2359 = vmatprep.subr.mxu0 0.0
        %2360 = vmatpush1.msra.mxu0 0.0
        %2361 = vmatprep.subr.mxu0 0.0
        %2362 = vmatpush1.msra.mxu0 0.0
        %2363 = vmatprep.subr.mxu0 0.0
        %2364 = vmatpush1.msra.mxu0 0.0
        %2365 = vmatprep.subr.mxu0 0.0
        %2366 = vmatpush1.msra.mxu0 0.0
        %2367 = vmatprep.subr.mxu0 0.0
        %2368 = vmatpush1.msra.mxu0 0.0
        %2369 = vmatprep.subr.mxu0 0.0
        %2370 = vmatpush1.msra.mxu0 0.0
        %2371 = vmatprep.subr.mxu0 0.0
        %2372 = vmatpush1.msra.mxu0 0.0
        %2373 = vmatprep.subr.mxu0 0.0
        %2374 = vmatpush1.msra.mxu0 0.0
        %2375 = vmatprep.subr.mxu0 0.0
        %2376 = vmatpush1.msra.mxu0 0.0
        %2377 = vmatprep.subr.mxu0 0.0
        %2378 = vmatpush1.msra.mxu0 0.0
        %2379 = vmatprep.subr.mxu0 0.0
        %2380 = vmatpush1.msra.mxu0 0.0
        %2381 = vmatprep.subr.mxu0 0.0
        %2382 = vmatpush1.msra.mxu0 0.0
        %2383 = vmatprep.subr.mxu0 0.0
        %2384 = vmatpush1.msra.mxu0 0.0
        %2385 = vmatprep.subr.mxu0 0.0
        %2386 = vmatpush1.msra.mxu0 0.0
        %2387 = vmatprep.subr.mxu0 0.0
        %2388 = vmatpush1.msra.mxu0 0.0
        %2389 = vmatprep.subr.mxu0 0.0
        %2390 = vmatpush1.msra.mxu0 0.0
        %2391 = vmatprep.subr.mxu0 0.0
        %2392 = vmatpush1.msra.mxu0 0.0
        %2393 = vmatprep.subr.mxu0 0.0
        %2394 = vmatpush1.msra.mxu0 0.0
        %2395 = vmatprep.subr.mxu0 0.0
        %2396 = vmatpush1.msra.mxu0 0.0
        %2397 = vmatprep.subr.mxu0 0.0
        %2398 = vmatpush1.msra.mxu0 0.0
        %2399 = vmatprep.subr.mxu0 0.0
        %2400 = vmatpush1.msra.mxu0 0.0
        %2401 = vmatprep.subr.mxu0 0.0
        %2402 = vmatpush1.msra.mxu0 0.0
        %2403 = vmatprep.mubr.f32.mxu0 0.0
        %2404 = vmatmul.mubr.f32.gmra.mrb[0].mxu0 %v2334
        %v2405 = vpop.f32.mrb[0].mxu0
        %v2406 = vadd.f32 %v2332, %v2405
        %v2407 = vpop.f32.mrb[0].mxu0
        %2408 = vmatprep.mubr.f32.mxu0 0.0
        %2409 = vmatmul.mubr.f32.gmra.mrb[0].mxu0 %v2337
        %v2410 = vpop.f32.mrb[0].mxu0
        %v2411 = vadd.f32 %v2332, %v2410
        %v2412 = vpop.f32.mrb[0].mxu0
        %2413 = vdwg.mxu0
        %s2414 = scalar_lea.vmem [#allocation8], 160
        %v2415 = vld [vmem:[%s2414] sm:$0xff]
        %v2416 = vld [vmem:[%s2414 + $0x8] sm:$0xff]
        %v2417 = vld [vmem:[%s2414 + $0x10] sm:$0xff]
        %v2418 = vld [vmem:[%s2414 + $0x18] sm:$0xff]
        %v2419 = vlaneseq
        %v2420 = vshrl.u32 %v2419, 7
        %v2421 = vsub.s32 7, %v2420
        %v2422 = vrot.slane %v359, %v2421
        %2423 = vmatprep.subr.mxu0 0.0
        %2424 = vmatpush1.msra.mxu0 %v2415
        %2425 = vmatprep.subr.mxu0 0.0
        %2426 = vmatpush1.msra.mxu0 %v2416
        %2427 = vmatprep.subr.mxu0 0.0
        %2428 = vmatpush1.msra.mxu0 %v2417
        %2429 = vmatprep.subr.mxu0 0.0
        %2430 = vmatpush1.msra.mxu0 %v2418
        %2431 = vmatprep.subr.mxu0 0.0
        %2432 = vmatpush1.msra.mxu0 0.0
        %2433 = vmatprep.subr.mxu0 0.0
        %2434 = vmatpush1.msra.mxu0 0.0
        %2435 = vmatprep.subr.mxu0 0.0
        %2436 = vmatpush1.msra.mxu0 0.0
        %2437 = vmatprep.subr.mxu0 0.0
        %2438 = vmatpush1.msra.mxu0 0.0
        %2439 = vmatprep.subr.mxu0 0.0
        %2440 = vmatpush1.msra.mxu0 0.0
        %2441 = vmatprep.subr.mxu0 0.0
        %2442 = vmatpush1.msra.mxu0 0.0
        %2443 = vmatprep.subr.mxu0 0.0
        %2444 = vmatpush1.msra.mxu0 0.0
        %2445 = vmatprep.subr.mxu0 0.0
        %2446 = vmatpush1.msra.mxu0 0.0
        %2447 = vmatprep.subr.mxu0 0.0
        %2448 = vmatpush1.msra.mxu0 0.0
        %2449 = vmatprep.subr.mxu0 0.0
        %2450 = vmatpush1.msra.mxu0 0.0
        %2451 = vmatprep.subr.mxu0 0.0
        %2452 = vmatpush1.msra.mxu0 0.0
        %2453 = vmatprep.subr.mxu0 0.0
        %2454 = vmatpush1.msra.mxu0 0.0
        %2455 = vmatprep.subr.mxu0 0.0
        %2456 = vmatpush1.msra.mxu0 0.0
        %2457 = vmatprep.subr.mxu0 0.0
        %2458 = vmatpush1.msra.mxu0 0.0
        %2459 = vmatprep.subr.mxu0 0.0
        %2460 = vmatpush1.msra.mxu0 0.0
        %2461 = vmatprep.subr.mxu0 0.0
        %2462 = vmatpush1.msra.mxu0 0.0
        %2463 = vmatprep.subr.mxu0 0.0
        %2464 = vmatpush1.msra.mxu0 0.0
        %2465 = vmatprep.subr.mxu0 0.0
        %2466 = vmatpush1.msra.mxu0 0.0
        %2467 = vmatprep.subr.mxu0 0.0
        %2468 = vmatpush1.msra.mxu0 0.0
        %2469 = vmatprep.subr.mxu0 0.0
        %2470 = vmatpush1.msra.mxu0 0.0
        %2471 = vmatprep.subr.mxu0 0.0
        %2472 = vmatpush1.msra.mxu0 0.0
        %2473 = vmatprep.subr.mxu0 0.0
        %2474 = vmatpush1.msra.mxu0 0.0
        %2475 = vmatprep.subr.mxu0 0.0
        %2476 = vmatpush1.msra.mxu0 0.0
        %2477 = vmatprep.subr.mxu0 0.0
        %2478 = vmatpush1.msra.mxu0 0.0
        %2479 = vmatprep.subr.mxu0 0.0
        %2480 = vmatpush1.msra.mxu0 0.0
        %2481 = vmatprep.subr.mxu0 0.0
        %2482 = vmatpush1.msra.mxu0 0.0
        %2483 = vmatprep.subr.mxu0 0.0
        %2484 = vmatpush1.msra.mxu0 0.0
        %2485 = vmatprep.subr.mxu0 0.0
        %2486 = vmatpush1.msra.mxu0 0.0
        %2487 = vmatprep.mubr.f32.mxu0 0.0
        %2488 = vmatmul.mubr.f32.gmra.mrb[0].mxu0 %v2334
        %v2489 = vpop.f32.mrb[0].mxu0
        %v2490 = vadd.f32 %v2422, %v2489
        %v2491 = vpop.f32.mrb[0].mxu0
        %2492 = vmatprep.mubr.f32.mxu0 0.0
        %2493 = vmatmul.mubr.f32.gmra.mrb[0].mxu0 %v2337
        %v2494 = vpop.f32.mrb[0].mxu0
        %v2495 = vadd.f32 %v2422, %v2494
        %v2496 = vpop.f32.mrb[0].mxu0
        %2497 = vdwg.mxu0
        %s2498 = scalar_lea.vmem [#allocation8], 192
        %v2499 = vld [vmem:[%s2498] sm:$0xff]
        %v2500 = vld [vmem:[%s2498 + $0x8] sm:$0xff]
        %v2501 = vld [vmem:[%s2498 + $0x10] sm:$0xff]
        %v2502 = vld [vmem:[%s2498 + $0x18] sm:$0xff]
        %v2503 = vlaneseq
        %v2504 = vshrl.u32 %v2503, 7
        %v2505 = vsub.s32 0, %v2504
        %v2506 = vrot.slane %v360, %v2505
        %2507 = vmatprep.subr.mxu0 0.0
        %2508 = vmatpush1.msra.mxu0 %v2499
        %2509 = vmatprep.subr.mxu0 0.0
        %2510 = vmatpush1.msra.mxu0 %v2500
        %2511 = vmatprep.subr.mxu0 0.0
        %2512 = vmatpush1.msra.mxu0 %v2501
        %2513 = vmatprep.subr.mxu0 0.0
        %2514 = vmatpush1.msra.mxu0 %v2502
        %2515 = vmatprep.subr.mxu0 0.0
        %2516 = vmatpush1.msra.mxu0 0.0
        %2517 = vmatprep.subr.mxu0 0.0
        %2518 = vmatpush1.msra.mxu0 0.0
        %2519 = vmatprep.subr.mxu0 0.0
        %2520 = vmatpush1.msra.mxu0 0.0
        %2521 = vmatprep.subr.mxu0 0.0
        %2522 = vmatpush1.msra.mxu0 0.0
        %2523 = vmatprep.subr.mxu0 0.0
        %2524 = vmatpush1.msra.mxu0 0.0
        %2525 = vmatprep.subr.mxu0 0.0
        %2526 = vmatpush1.msra.mxu0 0.0
        %2527 = vmatprep.subr.mxu0 0.0
        %2528 = vmatpush1.msra.mxu0 0.0
        %2529 = vmatprep.subr.mxu0 0.0
        %2530 = vmatpush1.msra.mxu0 0.0
        %2531 = vmatprep.subr.mxu0 0.0
        %2532 = vmatpush1.msra.mxu0 0.0
        %2533 = vmatprep.subr.mxu0 0.0
        %2534 = vmatpush1.msra.mxu0 0.0
        %2535 = vmatprep.subr.mxu0 0.0
        %2536 = vmatpush1.msra.mxu0 0.0
        %2537 = vmatprep.subr.mxu0 0.0
        %2538 = vmatpush1.msra.mxu0 0.0
        %2539 = vmatprep.subr.mxu0 0.0
        %2540 = vmatpush1.msra.mxu0 0.0
        %2541 = vmatprep.subr.mxu0 0.0
        %2542 = vmatpush1.msra.mxu0 0.0
        %2543 = vmatprep.subr.mxu0 0.0
        %2544 = vmatpush1.msra.mxu0 0.0
        %2545 = vmatprep.subr.mxu0 0.0
        %2546 = vmatpush1.msra.mxu0 0.0
        %2547 = vmatprep.subr.mxu0 0.0
        %2548 = vmatpush1.msra.mxu0 0.0
        %2549 = vmatprep.subr.mxu0 0.0
        %2550 = vmatpush1.msra.mxu0 0.0
        %2551 = vmatprep.subr.mxu0 0.0
        %2552 = vmatpush1.msra.mxu0 0.0
        %2553 = vmatprep.subr.mxu0 0.0
        %2554 = vmatpush1.msra.mxu0 0.0
        %2555 = vmatprep.subr.mxu0 0.0
        %2556 = vmatpush1.msra.mxu0 0.0
        %2557 = vmatprep.subr.mxu0 0.0
        %2558 = vmatpush1.msra.mxu0 0.0
        %2559 = vmatprep.subr.mxu0 0.0
        %2560 = vmatpush1.msra.mxu0 0.0
        %2561 = vmatprep.subr.mxu0 0.0
        %2562 = vmatpush1.msra.mxu0 0.0
        %2563 = vmatprep.subr.mxu0 0.0
        %2564 = vmatpush1.msra.mxu0 0.0
        %2565 = vmatprep.subr.mxu0 0.0
        %2566 = vmatpush1.msra.mxu0 0.0
        %2567 = vmatprep.subr.mxu0 0.0
        %2568 = vmatpush1.msra.mxu0 0.0
        %2569 = vmatprep.subr.mxu0 0.0
        %2570 = vmatpush1.msra.mxu0 0.0
        %2571 = vmatprep.mubr.f32.mxu0 0.0
        %2572 = vmatmul.mubr.f32.gmra.mrb[0].mxu0 %v2334
        %v2573 = vpop.f32.mrb[0].mxu0
        %v2574 = vadd.f32 %v2506, %v2573
        %v2575 = vpop.f32.mrb[0].mxu0
        %2576 = vmatprep.mubr.f32.mxu0 0.0
        %2577 = vmatmul.mubr.f32.gmra.mrb[0].mxu0 %v2337
        %v2578 = vpop.f32.mrb[0].mxu0
        %v2579 = vadd.f32 %v2506, %v2578
        %v2580 = vpop.f32.mrb[0].mxu0
        %2581 = vdwg.mxu0
        %s2582 = scalar_lea.vmem [#allocation8], 224
        %v2583 = vld [vmem:[%s2582] sm:$0xff]
        %v2584 = vld [vmem:[%s2582 + $0x8] sm:$0xff]
        %v2585 = vld [vmem:[%s2582 + $0x10] sm:$0xff]
        %v2586 = vld [vmem:[%s2582 + $0x18] sm:$0xff]
        %v2588 = vsel %vm636, %v2406, 0
        %v2591 = vsel %vm636, %v2490, 0
        %2593 = vmatprep.subr.mxu0 0.0
        %2594 = vmatpush1.xpose.msra.mxu0 %v2591
        %2595 = vmatprep.subr.mxu0 0.0
        %2596 = vmatpush1.xpose.msra.mxu0 0.0
        %2597 = vmatprep.subr.mxu0 0.0
        %2598 = vmatpush1.xpose.msra.mxu0 0.0
        %2599 = vmatprep.subr.mxu0 0.0
        %2600 = vmatpush1.xpose.msra.mxu0 0.0
        %2601 = vmatprep.subr.mxu0 0.0
        %2602 = vmatpush1.xpose.msra.mxu0 0.0
        %2603 = vmatprep.subr.mxu0 0.0
        %2604 = vmatpush1.xpose.msra.mxu0 0.0
        %2605 = vmatprep.subr.mxu0 0.0
        %2606 = vmatpush1.xpose.msra.mxu0 0.0
        %2607 = vmatprep.subr.mxu0 0.0
        %2608 = vmatpush1.xpose.msra.mxu0 0.0
        %2609 = vmatprep.subr.mxu0 0.0
        %2610 = vmatpush1.xpose.msra.mxu0 0.0
        %2611 = vmatprep.subr.mxu0 0.0
        %2612 = vmatpush1.xpose.msra.mxu0 0.0
        %2613 = vmatprep.subr.mxu0 0.0
        %2614 = vmatpush1.xpose.msra.mxu0 0.0
        %2615 = vmatprep.subr.mxu0 0.0
        %2616 = vmatpush1.xpose.msra.mxu0 0.0
        %2617 = vmatprep.subr.mxu0 0.0
        %2618 = vmatpush1.xpose.msra.mxu0 0.0
        %2619 = vmatprep.subr.mxu0 0.0
        %2620 = vmatpush1.xpose.msra.mxu0 0.0
        %2621 = vmatprep.subr.mxu0 0.0
        %2622 = vmatpush1.xpose.msra.mxu0 0.0
        %2623 = vmatprep.subr.mxu0 0.0
        %2624 = vmatpush1.xpose.msra.mxu0 0.0
        %2625 = vmatprep.subr.mxu0 0.0
        %2626 = vmatpush1.xpose.msra.mxu0 0.0
        %2627 = vmatprep.subr.mxu0 0.0
        %2628 = vmatpush1.xpose.msra.mxu0 0.0
        %2629 = vmatprep.subr.mxu0 0.0
        %2630 = vmatpush1.xpose.msra.mxu0 0.0
        %2631 = vmatprep.subr.mxu0 0.0
        %2632 = vmatpush1.xpose.msra.mxu0 0.0
        %2633 = vmatprep.subr.mxu0 0.0
        %2634 = vmatpush1.xpose.msra.mxu0 0.0
        %2635 = vmatprep.subr.mxu0 0.0
        %2636 = vmatpush1.xpose.msra.mxu0 0.0
        %2637 = vmatprep.subr.mxu0 0.0
        %2638 = vmatpush1.xpose.msra.mxu0 0.0
        %2639 = vmatprep.subr.mxu0 0.0
        %2640 = vmatpush1.xpose.msra.mxu0 0.0
        %2641 = vmatprep.subr.mxu0 0.0
        %2642 = vmatpush1.xpose.msra.mxu0 0.0
        %2643 = vmatprep.subr.mxu0 0.0
        %2644 = vmatpush1.xpose.msra.mxu0 0.0
        %2645 = vmatprep.subr.mxu0 0.0
        %2646 = vmatpush1.xpose.msra.mxu0 0.0
        %2647 = vmatprep.subr.mxu0 0.0
        %2648 = vmatpush1.xpose.msra.mxu0 0.0
        %2649 = vmatprep.subr.mxu0 0.0
        %2650 = vmatpush1.xpose.msra.mxu0 0.0
        %2651 = vmatprep.subr.mxu0 0.0
        %2652 = vmatpush1.xpose.msra.mxu0 0.0
        %2653 = vmatprep.subr.mxu0 0.0
        %2654 = vmatpush1.xpose.msra.mxu0 0.0
        %2655 = vmatprep.subr.mxu0 0.0
        %2656 = vmatpush1.xpose.msra.mxu0 0.0
        %2657 = vmatprep.mubr.f32.mxu0 0.0
        %2658 = vmatmul.mubr.f32.gmra.mrb[0].mxu0 %v2588
        %v2659 = vpop.f32.mrb[0].mxu0
        %v2660 = vadd.f32 0.0, %v2659
        %v2661 = vpop.f32.mrb[0].mxu0
        %2662 = vdwg.mxu0
        %v2664 = vsel %vm636, %v2411, 0
        %v2667 = vsel %vm636, %v2495, 0
        %2669 = vmatprep.subr.mxu0 0.0
        %2670 = vmatpush1.xpose.msra.mxu0 %v2667
        %2671 = vmatprep.subr.mxu0 0.0
        %2672 = vmatpush1.xpose.msra.mxu0 0.0
        %2673 = vmatprep.subr.mxu0 0.0
        %2674 = vmatpush1.xpose.msra.mxu0 0.0
        %2675 = vmatprep.subr.mxu0 0.0
        %2676 = vmatpush1.xpose.msra.mxu0 0.0
        %2677 = vmatprep.subr.mxu0 0.0
        %2678 = vmatpush1.xpose.msra.mxu0 0.0
        %2679 = vmatprep.subr.mxu0 0.0
        %2680 = vmatpush1.xpose.msra.mxu0 0.0
        %2681 = vmatprep.subr.mxu0 0.0
        %2682 = vmatpush1.xpose.msra.mxu0 0.0
        %2683 = vmatprep.subr.mxu0 0.0
        %2684 = vmatpush1.xpose.msra.mxu0 0.0
        %2685 = vmatprep.subr.mxu0 0.0
        %2686 = vmatpush1.xpose.msra.mxu0 0.0
        %2687 = vmatprep.subr.mxu0 0.0
        %2688 = vmatpush1.xpose.msra.mxu0 0.0
        %2689 = vmatprep.subr.mxu0 0.0
        %2690 = vmatpush1.xpose.msra.mxu0 0.0
        %2691 = vmatprep.subr.mxu0 0.0
        %2692 = vmatpush1.xpose.msra.mxu0 0.0
        %2693 = vmatprep.subr.mxu0 0.0
        %2694 = vmatpush1.xpose.msra.mxu0 0.0
        %2695 = vmatprep.subr.mxu0 0.0
        %2696 = vmatpush1.xpose.msra.mxu0 0.0
        %2697 = vmatprep.subr.mxu0 0.0
        %2698 = vmatpush1.xpose.msra.mxu0 0.0
        %2699 = vmatprep.subr.mxu0 0.0
        %2700 = vmatpush1.xpose.msra.mxu0 0.0
        %2701 = vmatprep.subr.mxu0 0.0
        %2702 = vmatpush1.xpose.msra.mxu0 0.0
        %2703 = vmatprep.subr.mxu0 0.0
        %2704 = vmatpush1.xpose.msra.mxu0 0.0
        %2705 = vmatprep.subr.mxu0 0.0
        %2706 = vmatpush1.xpose.msra.mxu0 0.0
        %2707 = vmatprep.subr.mxu0 0.0
        %2708 = vmatpush1.xpose.msra.mxu0 0.0
        %2709 = vmatprep.subr.mxu0 0.0
        %2710 = vmatpush1.xpose.msra.mxu0 0.0
        %2711 = vmatprep.subr.mxu0 0.0
        %2712 = vmatpush1.xpose.msra.mxu0 0.0
        %2713 = vmatprep.subr.mxu0 0.0
        %2714 = vmatpush1.xpose.msra.mxu0 0.0
        %2715 = vmatprep.subr.mxu0 0.0
        %2716 = vmatpush1.xpose.msra.mxu0 0.0
        %2717 = vmatprep.subr.mxu0 0.0
        %2718 = vmatpush1.xpose.msra.mxu0 0.0
        %2719 = vmatprep.subr.mxu0 0.0
        %2720 = vmatpush1.xpose.msra.mxu0 0.0
        %2721 = vmatprep.subr.mxu0 0.0
        %2722 = vmatpush1.xpose.msra.mxu0 0.0
        %2723 = vmatprep.subr.mxu0 0.0
        %2724 = vmatpush1.xpose.msra.mxu0 0.0
        %2725 = vmatprep.subr.mxu0 0.0
        %2726 = vmatpush1.xpose.msra.mxu0 0.0
        %2727 = vmatprep.subr.mxu0 0.0
        %2728 = vmatpush1.xpose.msra.mxu0 0.0
        %2729 = vmatprep.subr.mxu0 0.0
        %2730 = vmatpush1.xpose.msra.mxu0 0.0
        %2731 = vmatprep.subr.mxu0 0.0
        %2732 = vmatpush1.xpose.msra.mxu0 0.0
        %2733 = vmatprep.mubr.f32.mxu0 0.0
        %2734 = vmatmul.mubr.f32.gmra.mrb[0].mxu0 %v2664
        %v2735 = vpop.f32.mrb[0].mxu0
        %v2736 = vadd.f32 0.0, %v2735
        %v2737 = vpop.f32.mrb[0].mxu0
        %2738 = vdwg.mxu0
        %v2739 = vsel %vm636, %v2660, -inf
        %2740 = vmax.xlane.f32.xlu0 %v2739
        %v2741 = vpop.xlane.xlu0 %2740
        %v2742 = vsel %vm636, %v2736, -inf
        %2743 = vmax.xlane.f32.xlu0 %v2742
        %v2744 = vpop.xlane.xlu0 %2743
        %v2745 = vsub.f32 %v2660, %v2741
        %v2746 = vsub.f32 %v2736, %v2744
        %v2747 = vmul.f32 %v2745, 1.442695
        %v2748 = vpow.pop %v2747
        %v2749 = vmul.f32 %v2746, 1.442695
        %v2750 = vpow.pop %v2749
        %v2751 = vsel %vm636, %v2748, 0.0
        %2752 = vadd.xlane.f32.xlu0 %v2751
        %v2753 = vpop.xlane.xlu0 %2752
        %v2754 = vsel %vm636, %v2750, 0.0
        %2755 = vadd.xlane.f32.xlu0 %v2754
        %v2756 = vpop.xlane.xlu0 %2755
        %v2758 = vsel %vm636, %v2748, 0
        %2760 = vmatprep.subr.mxu0 0.0
        %2761 = vmatpush1.msra.mxu0 %v2574
        %2762 = vmatprep.subr.mxu0 0.0
        %2763 = vmatpush1.msra.mxu0 0.0
        %2764 = vmatprep.subr.mxu0 0.0
        %2765 = vmatpush1.msra.mxu0 0.0
        %2766 = vmatprep.subr.mxu0 0.0
        %2767 = vmatpush1.msra.mxu0 0.0
        %2768 = vmatprep.subr.mxu0 0.0
        %2769 = vmatpush1.msra.mxu0 0.0
        %2770 = vmatprep.subr.mxu0 0.0
        %2771 = vmatpush1.msra.mxu0 0.0
        %2772 = vmatprep.subr.mxu0 0.0
        %2773 = vmatpush1.msra.mxu0 0.0
        %2774 = vmatprep.subr.mxu0 0.0
        %2775 = vmatpush1.msra.mxu0 0.0
        %2776 = vmatprep.subr.mxu0 0.0
        %2777 = vmatpush1.msra.mxu0 0.0
        %2778 = vmatprep.subr.mxu0 0.0
        %2779 = vmatpush1.msra.mxu0 0.0
        %2780 = vmatprep.subr.mxu0 0.0
        %2781 = vmatpush1.msra.mxu0 0.0
        %2782 = vmatprep.subr.mxu0 0.0
        %2783 = vmatpush1.msra.mxu0 0.0
        %2784 = vmatprep.subr.mxu0 0.0
        %2785 = vmatpush1.msra.mxu0 0.0
        %2786 = vmatprep.subr.mxu0 0.0
        %2787 = vmatpush1.msra.mxu0 0.0
        %2788 = vmatprep.subr.mxu0 0.0
        %2789 = vmatpush1.msra.mxu0 0.0
        %2790 = vmatprep.subr.mxu0 0.0
        %2791 = vmatpush1.msra.mxu0 0.0
        %2792 = vmatprep.subr.mxu0 0.0
        %2793 = vmatpush1.msra.mxu0 0.0
        %2794 = vmatprep.subr.mxu0 0.0
        %2795 = vmatpush1.msra.mxu0 0.0
        %2796 = vmatprep.subr.mxu0 0.0
        %2797 = vmatpush1.msra.mxu0 0.0
        %2798 = vmatprep.subr.mxu0 0.0
        %2799 = vmatpush1.msra.mxu0 0.0
        %2800 = vmatprep.subr.mxu0 0.0
        %2801 = vmatpush1.msra.mxu0 0.0
        %2802 = vmatprep.subr.mxu0 0.0
        %2803 = vmatpush1.msra.mxu0 0.0
        %2804 = vmatprep.subr.mxu0 0.0
        %2805 = vmatpush1.msra.mxu0 0.0
        %2806 = vmatprep.subr.mxu0 0.0
        %2807 = vmatpush1.msra.mxu0 0.0
        %2808 = vmatprep.subr.mxu0 0.0
        %2809 = vmatpush1.msra.mxu0 0.0
        %2810 = vmatprep.subr.mxu0 0.0
        %2811 = vmatpush1.msra.mxu0 0.0
        %2812 = vmatprep.subr.mxu0 0.0
        %2813 = vmatpush1.msra.mxu0 0.0
        %2814 = vmatprep.subr.mxu0 0.0
        %2815 = vmatpush1.msra.mxu0 0.0
        %2816 = vmatprep.subr.mxu0 0.0
        %2817 = vmatpush1.msra.mxu0 0.0
        %2818 = vmatprep.subr.mxu0 0.0
        %2819 = vmatpush1.msra.mxu0 0.0
        %2820 = vmatprep.subr.mxu0 0.0
        %2821 = vmatpush1.msra.mxu0 0.0
        %2822 = vmatprep.subr.mxu0 0.0
        %2823 = vmatpush1.msra.mxu0 0.0
        %2824 = vmatprep.mubr.f32.mxu0 0.0
        %2825 = vmatmul.mubr.f32.gmra.mrb[0].mxu0 %v2758
        %v2826 = vpop.f32.mrb[0].mxu0
        %v2827 = vadd.f32 0.0, %v2826
        %v2828 = vpop.f32.mrb[0].mxu0
        %2829 = vdwg.mxu0
        %v2831 = vsel %vm636, %v2750, 0
        %2833 = vmatprep.subr.mxu0 0.0
        %2834 = vmatpush1.msra.mxu0 %v2579
        %2835 = vmatprep.subr.mxu0 0.0
        %2836 = vmatpush1.msra.mxu0 0.0
        %2837 = vmatprep.subr.mxu0 0.0
        %2838 = vmatpush1.msra.mxu0 0.0
        %2839 = vmatprep.subr.mxu0 0.0
        %2840 = vmatpush1.msra.mxu0 0.0
        %2841 = vmatprep.subr.mxu0 0.0
        %2842 = vmatpush1.msra.mxu0 0.0
        %2843 = vmatprep.subr.mxu0 0.0
        %2844 = vmatpush1.msra.mxu0 0.0
        %2845 = vmatprep.subr.mxu0 0.0
        %2846 = vmatpush1.msra.mxu0 0.0
        %2847 = vmatprep.subr.mxu0 0.0
        %2848 = vmatpush1.msra.mxu0 0.0
        %2849 = vmatprep.subr.mxu0 0.0
        %2850 = vmatpush1.msra.mxu0 0.0
        %2851 = vmatprep.subr.mxu0 0.0
        %2852 = vmatpush1.msra.mxu0 0.0
        %2853 = vmatprep.subr.mxu0 0.0
        %2854 = vmatpush1.msra.mxu0 0.0
        %2855 = vmatprep.subr.mxu0 0.0
        %2856 = vmatpush1.msra.mxu0 0.0
        %2857 = vmatprep.subr.mxu0 0.0
        %2858 = vmatpush1.msra.mxu0 0.0
        %2859 = vmatprep.subr.mxu0 0.0
        %2860 = vmatpush1.msra.mxu0 0.0
        %2861 = vmatprep.subr.mxu0 0.0
        %2862 = vmatpush1.msra.mxu0 0.0
        %2863 = vmatprep.subr.mxu0 0.0
        %2864 = vmatpush1.msra.mxu0 0.0
        %2865 = vmatprep.subr.mxu0 0.0
        %2866 = vmatpush1.msra.mxu0 0.0
        %2867 = vmatprep.subr.mxu0 0.0
        %2868 = vmatpush1.msra.mxu0 0.0
        %2869 = vmatprep.subr.mxu0 0.0
        %2870 = vmatpush1.msra.mxu0 0.0
        %2871 = vmatprep.subr.mxu0 0.0
        %2872 = vmatpush1.msra.mxu0 0.0
        %2873 = vmatprep.subr.mxu0 0.0
        %2874 = vmatpush1.msra.mxu0 0.0
        %2875 = vmatprep.subr.mxu0 0.0
        %2876 = vmatpush1.msra.mxu0 0.0
        %2877 = vmatprep.subr.mxu0 0.0
        %2878 = vmatpush1.msra.mxu0 0.0
        %2879 = vmatprep.subr.mxu0 0.0
        %2880 = vmatpush1.msra.mxu0 0.0
        %2881 = vmatprep.subr.mxu0 0.0
        %2882 = vmatpush1.msra.mxu0 0.0
        %2883 = vmatprep.subr.mxu0 0.0
        %2884 = vmatpush1.msra.mxu0 0.0
        %2885 = vmatprep.subr.mxu0 0.0
        %2886 = vmatpush1.msra.mxu0 0.0
        %2887 = vmatprep.subr.mxu0 0.0
        %2888 = vmatpush1.msra.mxu0 0.0
        %2889 = vmatprep.subr.mxu0 0.0
        %2890 = vmatpush1.msra.mxu0 0.0
        %2891 = vmatprep.subr.mxu0 0.0
        %2892 = vmatpush1.msra.mxu0 0.0
        %2893 = vmatprep.subr.mxu0 0.0
        %2894 = vmatpush1.msra.mxu0 0.0
        %2895 = vmatprep.subr.mxu0 0.0
        %2896 = vmatpush1.msra.mxu0 0.0
        %2897 = vmatprep.mubr.f32.mxu0 0.0
        %2898 = vmatmul.mubr.f32.gmra.mrb[0].mxu0 %v2831
        %v2899 = vpop.f32.mrb[0].mxu0
        %v2900 = vadd.f32 0.0, %v2899
        %v2901 = vpop.f32.mrb[0].mxu0
        %2902 = vdwg.mxu0
        %v2903 = vrcp.pop %v2753
        %v2904 = vrcp.pop %v2756
        %v2905 = vmul.f32 %v2827, %v2903
        %v2906 = vmul.f32 %v2900, %v2904
        %2907 = vrot.lane.b32.xlu0 %v2406, 120
        %v2908 = vpop.permute.xlu0 %2907
        %2909 = vrot.lane.b32.xlu0 %v2490, 120
        %v2910 = vpop.permute.xlu0 %2909
        %v2911 = vsel %vm636, %v2908, 0
        %v2913 = vsel %vm636, %v2910, 0
        %2915 = vmatprep.subr.mxu0 0.0
        %2916 = vmatpush1.xpose.msra.mxu0 %v2913
        %2917 = vmatprep.subr.mxu0 0.0
        %2918 = vmatpush1.xpose.msra.mxu0 0.0
        %2919 = vmatprep.subr.mxu0 0.0
        %2920 = vmatpush1.xpose.msra.mxu0 0.0
        %2921 = vmatprep.subr.mxu0 0.0
        %2922 = vmatpush1.xpose.msra.mxu0 0.0
        %2923 = vmatprep.subr.mxu0 0.0
        %2924 = vmatpush1.xpose.msra.mxu0 0.0
        %2925 = vmatprep.subr.mxu0 0.0
        %2926 = vmatpush1.xpose.msra.mxu0 0.0
        %2927 = vmatprep.subr.mxu0 0.0
        %2928 = vmatpush1.xpose.msra.mxu0 0.0
        %2929 = vmatprep.subr.mxu0 0.0
        %2930 = vmatpush1.xpose.msra.mxu0 0.0
        %2931 = vmatprep.subr.mxu0 0.0
        %2932 = vmatpush1.xpose.msra.mxu0 0.0
        %2933 = vmatprep.subr.mxu0 0.0
        %2934 = vmatpush1.xpose.msra.mxu0 0.0
        %2935 = vmatprep.subr.mxu0 0.0
        %2936 = vmatpush1.xpose.msra.mxu0 0.0
        %2937 = vmatprep.subr.mxu0 0.0
        %2938 = vmatpush1.xpose.msra.mxu0 0.0
        %2939 = vmatprep.subr.mxu0 0.0
        %2940 = vmatpush1.xpose.msra.mxu0 0.0
        %2941 = vmatprep.subr.mxu0 0.0
        %2942 = vmatpush1.xpose.msra.mxu0 0.0
        %2943 = vmatprep.subr.mxu0 0.0
        %2944 = vmatpush1.xpose.msra.mxu0 0.0
        %2945 = vmatprep.subr.mxu0 0.0
        %2946 = vmatpush1.xpose.msra.mxu0 0.0
        %2947 = vmatprep.subr.mxu0 0.0
        %2948 = vmatpush1.xpose.msra.mxu0 0.0
        %2949 = vmatprep.subr.mxu0 0.0
        %2950 = vmatpush1.xpose.msra.mxu0 0.0
        %2951 = vmatprep.subr.mxu0 0.0
        %2952 = vmatpush1.xpose.msra.mxu0 0.0
        %2953 = vmatprep.subr.mxu0 0.0
        %2954 = vmatpush1.xpose.msra.mxu0 0.0
        %2955 = vmatprep.subr.mxu0 0.0
        %2956 = vmatpush1.xpose.msra.mxu0 0.0
        %2957 = vmatprep.subr.mxu0 0.0
        %2958 = vmatpush1.xpose.msra.mxu0 0.0
        %2959 = vmatprep.subr.mxu0 0.0
        %2960 = vmatpush1.xpose.msra.mxu0 0.0
        %2961 = vmatprep.subr.mxu0 0.0
        %2962 = vmatpush1.xpose.msra.mxu0 0.0
        %2963 = vmatprep.subr.mxu0 0.0
        %2964 = vmatpush1.xpose.msra.mxu0 0.0
        %2965 = vmatprep.subr.mxu0 0.0
        %2966 = vmatpush1.xpose.msra.mxu0 0.0
        %2967 = vmatprep.subr.mxu0 0.0
        %2968 = vmatpush1.xpose.msra.mxu0 0.0
        %2969 = vmatprep.subr.mxu0 0.0
        %2970 = vmatpush1.xpose.msra.mxu0 0.0
        %2971 = vmatprep.subr.mxu0 0.0
        %2972 = vmatpush1.xpose.msra.mxu0 0.0
        %2973 = vmatprep.subr.mxu0 0.0
        %2974 = vmatpush1.xpose.msra.mxu0 0.0
        %2975 = vmatprep.subr.mxu0 0.0
        %2976 = vmatpush1.xpose.msra.mxu0 0.0
        %2977 = vmatprep.subr.mxu0 0.0
        %2978 = vmatpush1.xpose.msra.mxu0 0.0
        %2979 = vmatprep.mubr.f32.mxu0 0.0
        %2980 = vmatmul.mubr.f32.gmra.mrb[0].mxu0 %v2911
        %v2981 = vpop.f32.mrb[0].mxu0
        %v2982 = vadd.f32 0.0, %v2981
        %v2983 = vpop.f32.mrb[0].mxu0
        %2984 = vdwg.mxu0
        %2985 = vrot.lane.b32.xlu0 %v2411, 120
        %v2986 = vpop.permute.xlu0 %2985
        %2987 = vrot.lane.b32.xlu0 %v2495, 120
        %v2988 = vpop.permute.xlu0 %2987
        %v2989 = vsel %vm636, %v2986, 0
        %v2991 = vsel %vm636, %v2988, 0
        %2993 = vmatprep.subr.mxu0 0.0
        %2994 = vmatpush1.xpose.msra.mxu0 %v2991
        %2995 = vmatprep.subr.mxu0 0.0
        %2996 = vmatpush1.xpose.msra.mxu0 0.0
        %2997 = vmatprep.subr.mxu0 0.0
        %2998 = vmatpush1.xpose.msra.mxu0 0.0
        %2999 = vmatprep.subr.mxu0 0.0
        %3000 = vmatpush1.xpose.msra.mxu0 0.0
        %3001 = vmatprep.subr.mxu0 0.0
        %3002 = vmatpush1.xpose.msra.mxu0 0.0
        %3003 = vmatprep.subr.mxu0 0.0
        %3004 = vmatpush1.xpose.msra.mxu0 0.0
        %3005 = vmatprep.subr.mxu0 0.0
        %3006 = vmatpush1.xpose.msra.mxu0 0.0
        %3007 = vmatprep.subr.mxu0 0.0
        %3008 = vmatpush1.xpose.msra.mxu0 0.0
        %3009 = vmatprep.subr.mxu0 0.0
        %3010 = vmatpush1.xpose.msra.mxu0 0.0
        %3011 = vmatprep.subr.mxu0 0.0
        %3012 = vmatpush1.xpose.msra.mxu0 0.0
        %3013 = vmatprep.subr.mxu0 0.0
        %3014 = vmatpush1.xpose.msra.mxu0 0.0
        %3015 = vmatprep.subr.mxu0 0.0
        %3016 = vmatpush1.xpose.msra.mxu0 0.0
        %3017 = vmatprep.subr.mxu0 0.0
        %3018 = vmatpush1.xpose.msra.mxu0 0.0
        %3019 = vmatprep.subr.mxu0 0.0
        %3020 = vmatpush1.xpose.msra.mxu0 0.0
        %3021 = vmatprep.subr.mxu0 0.0
        %3022 = vmatpush1.xpose.msra.mxu0 0.0
        %3023 = vmatprep.subr.mxu0 0.0
        %3024 = vmatpush1.xpose.msra.mxu0 0.0
        %3025 = vmatprep.subr.mxu0 0.0
        %3026 = vmatpush1.xpose.msra.mxu0 0.0
        %3027 = vmatprep.subr.mxu0 0.0
        %3028 = vmatpush1.xpose.msra.mxu0 0.0
        %3029 = vmatprep.subr.mxu0 0.0
        %3030 = vmatpush1.xpose.msra.mxu0 0.0
        %3031 = vmatprep.subr.mxu0 0.0
        %3032 = vmatpush1.xpose.msra.mxu0 0.0
        %3033 = vmatprep.subr.mxu0 0.0
        %3034 = vmatpush1.xpose.msra.mxu0 0.0
        %3035 = vmatprep.subr.mxu0 0.0
        %3036 = vmatpush1.xpose.msra.mxu0 0.0
        %3037 = vmatprep.subr.mxu0 0.0
        %3038 = vmatpush1.xpose.msra.mxu0 0.0
        %3039 = vmatprep.subr.mxu0 0.0
        %3040 = vmatpush1.xpose.msra.mxu0 0.0
        %3041 = vmatprep.subr.mxu0 0.0
        %3042 = vmatpush1.xpose.msra.mxu0 0.0
        %3043 = vmatprep.subr.mxu0 0.0
        %3044 = vmatpush1.xpose.msra.mxu0 0.0
        %3045 = vmatprep.subr.mxu0 0.0
        %3046 = vmatpush1.xpose.msra.mxu0 0.0
        %3047 = vmatprep.subr.mxu0 0.0
        %3048 = vmatpush1.xpose.msra.mxu0 0.0
        %3049 = vmatprep.subr.mxu0 0.0
        %3050 = vmatpush1.xpose.msra.mxu0 0.0
        %3051 = vmatprep.subr.mxu0 0.0
        %3052 = vmatpush1.xpose.msra.mxu0 0.0
        %3053 = vmatprep.subr.mxu0 0.0
        %3054 = vmatpush1.xpose.msra.mxu0 0.0
        %3055 = vmatprep.subr.mxu0 0.0
        %3056 = vmatpush1.xpose.msra.mxu0 0.0
        %3057 = vmatprep.mubr.f32.mxu0 0.0
        %3058 = vmatmul.mubr.f32.gmra.mrb[0].mxu0 %v2989
        %v3059 = vpop.f32.mrb[0].mxu0
        %v3060 = vadd.f32 0.0, %v3059
        %v3061 = vpop.f32.mrb[0].mxu0
        %3062 = vdwg.mxu0
        %v3063 = vsel %vm636, %v2982, -inf
        %3064 = vmax.xlane.f32.xlu0 %v3063
        %v3065 = vpop.xlane.xlu0 %3064
        %v3066 = vsel %vm636, %v3060, -inf
        %3067 = vmax.xlane.f32.xlu0 %v3066
        %v3068 = vpop.xlane.xlu0 %3067
        %v3069 = vsub.f32 %v2982, %v3065
        %v3070 = vsub.f32 %v3060, %v3068
        %v3071 = vmul.f32 %v3069, 1.442695
        %v3072 = vpow.pop %v3071
        %v3073 = vmul.f32 %v3070, 1.442695
        %v3074 = vpow.pop %v3073
        %v3075 = vsel %vm636, %v3072, 0.0
        %3076 = vadd.xlane.f32.xlu0 %v3075
        %v3077 = vpop.xlane.xlu0 %3076
        %v3078 = vsel %vm636, %v3074, 0.0
        %3079 = vadd.xlane.f32.xlu0 %v3078
        %v3080 = vpop.xlane.xlu0 %3079
        %3082 = vrot.lane.b32.xlu0 %v2574, 120
        %v3083 = vpop.permute.xlu0 %3082
        %v3086 = vsel %vm636, %v3072, 0
        %3088 = vmatprep.subr.mxu0 0.0
        %3089 = vmatpush1.msra.mxu0 %v3083
        %3090 = vmatprep.subr.mxu0 0.0
        %3091 = vmatpush1.msra.mxu0 0.0
        %3092 = vmatprep.subr.mxu0 0.0
        %3093 = vmatpush1.msra.mxu0 0.0
        %3094 = vmatprep.subr.mxu0 0.0
        %3095 = vmatpush1.msra.mxu0 0.0
        %3096 = vmatprep.subr.mxu0 0.0
        %3097 = vmatpush1.msra.mxu0 0.0
        %3098 = vmatprep.subr.mxu0 0.0
        %3099 = vmatpush1.msra.mxu0 0.0
        %3100 = vmatprep.subr.mxu0 0.0
        %3101 = vmatpush1.msra.mxu0 0.0
        %3102 = vmatprep.subr.mxu0 0.0
        %3103 = vmatpush1.msra.mxu0 0.0
        %3104 = vmatprep.subr.mxu0 0.0
        %3105 = vmatpush1.msra.mxu0 0.0
        %3106 = vmatprep.subr.mxu0 0.0
        %3107 = vmatpush1.msra.mxu0 0.0
        %3108 = vmatprep.subr.mxu0 0.0
        %3109 = vmatpush1.msra.mxu0 0.0
        %3110 = vmatprep.subr.mxu0 0.0
        %3111 = vmatpush1.msra.mxu0 0.0
        %3112 = vmatprep.subr.mxu0 0.0
        %3113 = vmatpush1.msra.mxu0 0.0
        %3114 = vmatprep.subr.mxu0 0.0
        %3115 = vmatpush1.msra.mxu0 0.0
        %3116 = vmatprep.subr.mxu0 0.0
        %3117 = vmatpush1.msra.mxu0 0.0
        %3118 = vmatprep.subr.mxu0 0.0
        %3119 = vmatpush1.msra.mxu0 0.0
        %3120 = vmatprep.subr.mxu0 0.0
        %3121 = vmatpush1.msra.mxu0 0.0
        %3122 = vmatprep.subr.mxu0 0.0
        %3123 = vmatpush1.msra.mxu0 0.0
        %3124 = vmatprep.subr.mxu0 0.0
        %3125 = vmatpush1.msra.mxu0 0.0
        %3126 = vmatprep.subr.mxu0 0.0
        %3127 = vmatpush1.msra.mxu0 0.0
        %3128 = vmatprep.subr.mxu0 0.0
        %3129 = vmatpush1.msra.mxu0 0.0
        %3130 = vmatprep.subr.mxu0 0.0
        %3131 = vmatpush1.msra.mxu0 0.0
        %3132 = vmatprep.subr.mxu0 0.0
        %3133 = vmatpush1.msra.mxu0 0.0
        %3134 = vmatprep.subr.mxu0 0.0
        %3135 = vmatpush1.msra.mxu0 0.0
        %3136 = vmatprep.subr.mxu0 0.0
        %3137 = vmatpush1.msra.mxu0 0.0
        %3138 = vmatprep.subr.mxu0 0.0
        %3139 = vmatpush1.msra.mxu0 0.0
        %3140 = vmatprep.subr.mxu0 0.0
        %3141 = vmatpush1.msra.mxu0 0.0
        %3142 = vmatprep.subr.mxu0 0.0
        %3143 = vmatpush1.msra.mxu0 0.0
        %3144 = vmatprep.subr.mxu0 0.0
        %3145 = vmatpush1.msra.mxu0 0.0
        %3146 = vmatprep.subr.mxu0 0.0
        %3147 = vmatpush1.msra.mxu0 0.0
        %3148 = vmatprep.subr.mxu0 0.0
        %3149 = vmatpush1.msra.mxu0 0.0
        %3150 = vmatprep.subr.mxu0 0.0
        %3151 = vmatpush1.msra.mxu0 0.0
        %3152 = vmatprep.mubr.f32.mxu0 0.0
        %3153 = vmatmul.mubr.f32.gmra.mrb[0].mxu0 %v3086
        %v3154 = vpop.f32.mrb[0].mxu0
        %v3155 = vadd.f32 0.0, %v3154
        %v3156 = vpop.f32.mrb[0].mxu0
        %3157 = vdwg.mxu0
        %3159 = vrot.lane.b32.xlu0 %v2579, 120
        %v3160 = vpop.permute.xlu0 %3159
        %v3163 = vsel %vm636, %v3074, 0
        %3165 = vmatprep.subr.mxu0 0.0
        %3166 = vmatpush1.msra.mxu0 %v3160
        %3167 = vmatprep.subr.mxu0 0.0
        %3168 = vmatpush1.msra.mxu0 0.0
        %3169 = vmatprep.subr.mxu0 0.0
        %3170 = vmatpush1.msra.mxu0 0.0
        %3171 = vmatprep.subr.mxu0 0.0
        %3172 = vmatpush1.msra.mxu0 0.0
        %3173 = vmatprep.subr.mxu0 0.0
        %3174 = vmatpush1.msra.mxu0 0.0
        %3175 = vmatprep.subr.mxu0 0.0
        %3176 = vmatpush1.msra.mxu0 0.0
        %3177 = vmatprep.subr.mxu0 0.0
        %3178 = vmatpush1.msra.mxu0 0.0
        %3179 = vmatprep.subr.mxu0 0.0
        %3180 = vmatpush1.msra.mxu0 0.0
        %3181 = vmatprep.subr.mxu0 0.0
        %3182 = vmatpush1.msra.mxu0 0.0
        %3183 = vmatprep.subr.mxu0 0.0
        %3184 = vmatpush1.msra.mxu0 0.0
        %3185 = vmatprep.subr.mxu0 0.0
        %3186 = vmatpush1.msra.mxu0 0.0
        %3187 = vmatprep.subr.mxu0 0.0
        %3188 = vmatpush1.msra.mxu0 0.0
        %3189 = vmatprep.subr.mxu0 0.0
        %3190 = vmatpush1.msra.mxu0 0.0
        %3191 = vmatprep.subr.mxu0 0.0
        %3192 = vmatpush1.msra.mxu0 0.0
        %3193 = vmatprep.subr.mxu0 0.0
        %3194 = vmatpush1.msra.mxu0 0.0
        %3195 = vmatprep.subr.mxu0 0.0
        %3196 = vmatpush1.msra.mxu0 0.0
        %3197 = vmatprep.subr.mxu0 0.0
        %3198 = vmatpush1.msra.mxu0 0.0
        %3199 = vmatprep.subr.mxu0 0.0
        %3200 = vmatpush1.msra.mxu0 0.0
        %3201 = vmatprep.subr.mxu0 0.0
        %3202 = vmatpush1.msra.mxu0 0.0
        %3203 = vmatprep.subr.mxu0 0.0
        %3204 = vmatpush1.msra.mxu0 0.0
        %3205 = vmatprep.subr.mxu0 0.0
        %3206 = vmatpush1.msra.mxu0 0.0
        %3207 = vmatprep.subr.mxu0 0.0
        %3208 = vmatpush1.msra.mxu0 0.0
        %3209 = vmatprep.subr.mxu0 0.0
        %3210 = vmatpush1.msra.mxu0 0.0
        %3211 = vmatprep.subr.mxu0 0.0
        %3212 = vmatpush1.msra.mxu0 0.0
        %3213 = vmatprep.subr.mxu0 0.0
        %3214 = vmatpush1.msra.mxu0 0.0
        %3215 = vmatprep.subr.mxu0 0.0
        %3216 = vmatpush1.msra.mxu0 0.0
        %3217 = vmatprep.subr.mxu0 0.0
        %3218 = vmatpush1.msra.mxu0 0.0
        %3219 = vmatprep.subr.mxu0 0.0
        %3220 = vmatpush1.msra.mxu0 0.0
        %3221 = vmatprep.subr.mxu0 0.0
        %3222 = vmatpush1.msra.mxu0 0.0
        %3223 = vmatprep.subr.mxu0 0.0
        %3224 = vmatpush1.msra.mxu0 0.0
        %3225 = vmatprep.subr.mxu0 0.0
        %3226 = vmatpush1.msra.mxu0 0.0
        %3227 = vmatprep.subr.mxu0 0.0
        %3228 = vmatpush1.msra.mxu0 0.0
        %3229 = vmatprep.mubr.f32.mxu0 0.0
        %3230 = vmatmul.mubr.f32.gmra.mrb[0].mxu0 %v3163
        %v3231 = vpop.f32.mrb[0].mxu0
        %v3232 = vadd.f32 0.0, %v3231
        %v3233 = vpop.f32.mrb[0].mxu0
        %3234 = vdwg.mxu0
        %v3235 = vrcp.pop %v3077
        %v3236 = vrcp.pop %v3080
        %v3237 = vmul.f32 %v3155, %v3235
        %v3238 = vmul.f32 %v3232, %v3236
        %v3240 = vsel %vm636, %v3237, 0
        %v3243 = vsel %vm636, %v3238, 0
        %3245 = vmatprep.subr.mxu0 0.0
        %3246 = vmatpush1.msra.mxu0 %v2584
        %3247 = vmatprep.subr.mxu0 0.0
        %3248 = vmatpush1.msra.mxu0 0.0
        %3249 = vmatprep.subr.mxu0 0.0
        %3250 = vmatpush1.msra.mxu0 0.0
        %3251 = vmatprep.subr.mxu0 0.0
        %3252 = vmatpush1.msra.mxu0 0.0
        %3253 = vmatprep.subr.mxu0 0.0
        %3254 = vmatpush1.msra.mxu0 0.0
        %3255 = vmatprep.subr.mxu0 0.0
        %3256 = vmatpush1.msra.mxu0 0.0
        %3257 = vmatprep.subr.mxu0 0.0
        %3258 = vmatpush1.msra.mxu0 0.0
        %3259 = vmatprep.subr.mxu0 0.0
        %3260 = vmatpush1.msra.mxu0 0.0
        %3261 = vmatprep.subr.mxu0 0.0
        %3262 = vmatpush1.msra.mxu0 0.0
        %3263 = vmatprep.subr.mxu0 0.0
        %3264 = vmatpush1.msra.mxu0 0.0
        %3265 = vmatprep.subr.mxu0 0.0
        %3266 = vmatpush1.msra.mxu0 0.0
        %3267 = vmatprep.subr.mxu0 0.0
        %3268 = vmatpush1.msra.mxu0 0.0
        %3269 = vmatprep.subr.mxu0 0.0
        %3270 = vmatpush1.msra.mxu0 0.0
        %3271 = vmatprep.subr.mxu0 0.0
        %3272 = vmatpush1.msra.mxu0 0.0
        %3273 = vmatprep.subr.mxu0 0.0
        %3274 = vmatpush1.msra.mxu0 0.0
        %3275 = vmatprep.subr.mxu0 0.0
        %3276 = vmatpush1.msra.mxu0 0.0
        %3277 = vmatprep.subr.mxu0 0.0
        %3278 = vmatpush1.msra.mxu0 0.0
        %3279 = vmatprep.subr.mxu0 0.0
        %3280 = vmatpush1.msra.mxu0 0.0
        %3281 = vmatprep.subr.mxu0 0.0
        %3282 = vmatpush1.msra.mxu0 0.0
        %3283 = vmatprep.subr.mxu0 0.0
        %3284 = vmatpush1.msra.mxu0 0.0
        %3285 = vmatprep.subr.mxu0 0.0
        %3286 = vmatpush1.msra.mxu0 0.0
        %3287 = vmatprep.subr.mxu0 0.0
        %3288 = vmatpush1.msra.mxu0 0.0
        %3289 = vmatprep.subr.mxu0 0.0
        %3290 = vmatpush1.msra.mxu0 0.0
        %3291 = vmatprep.subr.mxu0 0.0
        %3292 = vmatpush1.msra.mxu0 0.0
        %3293 = vmatprep.subr.mxu0 0.0
        %3294 = vmatpush1.msra.mxu0 0.0
        %3295 = vmatprep.subr.mxu0 0.0
        %3296 = vmatpush1.msra.mxu0 0.0
        %3297 = vmatprep.subr.mxu0 0.0
        %3298 = vmatpush1.msra.mxu0 0.0
        %3299 = vmatprep.subr.mxu0 0.0
        %3300 = vmatpush1.msra.mxu0 0.0
        %3301 = vmatprep.subr.mxu0 0.0
        %3302 = vmatpush1.msra.mxu0 0.0
        %3303 = vmatprep.subr.mxu0 0.0
        %3304 = vmatpush1.msra.mxu0 0.0
        %3305 = vmatprep.subr.mxu0 0.0
        %3306 = vmatpush1.msra.mxu0 0.0
        %3307 = vmatprep.subr.mxu0 0.0
        %3308 = vmatpush1.msra.mxu0 0.0
        %3309 = vmatprep.mubr.f32.mxu0 0.0
        %3310 = vmatmul.mubr.f32.gmra.mrb[0].mxu0 %v3240
        %v3311 = vpop.f32.mrb[0].mxu0
        %v3312 = vadd.f32 0.0, %v3311
        %v3313 = vpop.f32.mrb[0].mxu0
        %3314 = vmatprep.mubr.f32.mxu0 0.0
        %3315 = vmatmul.mubr.f32.gmra.mrb[0].mxu0 %v3243
        %v3316 = vpop.f32.mrb[0].mxu0
        %v3317 = vadd.f32 0.0, %v3316
        %v3318 = vpop.f32.mrb[0].mxu0
        %3319 = vdwg.mxu0
        %v3321 = vsel %vm636, %v2905, 0
        %v3324 = vsel %vm636, %v2906, 0
        %3326 = vmatprep.subr.mxu0 0.0
        %3327 = vmatpush1.msra.mxu0 %v2583
        %3328 = vmatprep.subr.mxu0 0.0
        %3329 = vmatpush1.msra.mxu0 0.0
        %3330 = vmatprep.subr.mxu0 0.0
        %3331 = vmatpush1.msra.mxu0 0.0
        %3332 = vmatprep.subr.mxu0 0.0
        %3333 = vmatpush1.msra.mxu0 0.0
        %3334 = vmatprep.subr.mxu0 0.0
        %3335 = vmatpush1.msra.mxu0 0.0
        %3336 = vmatprep.subr.mxu0 0.0
        %3337 = vmatpush1.msra.mxu0 0.0
        %3338 = vmatprep.subr.mxu0 0.0
        %3339 = vmatpush1.msra.mxu0 0.0
        %3340 = vmatprep.subr.mxu0 0.0
        %3341 = vmatpush1.msra.mxu0 0.0
        %3342 = vmatprep.subr.mxu0 0.0
        %3343 = vmatpush1.msra.mxu0 0.0
        %3344 = vmatprep.subr.mxu0 0.0
        %3345 = vmatpush1.msra.mxu0 0.0
        %3346 = vmatprep.subr.mxu0 0.0
        %3347 = vmatpush1.msra.mxu0 0.0
        %3348 = vmatprep.subr.mxu0 0.0
        %3349 = vmatpush1.msra.mxu0 0.0
        %3350 = vmatprep.subr.mxu0 0.0
        %3351 = vmatpush1.msra.mxu0 0.0
        %3352 = vmatprep.subr.mxu0 0.0
        %3353 = vmatpush1.msra.mxu0 0.0
        %3354 = vmatprep.subr.mxu0 0.0
        %3355 = vmatpush1.msra.mxu0 0.0
        %3356 = vmatprep.subr.mxu0 0.0
        %3357 = vmatpush1.msra.mxu0 0.0
        %3358 = vmatprep.subr.mxu0 0.0
        %3359 = vmatpush1.msra.mxu0 0.0
        %3360 = vmatprep.subr.mxu0 0.0
        %3361 = vmatpush1.msra.mxu0 0.0
        %3362 = vmatprep.subr.mxu0 0.0
        %3363 = vmatpush1.msra.mxu0 0.0
        %3364 = vmatprep.subr.mxu0 0.0
        %3365 = vmatpush1.msra.mxu0 0.0
        %3366 = vmatprep.subr.mxu0 0.0
        %3367 = vmatpush1.msra.mxu0 0.0
        %3368 = vmatprep.subr.mxu0 0.0
        %3369 = vmatpush1.msra.mxu0 0.0
        %3370 = vmatprep.subr.mxu0 0.0
        %3371 = vmatpush1.msra.mxu0 0.0
        %3372 = vmatprep.subr.mxu0 0.0
        %3373 = vmatpush1.msra.mxu0 0.0
        %3374 = vmatprep.subr.mxu0 0.0
        %3375 = vmatpush1.msra.mxu0 0.0
        %3376 = vmatprep.subr.mxu0 0.0
        %3377 = vmatpush1.msra.mxu0 0.0
        %3378 = vmatprep.subr.mxu0 0.0
        %3379 = vmatpush1.msra.mxu0 0.0
        %3380 = vmatprep.subr.mxu0 0.0
        %3381 = vmatpush1.msra.mxu0 0.0
        %3382 = vmatprep.subr.mxu0 0.0
        %3383 = vmatpush1.msra.mxu0 0.0
        %3384 = vmatprep.subr.mxu0 0.0
        %3385 = vmatpush1.msra.mxu0 0.0
        %3386 = vmatprep.subr.mxu0 0.0
        %3387 = vmatpush1.msra.mxu0 0.0
        %3388 = vmatprep.subr.mxu0 0.0
        %3389 = vmatpush1.msra.mxu0 0.0
        %3390 = vmatprep.mubr.f32.mxu0 0.0
        %3391 = vmatmul.mubr.f32.gmra.mrb[0].mxu0 %v3321
        %v3392 = vpop.f32.mrb[0].mxu0
        %v3393 = vadd.f32 %v3312, %v3392
        %v3394 = vpop.f32.mrb[0].mxu0
        %3395 = vmatprep.mubr.f32.mxu0 0.0
        %3396 = vmatmul.mubr.f32.gmra.mrb[0].mxu0 %v3324
        %v3397 = vpop.f32.mrb[0].mxu0
        %v3398 = vadd.f32 %v3317, %v3397
        %v3399 = vpop.f32.mrb[0].mxu0
        %3400 = vdwg.mxu0
        %3401 = vrot.lane.b32.xlu0 %v2406, 112
        %v3402 = vpop.permute.xlu0 %3401
        %3403 = vrot.lane.b32.xlu0 %v2490, 112
        %v3404 = vpop.permute.xlu0 %3403
        %v3405 = vsel %vm636, %v3402, 0
        %v3407 = vsel %vm636, %v3404, 0
        %3409 = vmatprep.subr.mxu0 0.0
        %3410 = vmatpush1.xpose.msra.mxu0 %v3407
        %3411 = vmatprep.subr.mxu0 0.0
        %3412 = vmatpush1.xpose.msra.mxu0 0.0
        %3413 = vmatprep.subr.mxu0 0.0
        %3414 = vmatpush1.xpose.msra.mxu0 0.0
        %3415 = vmatprep.subr.mxu0 0.0
        %3416 = vmatpush1.xpose.msra.mxu0 0.0
        %3417 = vmatprep.subr.mxu0 0.0
        %3418 = vmatpush1.xpose.msra.mxu0 0.0
        %3419 = vmatprep.subr.mxu0 0.0
        %3420 = vmatpush1.xpose.msra.mxu0 0.0
        %3421 = vmatprep.subr.mxu0 0.0
        %3422 = vmatpush1.xpose.msra.mxu0 0.0
        %3423 = vmatprep.subr.mxu0 0.0
        %3424 = vmatpush1.xpose.msra.mxu0 0.0
        %3425 = vmatprep.subr.mxu0 0.0
        %3426 = vmatpush1.xpose.msra.mxu0 0.0
        %3427 = vmatprep.subr.mxu0 0.0
        %3428 = vmatpush1.xpose.msra.mxu0 0.0
        %3429 = vmatprep.subr.mxu0 0.0
        %3430 = vmatpush1.xpose.msra.mxu0 0.0
        %3431 = vmatprep.subr.mxu0 0.0
        %3432 = vmatpush1.xpose.msra.mxu0 0.0
        %3433 = vmatprep.subr.mxu0 0.0
        %3434 = vmatpush1.xpose.msra.mxu0 0.0
        %3435 = vmatprep.subr.mxu0 0.0
        %3436 = vmatpush1.xpose.msra.mxu0 0.0
        %3437 = vmatprep.subr.mxu0 0.0
        %3438 = vmatpush1.xpose.msra.mxu0 0.0
        %3439 = vmatprep.subr.mxu0 0.0
        %3440 = vmatpush1.xpose.msra.mxu0 0.0
        %3441 = vmatprep.subr.mxu0 0.0
        %3442 = vmatpush1.xpose.msra.mxu0 0.0
        %3443 = vmatprep.subr.mxu0 0.0
        %3444 = vmatpush1.xpose.msra.mxu0 0.0
        %3445 = vmatprep.subr.mxu0 0.0
        %3446 = vmatpush1.xpose.msra.mxu0 0.0
        %3447 = vmatprep.subr.mxu0 0.0
        %3448 = vmatpush1.xpose.msra.mxu0 0.0
        %3449 = vmatprep.subr.mxu0 0.0
        %3450 = vmatpush1.xpose.msra.mxu0 0.0
        %3451 = vmatprep.subr.mxu0 0.0
        %3452 = vmatpush1.xpose.msra.mxu0 0.0
        %3453 = vmatprep.subr.mxu0 0.0
        %3454 = vmatpush1.xpose.msra.mxu0 0.0
        %3455 = vmatprep.subr.mxu0 0.0
        %3456 = vmatpush1.xpose.msra.mxu0 0.0
        %3457 = vmatprep.subr.mxu0 0.0
        %3458 = vmatpush1.xpose.msra.mxu0 0.0
        %3459 = vmatprep.subr.mxu0 0.0
        %3460 = vmatpush1.xpose.msra.mxu0 0.0
        %3461 = vmatprep.subr.mxu0 0.0
        %3462 = vmatpush1.xpose.msra.mxu0 0.0
        %3463 = vmatprep.subr.mxu0 0.0
        %3464 = vmatpush1.xpose.msra.mxu0 0.0
        %3465 = vmatprep.subr.mxu0 0.0
        %3466 = vmatpush1.xpose.msra.mxu0 0.0
        %3467 = vmatprep.subr.mxu0 0.0
        %3468 = vmatpush1.xpose.msra.mxu0 0.0
        %3469 = vmatprep.subr.mxu0 0.0
        %3470 = vmatpush1.xpose.msra.mxu0 0.0
        %3471 = vmatprep.subr.mxu0 0.0
        %3472 = vmatpush1.xpose.msra.mxu0 0.0
        %3473 = vmatprep.mubr.f32.mxu0 0.0
        %3474 = vmatmul.mubr.f32.gmra.mrb[0].mxu0 %v3405
        %v3475 = vpop.f32.mrb[0].mxu0
        %v3476 = vadd.f32 0.0, %v3475
        %v3477 = vpop.f32.mrb[0].mxu0
        %3478 = vdwg.mxu0
        %3479 = vrot.lane.b32.xlu0 %v2411, 112
        %v3480 = vpop.permute.xlu0 %3479
        %3481 = vrot.lane.b32.xlu0 %v2495, 112
        %v3482 = vpop.permute.xlu0 %3481
        %v3483 = vsel %vm636, %v3480, 0
        %v3485 = vsel %vm636, %v3482, 0
        %3487 = vmatprep.subr.mxu0 0.0
        %3488 = vmatpush1.xpose.msra.mxu0 %v3485
        %3489 = vmatprep.subr.mxu0 0.0
        %3490 = vmatpush1.xpose.msra.mxu0 0.0
        %3491 = vmatprep.subr.mxu0 0.0
        %3492 = vmatpush1.xpose.msra.mxu0 0.0
        %3493 = vmatprep.subr.mxu0 0.0
        %3494 = vmatpush1.xpose.msra.mxu0 0.0
        %3495 = vmatprep.subr.mxu0 0.0
        %3496 = vmatpush1.xpose.msra.mxu0 0.0
        %3497 = vmatprep.subr.mxu0 0.0
        %3498 = vmatpush1.xpose.msra.mxu0 0.0
        %3499 = vmatprep.subr.mxu0 0.0
        %3500 = vmatpush1.xpose.msra.mxu0 0.0
        %3501 = vmatprep.subr.mxu0 0.0
        %3502 = vmatpush1.xpose.msra.mxu0 0.0
        %3503 = vmatprep.subr.mxu0 0.0
        %3504 = vmatpush1.xpose.msra.mxu0 0.0
        %3505 = vmatprep.subr.mxu0 0.0
        %3506 = vmatpush1.xpose.msra.mxu0 0.0
        %3507 = vmatprep.subr.mxu0 0.0
        %3508 = vmatpush1.xpose.msra.mxu0 0.0
        %3509 = vmatprep.subr.mxu0 0.0
        %3510 = vmatpush1.xpose.msra.mxu0 0.0
        %3511 = vmatprep.subr.mxu0 0.0
        %3512 = vmatpush1.xpose.msra.mxu0 0.0
        %3513 = vmatprep.subr.mxu0 0.0
        %3514 = vmatpush1.xpose.msra.mxu0 0.0
        %3515 = vmatprep.subr.mxu0 0.0
        %3516 = vmatpush1.xpose.msra.mxu0 0.0
        %3517 = vmatprep.subr.mxu0 0.0
        %3518 = vmatpush1.xpose.msra.mxu0 0.0
        %3519 = vmatprep.subr.mxu0 0.0
        %3520 = vmatpush1.xpose.msra.mxu0 0.0
        %3521 = vmatprep.subr.mxu0 0.0
        %3522 = vmatpush1.xpose.msra.mxu0 0.0
        %3523 = vmatprep.subr.mxu0 0.0
        %3524 = vmatpush1.xpose.msra.mxu0 0.0
        %3525 = vmatprep.subr.mxu0 0.0
        %3526 = vmatpush1.xpose.msra.mxu0 0.0
        %3527 = vmatprep.subr.mxu0 0.0
        %3528 = vmatpush1.xpose.msra.mxu0 0.0
        %3529 = vmatprep.subr.mxu0 0.0
        %3530 = vmatpush1.xpose.msra.mxu0 0.0
        %3531 = vmatprep.subr.mxu0 0.0
        %3532 = vmatpush1.xpose.msra.mxu0 0.0
        %3533 = vmatprep.subr.mxu0 0.0
        %3534 = vmatpush1.xpose.msra.mxu0 0.0
        %3535 = vmatprep.subr.mxu0 0.0
        %3536 = vmatpush1.xpose.msra.mxu0 0.0
        %3537 = vmatprep.subr.mxu0 0.0
        %3538 = vmatpush1.xpose.msra.mxu0 0.0
        %3539 = vmatprep.subr.mxu0 0.0
        %3540 = vmatpush1.xpose.msra.mxu0 0.0
        %3541 = vmatprep.subr.mxu0 0.0
        %3542 = vmatpush1.xpose.msra.mxu0 0.0
        %3543 = vmatprep.subr.mxu0 0.0
        %3544 = vmatpush1.xpose.msra.mxu0 0.0
        %3545 = vmatprep.subr.mxu0 0.0
        %3546 = vmatpush1.xpose.msra.mxu0 0.0
        %3547 = vmatprep.subr.mxu0 0.0
        %3548 = vmatpush1.xpose.msra.mxu0 0.0
        %3549 = vmatprep.subr.mxu0 0.0
        %3550 = vmatpush1.xpose.msra.mxu0 0.0
        %3551 = vmatprep.mubr.f32.mxu0 0.0
        %3552 = vmatmul.mubr.f32.gmra.mrb[0].mxu0 %v3483
        %v3553 = vpop.f32.mrb[0].mxu0
        %v3554 = vadd.f32 0.0, %v3553
        %v3555 = vpop.f32.mrb[0].mxu0
        %3556 = vdwg.mxu0
        %v3557 = vsel %vm636, %v3476, -inf
        %3558 = vmax.xlane.f32.xlu0 %v3557
        %v3559 = vpop.xlane.xlu0 %3558
        %v3560 = vsel %vm636, %v3554, -inf
        %3561 = vmax.xlane.f32.xlu0 %v3560
        %v3562 = vpop.xlane.xlu0 %3561
        %v3563 = vsub.f32 %v3476, %v3559
        %v3564 = vsub.f32 %v3554, %v3562
        %v3565 = vmul.f32 %v3563, 1.442695
        %v3566 = vpow.pop %v3565
        %v3567 = vmul.f32 %v3564, 1.442695
        %v3568 = vpow.pop %v3567
        %v3569 = vsel %vm636, %v3566, 0.0
        %3570 = vadd.xlane.f32.xlu0 %v3569
        %v3571 = vpop.xlane.xlu0 %3570
        %v3572 = vsel %vm636, %v3568, 0.0
        %3573 = vadd.xlane.f32.xlu0 %v3572
        %v3574 = vpop.xlane.xlu0 %3573
        %3575 = vrot.lane.b32.xlu0 %v2574, 112
        %v3576 = vpop.permute.xlu0 %3575
        %v3579 = vsel %vm636, %v3566, 0
        %3581 = vmatprep.subr.mxu0 0.0
        %3582 = vmatpush1.msra.mxu0 %v3576
        %3583 = vmatprep.subr.mxu0 0.0
        %3584 = vmatpush1.msra.mxu0 0.0
        %3585 = vmatprep.subr.mxu0 0.0
        %3586 = vmatpush1.msra.mxu0 0.0
        %3587 = vmatprep.subr.mxu0 0.0
        %3588 = vmatpush1.msra.mxu0 0.0
        %3589 = vmatprep.subr.mxu0 0.0
        %3590 = vmatpush1.msra.mxu0 0.0
        %3591 = vmatprep.subr.mxu0 0.0
        %3592 = vmatpush1.msra.mxu0 0.0
        %3593 = vmatprep.subr.mxu0 0.0
        %3594 = vmatpush1.msra.mxu0 0.0
        %3595 = vmatprep.subr.mxu0 0.0
        %3596 = vmatpush1.msra.mxu0 0.0
        %3597 = vmatprep.subr.mxu0 0.0
        %3598 = vmatpush1.msra.mxu0 0.0
        %3599 = vmatprep.subr.mxu0 0.0
        %3600 = vmatpush1.msra.mxu0 0.0
        %3601 = vmatprep.subr.mxu0 0.0
        %3602 = vmatpush1.msra.mxu0 0.0
        %3603 = vmatprep.subr.mxu0 0.0
        %3604 = vmatpush1.msra.mxu0 0.0
        %3605 = vmatprep.subr.mxu0 0.0
        %3606 = vmatpush1.msra.mxu0 0.0
        %3607 = vmatprep.subr.mxu0 0.0
        %3608 = vmatpush1.msra.mxu0 0.0
        %3609 = vmatprep.subr.mxu0 0.0
        %3610 = vmatpush1.msra.mxu0 0.0
        %3611 = vmatprep.subr.mxu0 0.0
        %3612 = vmatpush1.msra.mxu0 0.0
        %3613 = vmatprep.subr.mxu0 0.0
        %3614 = vmatpush1.msra.mxu0 0.0
        %3615 = vmatprep.subr.mxu0 0.0
        %3616 = vmatpush1.msra.mxu0 0.0
        %3617 = vmatprep.subr.mxu0 0.0
        %3618 = vmatpush1.msra.mxu0 0.0
        %3619 = vmatprep.subr.mxu0 0.0
        %3620 = vmatpush1.msra.mxu0 0.0
        %3621 = vmatprep.subr.mxu0 0.0
        %3622 = vmatpush1.msra.mxu0 0.0
        %3623 = vmatprep.subr.mxu0 0.0
        %3624 = vmatpush1.msra.mxu0 0.0
        %3625 = vmatprep.subr.mxu0 0.0
        %3626 = vmatpush1.msra.mxu0 0.0
        %3627 = vmatprep.subr.mxu0 0.0
        %3628 = vmatpush1.msra.mxu0 0.0
        %3629 = vmatprep.subr.mxu0 0.0
        %3630 = vmatpush1.msra.mxu0 0.0
        %3631 = vmatprep.subr.mxu0 0.0
        %3632 = vmatpush1.msra.mxu0 0.0
        %3633 = vmatprep.subr.mxu0 0.0
        %3634 = vmatpush1.msra.mxu0 0.0
        %3635 = vmatprep.subr.mxu0 0.0
        %3636 = vmatpush1.msra.mxu0 0.0
        %3637 = vmatprep.subr.mxu0 0.0
        %3638 = vmatpush1.msra.mxu0 0.0
        %3639 = vmatprep.subr.mxu0 0.0
        %3640 = vmatpush1.msra.mxu0 0.0
        %3641 = vmatprep.subr.mxu0 0.0
        %3642 = vmatpush1.msra.mxu0 0.0
        %3643 = vmatprep.subr.mxu0 0.0
        %3644 = vmatpush1.msra.mxu0 0.0
        %3645 = vmatprep.mubr.f32.mxu0 0.0
        %3646 = vmatmul.mubr.f32.gmra.mrb[0].mxu0 %v3579
        %v3647 = vpop.f32.mrb[0].mxu0
        %v3648 = vadd.f32 0.0, %v3647
        %v3649 = vpop.f32.mrb[0].mxu0
        %3650 = vdwg.mxu0
        %3651 = vrot.lane.b32.xlu0 %v2579, 112
        %v3652 = vpop.permute.xlu0 %3651
        %v3655 = vsel %vm636, %v3568, 0
        %3657 = vmatprep.subr.mxu0 0.0
        %3658 = vmatpush1.msra.mxu0 %v3652
        %3659 = vmatprep.subr.mxu0 0.0
        %3660 = vmatpush1.msra.mxu0 0.0
        %3661 = vmatprep.subr.mxu0 0.0
        %3662 = vmatpush1.msra.mxu0 0.0
        %3663 = vmatprep.subr.mxu0 0.0
        %3664 = vmatpush1.msra.mxu0 0.0
        %3665 = vmatprep.subr.mxu0 0.0
        %3666 = vmatpush1.msra.mxu0 0.0
        %3667 = vmatprep.subr.mxu0 0.0
        %3668 = vmatpush1.msra.mxu0 0.0
        %3669 = vmatprep.subr.mxu0 0.0
        %3670 = vmatpush1.msra.mxu0 0.0
        %3671 = vmatprep.subr.mxu0 0.0
        %3672 = vmatpush1.msra.mxu0 0.0
        %3673 = vmatprep.subr.mxu0 0.0
        %3674 = vmatpush1.msra.mxu0 0.0
        %3675 = vmatprep.subr.mxu0 0.0
        %3676 = vmatpush1.msra.mxu0 0.0
        %3677 = vmatprep.subr.mxu0 0.0
        %3678 = vmatpush1.msra.mxu0 0.0
        %3679 = vmatprep.subr.mxu0 0.0
        %3680 = vmatpush1.msra.mxu0 0.0
        %3681 = vmatprep.subr.mxu0 0.0
        %3682 = vmatpush1.msra.mxu0 0.0
        %3683 = vmatprep.subr.mxu0 0.0
        %3684 = vmatpush1.msra.mxu0 0.0
        %3685 = vmatprep.subr.mxu0 0.0
        %3686 = vmatpush1.msra.mxu0 0.0
        %3687 = vmatprep.subr.mxu0 0.0
        %3688 = vmatpush1.msra.mxu0 0.0
        %3689 = vmatprep.subr.mxu0 0.0
        %3690 = vmatpush1.msra.mxu0 0.0
        %3691 = vmatprep.subr.mxu0 0.0
        %3692 = vmatpush1.msra.mxu0 0.0
        %3693 = vmatprep.subr.mxu0 0.0
        %3694 = vmatpush1.msra.mxu0 0.0
        %3695 = vmatprep.subr.mxu0 0.0
        %3696 = vmatpush1.msra.mxu0 0.0
        %3697 = vmatprep.subr.mxu0 0.0
        %3698 = vmatpush1.msra.mxu0 0.0
        %3699 = vmatprep.subr.mxu0 0.0
        %3700 = vmatpush1.msra.mxu0 0.0
        %3701 = vmatprep.subr.mxu0 0.0
        %3702 = vmatpush1.msra.mxu0 0.0
        %3703 = vmatprep.subr.mxu0 0.0
        %3704 = vmatpush1.msra.mxu0 0.0
        %3705 = vmatprep.subr.mxu0 0.0
        %3706 = vmatpush1.msra.mxu0 0.0
        %3707 = vmatprep.subr.mxu0 0.0
        %3708 = vmatpush1.msra.mxu0 0.0
        %3709 = vmatprep.subr.mxu0 0.0
        %3710 = vmatpush1.msra.mxu0 0.0
        %3711 = vmatprep.subr.mxu0 0.0
        %3712 = vmatpush1.msra.mxu0 0.0
        %3713 = vmatprep.subr.mxu0 0.0
        %3714 = vmatpush1.msra.mxu0 0.0
        %3715 = vmatprep.subr.mxu0 0.0
        %3716 = vmatpush1.msra.mxu0 0.0
        %3717 = vmatprep.subr.mxu0 0.0
        %3718 = vmatpush1.msra.mxu0 0.0
        %3719 = vmatprep.subr.mxu0 0.0
        %3720 = vmatpush1.msra.mxu0 0.0
        %3721 = vmatprep.mubr.f32.mxu0 0.0
        %3722 = vmatmul.mubr.f32.gmra.mrb[0].mxu0 %v3655
        %v3723 = vpop.f32.mrb[0].mxu0
        %v3724 = vadd.f32 0.0, %v3723
        %v3725 = vpop.f32.mrb[0].mxu0
        %3726 = vdwg.mxu0
        %v3727 = vrcp.pop %v3571
        %v3728 = vrcp.pop %v3574
        %v3729 = vmul.f32 %v3648, %v3727
        %v3730 = vmul.f32 %v3724, %v3728
        %v3732 = vsel %vm636, %v3729, 0
        %v3735 = vsel %vm636, %v3730, 0
        %3737 = vmatprep.subr.mxu0 0.0
        %3738 = vmatpush1.msra.mxu0 %v2585
        %3739 = vmatprep.subr.mxu0 0.0
        %3740 = vmatpush1.msra.mxu0 0.0
        %3741 = vmatprep.subr.mxu0 0.0
        %3742 = vmatpush1.msra.mxu0 0.0
        %3743 = vmatprep.subr.mxu0 0.0
        %3744 = vmatpush1.msra.mxu0 0.0
        %3745 = vmatprep.subr.mxu0 0.0
        %3746 = vmatpush1.msra.mxu0 0.0
        %3747 = vmatprep.subr.mxu0 0.0
        %3748 = vmatpush1.msra.mxu0 0.0
        %3749 = vmatprep.subr.mxu0 0.0
        %3750 = vmatpush1.msra.mxu0 0.0
        %3751 = vmatprep.subr.mxu0 0.0
        %3752 = vmatpush1.msra.mxu0 0.0
        %3753 = vmatprep.subr.mxu0 0.0
        %3754 = vmatpush1.msra.mxu0 0.0
        %3755 = vmatprep.subr.mxu0 0.0
        %3756 = vmatpush1.msra.mxu0 0.0
        %3757 = vmatprep.subr.mxu0 0.0
        %3758 = vmatpush1.msra.mxu0 0.0
        %3759 = vmatprep.subr.mxu0 0.0
        %3760 = vmatpush1.msra.mxu0 0.0
        %3761 = vmatprep.subr.mxu0 0.0
        %3762 = vmatpush1.msra.mxu0 0.0
        %3763 = vmatprep.subr.mxu0 0.0
        %3764 = vmatpush1.msra.mxu0 0.0
        %3765 = vmatprep.subr.mxu0 0.0
        %3766 = vmatpush1.msra.mxu0 0.0
        %3767 = vmatprep.subr.mxu0 0.0
        %3768 = vmatpush1.msra.mxu0 0.0
        %3769 = vmatprep.subr.mxu0 0.0
        %3770 = vmatpush1.msra.mxu0 0.0
        %3771 = vmatprep.subr.mxu0 0.0
        %3772 = vmatpush1.msra.mxu0 0.0
        %3773 = vmatprep.subr.mxu0 0.0
        %3774 = vmatpush1.msra.mxu0 0.0
        %3775 = vmatprep.subr.mxu0 0.0
        %3776 = vmatpush1.msra.mxu0 0.0
        %3777 = vmatprep.subr.mxu0 0.0
        %3778 = vmatpush1.msra.mxu0 0.0
        %3779 = vmatprep.subr.mxu0 0.0
        %3780 = vmatpush1.msra.mxu0 0.0
        %3781 = vmatprep.subr.mxu0 0.0
        %3782 = vmatpush1.msra.mxu0 0.0
        %3783 = vmatprep.subr.mxu0 0.0
        %3784 = vmatpush1.msra.mxu0 0.0
        %3785 = vmatprep.subr.mxu0 0.0
        %3786 = vmatpush1.msra.mxu0 0.0
        %3787 = vmatprep.subr.mxu0 0.0
        %3788 = vmatpush1.msra.mxu0 0.0
        %3789 = vmatprep.subr.mxu0 0.0
        %3790 = vmatpush1.msra.mxu0 0.0
        %3791 = vmatprep.subr.mxu0 0.0
        %3792 = vmatpush1.msra.mxu0 0.0
        %3793 = vmatprep.subr.mxu0 0.0
        %3794 = vmatpush1.msra.mxu0 0.0
        %3795 = vmatprep.subr.mxu0 0.0
        %3796 = vmatpush1.msra.mxu0 0.0
        %3797 = vmatprep.subr.mxu0 0.0
        %3798 = vmatpush1.msra.mxu0 0.0
        %3799 = vmatprep.subr.mxu0 0.0
        %3800 = vmatpush1.msra.mxu0 0.0
        %3801 = vmatprep.mubr.f32.mxu0 0.0
        %3802 = vmatmul.mubr.f32.gmra.mrb[0].mxu0 %v3732
        %v3803 = vpop.f32.mrb[0].mxu0
        %v3804 = vadd.f32 0.0, %v3803
        %v3805 = vpop.f32.mrb[0].mxu0
        %3806 = vmatprep.mubr.f32.mxu0 0.0
        %3807 = vmatmul.mubr.f32.gmra.mrb[0].mxu0 %v3735
        %v3808 = vpop.f32.mrb[0].mxu0
        %v3809 = vadd.f32 0.0, %v3808
        %v3810 = vpop.f32.mrb[0].mxu0
        %3811 = vdwg.mxu0
        %v3812 = vadd.f32 %v3393, %v3804
        %v3813 = vadd.f32 %v3398, %v3809
        %3814 = vrot.lane.b32.xlu0 %v2406, 104
        %v3815 = vpop.permute.xlu0 %3814
        %3816 = vrot.lane.b32.xlu0 %v2490, 104
        %v3817 = vpop.permute.xlu0 %3816
        %v3818 = vsel %vm636, %v3815, 0
        %v3820 = vsel %vm636, %v3817, 0
        %3822 = vmatprep.subr.mxu0 0.0
        %3823 = vmatpush1.xpose.msra.mxu0 %v3820
        %3824 = vmatprep.subr.mxu0 0.0
        %3825 = vmatpush1.xpose.msra.mxu0 0.0
        %3826 = vmatprep.subr.mxu0 0.0
        %3827 = vmatpush1.xpose.msra.mxu0 0.0
        %3828 = vmatprep.subr.mxu0 0.0
        %3829 = vmatpush1.xpose.msra.mxu0 0.0
        %3830 = vmatprep.subr.mxu0 0.0
        %3831 = vmatpush1.xpose.msra.mxu0 0.0
        %3832 = vmatprep.subr.mxu0 0.0
        %3833 = vmatpush1.xpose.msra.mxu0 0.0
        %3834 = vmatprep.subr.mxu0 0.0
        %3835 = vmatpush1.xpose.msra.mxu0 0.0
        %3836 = vmatprep.subr.mxu0 0.0
        %3837 = vmatpush1.xpose.msra.mxu0 0.0
        %3838 = vmatprep.subr.mxu0 0.0
        %3839 = vmatpush1.xpose.msra.mxu0 0.0
        %3840 = vmatprep.subr.mxu0 0.0
        %3841 = vmatpush1.xpose.msra.mxu0 0.0
        %3842 = vmatprep.subr.mxu0 0.0
        %3843 = vmatpush1.xpose.msra.mxu0 0.0
        %3844 = vmatprep.subr.mxu0 0.0
        %3845 = vmatpush1.xpose.msra.mxu0 0.0
        %3846 = vmatprep.subr.mxu0 0.0
        %3847 = vmatpush1.xpose.msra.mxu0 0.0
        %3848 = vmatprep.subr.mxu0 0.0
        %3849 = vmatpush1.xpose.msra.mxu0 0.0
        %3850 = vmatprep.subr.mxu0 0.0
        %3851 = vmatpush1.xpose.msra.mxu0 0.0
        %3852 = vmatprep.subr.mxu0 0.0
        %3853 = vmatpush1.xpose.msra.mxu0 0.0
        %3854 = vmatprep.subr.mxu0 0.0
        %3855 = vmatpush1.xpose.msra.mxu0 0.0
        %3856 = vmatprep.subr.mxu0 0.0
        %3857 = vmatpush1.xpose.msra.mxu0 0.0
        %3858 = vmatprep.subr.mxu0 0.0
        %3859 = vmatpush1.xpose.msra.mxu0 0.0
        %3860 = vmatprep.subr.mxu0 0.0
        %3861 = vmatpush1.xpose.msra.mxu0 0.0
        %3862 = vmatprep.subr.mxu0 0.0
        %3863 = vmatpush1.xpose.msra.mxu0 0.0
        %3864 = vmatprep.subr.mxu0 0.0
        %3865 = vmatpush1.xpose.msra.mxu0 0.0
        %3866 = vmatprep.subr.mxu0 0.0
        %3867 = vmatpush1.xpose.msra.mxu0 0.0
        %3868 = vmatprep.subr.mxu0 0.0
        %3869 = vmatpush1.xpose.msra.mxu0 0.0
        %3870 = vmatprep.subr.mxu0 0.0
        %3871 = vmatpush1.xpose.msra.mxu0 0.0
        %3872 = vmatprep.subr.mxu0 0.0
        %3873 = vmatpush1.xpose.msra.mxu0 0.0
        %3874 = vmatprep.subr.mxu0 0.0
        %3875 = vmatpush1.xpose.msra.mxu0 0.0
        %3876 = vmatprep.subr.mxu0 0.0
        %3877 = vmatpush1.xpose.msra.mxu0 0.0
        %3878 = vmatprep.subr.mxu0 0.0
        %3879 = vmatpush1.xpose.msra.mxu0 0.0
        %3880 = vmatprep.subr.mxu0 0.0
        %3881 = vmatpush1.xpose.msra.mxu0 0.0
        %3882 = vmatprep.subr.mxu0 0.0
        %3883 = vmatpush1.xpose.msra.mxu0 0.0
        %3884 = vmatprep.subr.mxu0 0.0
        %3885 = vmatpush1.xpose.msra.mxu0 0.0
        %3886 = vmatprep.mubr.f32.mxu0 0.0
        %3887 = vmatmul.mubr.f32.gmra.mrb[0].mxu0 %v3818
        %v3888 = vpop.f32.mrb[0].mxu0
        %v3889 = vadd.f32 0.0, %v3888
        %v3890 = vpop.f32.mrb[0].mxu0
        %3891 = vdwg.mxu0
        %3892 = vrot.lane.b32.xlu0 %v2411, 104
        %v3893 = vpop.permute.xlu0 %3892
        %3894 = vrot.lane.b32.xlu0 %v2495, 104
        %v3895 = vpop.permute.xlu0 %3894
        %v3896 = vsel %vm636, %v3893, 0
        %v3898 = vsel %vm636, %v3895, 0
        %3900 = vmatprep.subr.mxu0 0.0
        %3901 = vmatpush1.xpose.msra.mxu0 %v3898
        %3902 = vmatprep.subr.mxu0 0.0
        %3903 = vmatpush1.xpose.msra.mxu0 0.0
        %3904 = vmatprep.subr.mxu0 0.0
        %3905 = vmatpush1.xpose.msra.mxu0 0.0
        %3906 = vmatprep.subr.mxu0 0.0
        %3907 = vmatpush1.xpose.msra.mxu0 0.0
        %3908 = vmatprep.subr.mxu0 0.0
        %3909 = vmatpush1.xpose.msra.mxu0 0.0
        %3910 = vmatprep.subr.mxu0 0.0
        %3911 = vmatpush1.xpose.msra.mxu0 0.0
        %3912 = vmatprep.subr.mxu0 0.0
        %3913 = vmatpush1.xpose.msra.mxu0 0.0
        %3914 = vmatprep.subr.mxu0 0.0
        %3915 = vmatpush1.xpose.msra.mxu0 0.0
        %3916 = vmatprep.subr.mxu0 0.0
        %3917 = vmatpush1.xpose.msra.mxu0 0.0
        %3918 = vmatprep.subr.mxu0 0.0
        %3919 = vmatpush1.xpose.msra.mxu0 0.0
        %3920 = vmatprep.subr.mxu0 0.0
        %3921 = vmatpush1.xpose.msra.mxu0 0.0
        %3922 = vmatprep.subr.mxu0 0.0
        %3923 = vmatpush1.xpose.msra.mxu0 0.0
        %3924 = vmatprep.subr.mxu0 0.0
        %3925 = vmatpush1.xpose.msra.mxu0 0.0
        %3926 = vmatprep.subr.mxu0 0.0
        %3927 = vmatpush1.xpose.msra.mxu0 0.0
        %3928 = vmatprep.subr.mxu0 0.0
        %3929 = vmatpush1.xpose.msra.mxu0 0.0
        %3930 = vmatprep.subr.mxu0 0.0
        %3931 = vmatpush1.xpose.msra.mxu0 0.0
        %3932 = vmatprep.subr.mxu0 0.0
        %3933 = vmatpush1.xpose.msra.mxu0 0.0
        %3934 = vmatprep.subr.mxu0 0.0
        %3935 = vmatpush1.xpose.msra.mxu0 0.0
        %3936 = vmatprep.subr.mxu0 0.0
        %3937 = vmatpush1.xpose.msra.mxu0 0.0
        %3938 = vmatprep.subr.mxu0 0.0
        %3939 = vmatpush1.xpose.msra.mxu0 0.0
        %3940 = vmatprep.subr.mxu0 0.0
        %3941 = vmatpush1.xpose.msra.mxu0 0.0
        %3942 = vmatprep.subr.mxu0 0.0
        %3943 = vmatpush1.xpose.msra.mxu0 0.0
        %3944 = vmatprep.subr.mxu0 0.0
        %3945 = vmatpush1.xpose.msra.mxu0 0.0
        %3946 = vmatprep.subr.mxu0 0.0
        %3947 = vmatpush1.xpose.msra.mxu0 0.0
        %3948 = vmatprep.subr.mxu0 0.0
        %3949 = vmatpush1.xpose.msra.mxu0 0.0
        %3950 = vmatprep.subr.mxu0 0.0
        %3951 = vmatpush1.xpose.msra.mxu0 0.0
        %3952 = vmatprep.subr.mxu0 0.0
        %3953 = vmatpush1.xpose.msra.mxu0 0.0
        %3954 = vmatprep.subr.mxu0 0.0
        %3955 = vmatpush1.xpose.msra.mxu0 0.0
        %3956 = vmatprep.subr.mxu0 0.0
        %3957 = vmatpush1.xpose.msra.mxu0 0.0
        %3958 = vmatprep.subr.mxu0 0.0
        %3959 = vmatpush1.xpose.msra.mxu0 0.0
        %3960 = vmatprep.subr.mxu0 0.0
        %3961 = vmatpush1.xpose.msra.mxu0 0.0
        %3962 = vmatprep.subr.mxu0 0.0
        %3963 = vmatpush1.xpose.msra.mxu0 0.0
        %3964 = vmatprep.mubr.f32.mxu0 0.0
        %3965 = vmatmul.mubr.f32.gmra.mrb[0].mxu0 %v3896
        %v3966 = vpop.f32.mrb[0].mxu0
        %v3967 = vadd.f32 0.0, %v3966
        %v3968 = vpop.f32.mrb[0].mxu0
        %3969 = vdwg.mxu0
        %v3970 = vsel %vm636, %v3889, -inf
        %3971 = vmax.xlane.f32.xlu0 %v3970
        %v3972 = vpop.xlane.xlu0 %3971
        %v3973 = vsel %vm636, %v3967, -inf
        %3974 = vmax.xlane.f32.xlu0 %v3973
        %v3975 = vpop.xlane.xlu0 %3974
        %v3976 = vsub.f32 %v3889, %v3972
        %v3977 = vsub.f32 %v3967, %v3975
        %v3978 = vmul.f32 %v3976, 1.442695
        %v3979 = vpow.pop %v3978
        %v3980 = vmul.f32 %v3977, 1.442695
        %v3981 = vpow.pop %v3980
        %v3982 = vsel %vm636, %v3979, 0.0
        %3983 = vadd.xlane.f32.xlu0 %v3982
        %v3984 = vpop.xlane.xlu0 %3983
        %v3985 = vsel %vm636, %v3981, 0.0
        %3986 = vadd.xlane.f32.xlu0 %v3985
        %v3987 = vpop.xlane.xlu0 %3986
        %3988 = vrot.lane.b32.xlu0 %v2574, 104
        %v3989 = vpop.permute.xlu0 %3988
        %v3992 = vsel %vm636, %v3979, 0
        %3994 = vmatprep.subr.mxu0 0.0
        %3995 = vmatpush1.msra.mxu0 %v3989
        %3996 = vmatprep.subr.mxu0 0.0
        %3997 = vmatpush1.msra.mxu0 0.0
        %3998 = vmatprep.subr.mxu0 0.0
        %3999 = vmatpush1.msra.mxu0 0.0
        %4000 = vmatprep.subr.mxu0 0.0
        %4001 = vmatpush1.msra.mxu0 0.0
        %4002 = vmatprep.subr.mxu0 0.0
        %4003 = vmatpush1.msra.mxu0 0.0
        %4004 = vmatprep.subr.mxu0 0.0
        %4005 = vmatpush1.msra.mxu0 0.0
        %4006 = vmatprep.subr.mxu0 0.0
        %4007 = vmatpush1.msra.mxu0 0.0
        %4008 = vmatprep.subr.mxu0 0.0
        %4009 = vmatpush1.msra.mxu0 0.0
        %4010 = vmatprep.subr.mxu0 0.0
        %4011 = vmatpush1.msra.mxu0 0.0
        %4012 = vmatprep.subr.mxu0 0.0
        %4013 = vmatpush1.msra.mxu0 0.0
        %4014 = vmatprep.subr.mxu0 0.0
        %4015 = vmatpush1.msra.mxu0 0.0
        %4016 = vmatprep.subr.mxu0 0.0
        %4017 = vmatpush1.msra.mxu0 0.0
        %4018 = vmatprep.subr.mxu0 0.0
        %4019 = vmatpush1.msra.mxu0 0.0
        %4020 = vmatprep.subr.mxu0 0.0
        %4021 = vmatpush1.msra.mxu0 0.0
        %4022 = vmatprep.subr.mxu0 0.0
        %4023 = vmatpush1.msra.mxu0 0.0
        %4024 = vmatprep.subr.mxu0 0.0
        %4025 = vmatpush1.msra.mxu0 0.0
        %4026 = vmatprep.subr.mxu0 0.0
        %4027 = vmatpush1.msra.mxu0 0.0
        %4028 = vmatprep.subr.mxu0 0.0
        %4029 = vmatpush1.msra.mxu0 0.0
        %4030 = vmatprep.subr.mxu0 0.0
        %4031 = vmatpush1.msra.mxu0 0.0
        %4032 = vmatprep.subr.mxu0 0.0
        %4033 = vmatpush1.msra.mxu0 0.0
        %4034 = vmatprep.subr.mxu0 0.0
        %4035 = vmatpush1.msra.mxu0 0.0
        %4036 = vmatprep.subr.mxu0 0.0
        %4037 = vmatpush1.msra.mxu0 0.0
        %4038 = vmatprep.subr.mxu0 0.0
        %4039 = vmatpush1.msra.mxu0 0.0
        %4040 = vmatprep.subr.mxu0 0.0
        %4041 = vmatpush1.msra.mxu0 0.0
        %4042 = vmatprep.subr.mxu0 0.0
        %4043 = vmatpush1.msra.mxu0 0.0
        %4044 = vmatprep.subr.mxu0 0.0
        %4045 = vmatpush1.msra.mxu0 0.0
        %4046 = vmatprep.subr.mxu0 0.0
        %4047 = vmatpush1.msra.mxu0 0.0
        %4048 = vmatprep.subr.mxu0 0.0
        %4049 = vmatpush1.msra.mxu0 0.0
        %4050 = vmatprep.subr.mxu0 0.0
        %4051 = vmatpush1.msra.mxu0 0.0
        %4052 = vmatprep.subr.mxu0 0.0
        %4053 = vmatpush1.msra.mxu0 0.0
        %4054 = vmatprep.subr.mxu0 0.0
        %4055 = vmatpush1.msra.mxu0 0.0
        %4056 = vmatprep.subr.mxu0 0.0
        %4057 = vmatpush1.msra.mxu0 0.0
        %4058 = vmatprep.mubr.f32.mxu0 0.0
        %4059 = vmatmul.mubr.f32.gmra.mrb[0].mxu0 %v3992
        %v4060 = vpop.f32.mrb[0].mxu0
        %v4061 = vadd.f32 0.0, %v4060
        %v4062 = vpop.f32.mrb[0].mxu0
        %4063 = vdwg.mxu0
        %4064 = vrot.lane.b32.xlu0 %v2579, 104
        %v4065 = vpop.permute.xlu0 %4064
        %v4068 = vsel %vm636, %v3981, 0
        %4070 = vmatprep.subr.mxu0 0.0
        %4071 = vmatpush1.msra.mxu0 %v4065
        %4072 = vmatprep.subr.mxu0 0.0
        %4073 = vmatpush1.msra.mxu0 0.0
        %4074 = vmatprep.subr.mxu0 0.0
        %4075 = vmatpush1.msra.mxu0 0.0
        %4076 = vmatprep.subr.mxu0 0.0
        %4077 = vmatpush1.msra.mxu0 0.0
        %4078 = vmatprep.subr.mxu0 0.0
        %4079 = vmatpush1.msra.mxu0 0.0
        %4080 = vmatprep.subr.mxu0 0.0
        %4081 = vmatpush1.msra.mxu0 0.0
        %4082 = vmatprep.subr.mxu0 0.0
        %4083 = vmatpush1.msra.mxu0 0.0
        %4084 = vmatprep.subr.mxu0 0.0
        %4085 = vmatpush1.msra.mxu0 0.0
        %4086 = vmatprep.subr.mxu0 0.0
        %4087 = vmatpush1.msra.mxu0 0.0
        %4088 = vmatprep.subr.mxu0 0.0
        %4089 = vmatpush1.msra.mxu0 0.0
        %4090 = vmatprep.subr.mxu0 0.0
        %4091 = vmatpush1.msra.mxu0 0.0
        %4092 = vmatprep.subr.mxu0 0.0
        %4093 = vmatpush1.msra.mxu0 0.0
        %4094 = vmatprep.subr.mxu0 0.0
        %4095 = vmatpush1.msra.mxu0 0.0
        %4096 = vmatprep.subr.mxu0 0.0
        %4097 = vmatpush1.msra.mxu0 0.0
        %4098 = vmatprep.subr.mxu0 0.0
        %4099 = vmatpush1.msra.mxu0 0.0
        %4100 = vmatprep.subr.mxu0 0.0
        %4101 = vmatpush1.msra.mxu0 0.0
        %4102 = vmatprep.subr.mxu0 0.0
        %4103 = vmatpush1.msra.mxu0 0.0
        %4104 = vmatprep.subr.mxu0 0.0
        %4105 = vmatpush1.msra.mxu0 0.0
        %4106 = vmatprep.subr.mxu0 0.0
        %4107 = vmatpush1.msra.mxu0 0.0
        %4108 = vmatprep.subr.mxu0 0.0
        %4109 = vmatpush1.msra.mxu0 0.0
        %4110 = vmatprep.subr.mxu0 0.0
        %4111 = vmatpush1.msra.mxu0 0.0
        %4112 = vmatprep.subr.mxu0 0.0
        %4113 = vmatpush1.msra.mxu0 0.0
        %4114 = vmatprep.subr.mxu0 0.0
        %4115 = vmatpush1.msra.mxu0 0.0
        %4116 = vmatprep.subr.mxu0 0.0
        %4117 = vmatpush1.msra.mxu0 0.0
        %4118 = vmatprep.subr.mxu0 0.0
        %4119 = vmatpush1.msra.mxu0 0.0
        %4120 = vmatprep.subr.mxu0 0.0
        %4121 = vmatpush1.msra.mxu0 0.0
        %4122 = vmatprep.subr.mxu0 0.0
        %4123 = vmatpush1.msra.mxu0 0.0
        %4124 = vmatprep.subr.mxu0 0.0
        %4125 = vmatpush1.msra.mxu0 0.0
        %4126 = vmatprep.subr.mxu0 0.0
        %4127 = vmatpush1.msra.mxu0 0.0
        %4128 = vmatprep.subr.mxu0 0.0
        %4129 = vmatpush1.msra.mxu0 0.0
        %4130 = vmatprep.subr.mxu0 0.0
        %4131 = vmatpush1.msra.mxu0 0.0
        %4132 = vmatprep.subr.mxu0 0.0
        %4133 = vmatpush1.msra.mxu0 0.0
        %4134 = vmatprep.mubr.f32.mxu0 0.0
        %4135 = vmatmul.mubr.f32.gmra.mrb[0].mxu0 %v4068
        %v4136 = vpop.f32.mrb[0].mxu0
        %v4137 = vadd.f32 0.0, %v4136
        %v4138 = vpop.f32.mrb[0].mxu0
        %4139 = vdwg.mxu0
        %v4140 = vrcp.pop %v3984
        %v4141 = vrcp.pop %v3987
        %v4142 = vmul.f32 %v4061, %v4140
        %v4143 = vmul.f32 %v4137, %v4141
        %v4145 = vsel %vm636, %v4142, 0
        %v4148 = vsel %vm636, %v4143, 0
        %4150 = vmatprep.subr.mxu0 0.0
        %4151 = vmatpush1.msra.mxu0 %v2586
        %4152 = vmatprep.subr.mxu0 0.0
        %4153 = vmatpush1.msra.mxu0 0.0
        %4154 = vmatprep.subr.mxu0 0.0
        %4155 = vmatpush1.msra.mxu0 0.0
        %4156 = vmatprep.subr.mxu0 0.0
        %4157 = vmatpush1.msra.mxu0 0.0
        %4158 = vmatprep.subr.mxu0 0.0
        %4159 = vmatpush1.msra.mxu0 0.0
        %4160 = vmatprep.subr.mxu0 0.0
        %4161 = vmatpush1.msra.mxu0 0.0
        %4162 = vmatprep.subr.mxu0 0.0
        %4163 = vmatpush1.msra.mxu0 0.0
        %4164 = vmatprep.subr.mxu0 0.0
        %4165 = vmatpush1.msra.mxu0 0.0
        %4166 = vmatprep.subr.mxu0 0.0
        %4167 = vmatpush1.msra.mxu0 0.0
        %4168 = vmatprep.subr.mxu0 0.0
        %4169 = vmatpush1.msra.mxu0 0.0
        %4170 = vmatprep.subr.mxu0 0.0
        %4171 = vmatpush1.msra.mxu0 0.0
        %4172 = vmatprep.subr.mxu0 0.0
        %4173 = vmatpush1.msra.mxu0 0.0
        %4174 = vmatprep.subr.mxu0 0.0
        %4175 = vmatpush1.msra.mxu0 0.0
        %4176 = vmatprep.subr.mxu0 0.0
        %4177 = vmatpush1.msra.mxu0 0.0
        %4178 = vmatprep.subr.mxu0 0.0
        %4179 = vmatpush1.msra.mxu0 0.0
        %4180 = vmatprep.subr.mxu0 0.0
        %4181 = vmatpush1.msra.mxu0 0.0
        %4182 = vmatprep.subr.mxu0 0.0
        %4183 = vmatpush1.msra.mxu0 0.0
        %4184 = vmatprep.subr.mxu0 0.0
        %4185 = vmatpush1.msra.mxu0 0.0
        %4186 = vmatprep.subr.mxu0 0.0
        %4187 = vmatpush1.msra.mxu0 0.0
        %4188 = vmatprep.subr.mxu0 0.0
        %4189 = vmatpush1.msra.mxu0 0.0
        %4190 = vmatprep.subr.mxu0 0.0
        %4191 = vmatpush1.msra.mxu0 0.0
        %4192 = vmatprep.subr.mxu0 0.0
        %4193 = vmatpush1.msra.mxu0 0.0
        %4194 = vmatprep.subr.mxu0 0.0
        %4195 = vmatpush1.msra.mxu0 0.0
        %4196 = vmatprep.subr.mxu0 0.0
        %4197 = vmatpush1.msra.mxu0 0.0
        %4198 = vmatprep.subr.mxu0 0.0
        %4199 = vmatpush1.msra.mxu0 0.0
        %4200 = vmatprep.subr.mxu0 0.0
        %4201 = vmatpush1.msra.mxu0 0.0
        %4202 = vmatprep.subr.mxu0 0.0
        %4203 = vmatpush1.msra.mxu0 0.0
        %4204 = vmatprep.subr.mxu0 0.0
        %4205 = vmatpush1.msra.mxu0 0.0
        %4206 = vmatprep.subr.mxu0 0.0
        %4207 = vmatpush1.msra.mxu0 0.0
        %4208 = vmatprep.subr.mxu0 0.0
        %4209 = vmatpush1.msra.mxu0 0.0
        %4210 = vmatprep.subr.mxu0 0.0
        %4211 = vmatpush1.msra.mxu0 0.0
        %4212 = vmatprep.subr.mxu0 0.0
        %4213 = vmatpush1.msra.mxu0 0.0
        %4214 = vmatprep.mubr.f32.mxu0 0.0
        %4215 = vmatmul.mubr.f32.gmra.mrb[0].mxu0 %v4145
        %v4216 = vpop.f32.mrb[0].mxu0
        %v4217 = vadd.f32 0.0, %v4216
        %v4218 = vpop.f32.mrb[0].mxu0
        %4219 = vmatprep.mubr.f32.mxu0 0.0
        %4220 = vmatmul.mubr.f32.gmra.mrb[0].mxu0 %v4148
        %v4221 = vpop.f32.mrb[0].mxu0
        %v4222 = vadd.f32 0.0, %v4221
        %v4223 = vpop.f32.mrb[0].mxu0
        %4224 = vdwg.mxu0
        %v4225 = vadd.f32 %v3812, %v4217
        %v4226 = vadd.f32 %v3813, %v4222
        %v4227 = vlaneseq
        %v4228 = vshrl.u32 %v4227, 7
        %v4229 = vsub.s32 1, %v4228
        %v4230 = vrot.slane %v360, %v4229
        %v4231 = vadd.f32 %v4225, %v4230
        %v4232 = vadd.f32 %v4226, %v4230
        %v4233 = vadd.f32 %v2322, %v4231
        %v4234 = vadd.f32 %v2323, %v4232
        %v4235 = vsel %vm369, %v4233, 0.0
        %4236 = vadd.xlane.f32.xlu0 %v4235
        %v4237 = vpop.xlane.xlu0 %4236
        %v4238 = vsel %vm369, %v4234, 0.0
        %4239 = vadd.xlane.f32.xlu0 %v4238
        %v4240 = vpop.xlane.xlu0 %4239
        %v4241 = vmul.f32 %v4237, %v2291
        %v4242 = vmul.f32 %v4240, %v2291
        %v4243 = vsub.f32 %v4233, %v4241
        %v4244 = vsub.f32 %v4234, %v4242
        %v4245 = vmul.f32 %v4243, %v4243
        %v4246 = vmul.f32 %v4244, %v4244
        %v4247 = vsel %vm369, %v4245, 0.0
        %4248 = vadd.xlane.f32.xlu0 %v4247
        %v4249 = vpop.xlane.xlu0 %4248
        %v4250 = vsel %vm369, %v4246, 0.0
        %4251 = vadd.xlane.f32.xlu0 %v4250
        %v4252 = vpop.xlane.xlu0 %4251
        %v4253 = vmul.f32 %v4249, %v2291
        %v4254 = vmul.f32 %v4252, %v2291
        %v4255 = vadd.f32 %v4253, 1e-05
        %v4256 = vadd.f32 %v4254, 1e-05
        %v4257 = vrsqrt.pop %v4255
        %v4258 = vrsqrt.pop %v4256
        %v4259 = vmul.f32 %v4243, %v4257
        %v4260 = vmul.f32 %v4244, %v4258
        %v4261 = vlaneseq
        %v4262 = vshrl.u32 %v4261, 7
        %v4263 = vsub.s32 2, %v4262
        %v4264 = vrot.slane %v360, %v4263
        %v4265 = vmul.f32 %v4259, %v4264
        %v4266 = vmul.f32 %v4260, %v4264
        %v4267 = vlaneseq
        %v4268 = vshrl.u32 %v4267, 7
        %v4269 = vsub.s32 3, %v4268
        %v4270 = vrot.slane %v360, %v4269
        %v4271 = vadd.f32 %v4265, %v4270
        %v4272 = vadd.f32 %v4266, %v4270
        %4273 = vst.msk [vmem:[%s348] sm:$0xff] %vm369, %v4271
        %4274 = vst.msk [vmem:[%s348 + $0x8] sm:$0xff] %vm369, %v4272
        %s4275 = sand.u32 %s154, 1
        %s4276 = scalar_lea.sflag [#allocation4], %s4275
        %s4277 = sand.u32 %s154, 1
        %s4278 = smul.addr %s4277, 16
        %s4279 = scalar_lea.vmem [#allocation11], %s4278
        // Predicated region
        $region61: #{tpu_custom_call.1} parent=39 // pred_check
          %p4280 = pneg %p164
        $region62: #{tpu_custom_call.1} parent=39 // pred_check_branch
          %4282 = sbr.rel (%p4280) target = $region64
        $region63: #{tpu_custom_call.1} parent=39 // pred_region
          %s4283 = smul.u32 2, %s26
          %s4285 = ssub.s32 256, 256
          %4286 = vsyncadd %s4276, %s4285
          %s4287 = smul.addr %s4283, 128
          %s4288 = scalar_lea.hbm %s5, %s4287
          %s4289 = sshll.u32 %s4279, 4
          %s4290 = int_to_ptr.vmem [resolvable:$true] %s4289
          %4295 = dma.vmem_to_hbm [thread:$0]  %s4290, 256, %s4288, %s4276, 128, 128, 8
        $region64: #{tpu_custom_call.1} parent=39 // pred_fallthru
          _
      $region40: #{tpu_custom_call.1} parent=5 // pred_fallthru
        _
      %p4296 = scmp.le.s32.totalorder 2, %s21
      // Predicated region
      $region65: #{tpu_custom_call.1} parent=5 // pred_check
        %p4297 = pneg %p4296
      $region66: #{tpu_custom_call.1} parent=5 // pred_check_branch
        %4299 = sbr.rel (%p4297) target = $region68
      $region67: #{tpu_custom_call.1} parent=5 // pred_region
        %s4300 = ssub.s32 %s21, 2
        // Predicated region
        $region69: #{tpu_custom_call.1} parent=67 // pred_check
          %p4301 = pneg %p170
        $region70: #{tpu_custom_call.1} parent=67 // pred_check_branch
          %4303 = sbr.rel (%p4301) target = $region72
        $region71: #{tpu_custom_call.1} parent=67 // pred_region
          %s4304 = sand.u32 %s155, 1
          %s4305 = scalar_lea.sflag [#allocation4], %s4304
          %s4306 = sand.u32 %s155, 1
          %s4307 = smul.addr %s4306, 16
          %s4308 = scalar_lea.vmem [#allocation11], %s4307
          %4309 = dma.done %s4305, 256
        $region72: #{tpu_custom_call.1} parent=67 // pred_fallthru
          _
      $region68: #{tpu_custom_call.1} parent=5 // pred_fallthru
        _
    $region6: #{tpu_custom_call.1} parent=1 // loop_footer
      %s25 = sadd.s32 1, %s21
    $region7: #{tpu_custom_call.1} parent=1 // loop_footer_branch
      %20 = sbr.rel target = $region3
    $region8: #{tpu_custom_call.1} parent=1 // loop_exit
      _
    %4310 = vsyncpa [#allocation3], 1
    %s4311 = scalar_lea.sflag [#allocation3], 1
    %4312 = vsyncpa %s4311, 1
    %4313 = vsyncpa [#allocation6], 1
    %s4314 = scalar_lea.sflag [#allocation6], 1
    %4315 = vsyncpa %s4314, 1
    %4316 = vsyncpa [#allocation9], 1
    %4317 = vsyncpa [#allocation4], 1
    %s4318 = scalar_lea.sflag [#allocation4], 1
    %4319 = vsyncpa %s4318, 1

</llo_original>
